<compile_context>
chip_gen: v6e
topology: v6e:2x2x1
jax: 0.10.0
libtpu: 0.0.40
codegen_flags: <defaults>
</compile_context>

<pallas_src>
import functools

import numpy as np
import jax
import jax.numpy as jnp
from jax import lax
from jax.experimental import pallas as pl
from jax.experimental.pallas import tpu as pltpu


# ----------------------------------------------------------------------------
# Fused encoder kernel
# ----------------------------------------------------------------------------
def _ln(z, w, b, eps=1e-5):
    mu = jnp.mean(z, axis=-1, keepdims=True)
    d = z - mu
    var = jnp.mean(d * d, axis=-1, keepdims=True)
    return d * lax.rsqrt(var + eps) * w + b


def _encoder_kernel(
        patch_ref, pos_ref, bias_ref, convw_ref, convb_ref, cls_ref,
        ln1w_ref, ln1b_ref,
        wq_ref, bq_ref, wk_ref, bk_ref, wv_ref, bv_ref,
        projw_ref, projb_ref,
        ln2w_ref, ln2b_ref,
        fc1w_ref, fc1b_ref, fc2w_ref, fc2b_ref,
        lnfw_ref, lnfb_ref,
        o_ref,
        x_ref,
        *, num_heads, head_dim):
    """One transformer layer per grid step; grid = (batch_splits, num_layer)."""
    l = pl.program_id(1)
    nl = pl.num_programs(1)
    H, hd = num_heads, head_dim
    C = H * hd
    Bp, Tp, _ = x_ref.shape
    M = Bp * Tp

    # ---- layer 0: patch embedding + pos emb + cls token into resident x ----
    @pl.when(l == 0)
    def _():
        xp = patch_ref[...].reshape(M, patch_ref.shape[-1])          # (M,K) bf16
        emb = jnp.dot(xp, convw_ref[...],
                      preferred_element_type=jnp.float32)            # (M, C)
        emb = emb.reshape(Bp, Tp, C) + convb_ref[...] + pos_ref[...]
        row = lax.broadcasted_iota(jnp.int32, (1, Tp, 1), 1)
        # row 0 of every batch element = cls token; pad rows are don't-care
        x_ref[...] = jnp.where(row == 0, cls_ref[...], emb)

    x2 = x_ref[...].reshape(M, C)                                    # f32

    # ---- multi-head self-attention (pre-norm) ----
    hn = _ln(x2, ln1w_ref[0], ln1b_ref[0]).astype(jnp.bfloat16)      # (M, C)

    def head_proj(w_ref, b_ref):
        # per-head (C, hd) matmuls; stacking whole (M, hd) blocks along a new
        # leading axis is cheap (no lane slicing / masked selects).
        outs = []
        for h in range(H):                                           # static
            o = jnp.dot(hn, w_ref[0, h], preferred_element_type=jnp.float32)
            outs.append((o + b_ref[0, h]).astype(jnp.bfloat16))
        return jnp.stack(outs, axis=0)                               # (H, M, hd)

    qh = head_proj(wq_ref, bq_ref)       # attention scale folded into wq/bq
    kh = head_proj(wk_ref, bk_ref)
    vh = head_proj(wv_ref, bv_ref)

    s = jnp.einsum('hqd,hkd->hqk', qh, kh,
                   preferred_element_type=jnp.float32)               # (H, M, M)
    # block-diagonal (per real batch element) + padded-key mask, precomputed
    s = s + bias_ref[...]
    m = jnp.max(s, axis=-1, keepdims=True)
    p = jnp.exp(s - m)
    p = p * pl.reciprocal(jnp.sum(p, axis=-1, keepdims=True), approx=True)
    av = jnp.einsum('hqk,hkd->hqd', p.astype(jnp.bfloat16), vh,
                    preferred_element_type=jnp.float32)              # (H, M, hd)

    a = projb_ref[0]                                                 # (1, C)
    for h in range(H):                                               # static
        a = a + jnp.dot(av[h].astype(jnp.bfloat16), projw_ref[0, h],
                        preferred_element_type=jnp.float32)
    x2 = x2 + a

    # ---- MLP ----
    h2 = _ln(x2, ln2w_ref[0], ln2b_ref[0]).astype(jnp.bfloat16)
    m1 = (jnp.dot(h2, fc1w_ref[0], preferred_element_type=jnp.float32)
          + fc1b_ref[0])
    # tanh GELU (EUP path); pass approximate=False for exact-erf torch parity
    m1 = jax.nn.gelu(m1, approximate=True).astype(jnp.bfloat16)
    m2 = (jnp.dot(m1, fc2w_ref[0], preferred_element_type=jnp.float32)
          + fc2b_ref[0])
    x2 = x2 + m2

    x_ref[...] = x2.reshape(Bp, Tp, C)

    # ---- final LayerNorm + store (last layer only) ----
    @pl.when(l == nl - 1)
    def _():
        y = _ln(x2, lnfw_ref[...], lnfb_ref[...])
        o_ref[...] = y.reshape(Bp, Tp, C)


def _fused_encoder(patch_pad, pos_pad, attn_bias, conv_w, conv_b, cls_tok,
                   ln1w, ln1b, wq, bq, wk, bk, wv, bv, projw, projb,
                   ln2w, ln2b, fc1w, fc1b, fc2w, fc2b, lnfw, lnfb,
                   *, num_head, batch_splits):
    B, Tp, _ = patch_pad.shape
    C = conv_w.shape[-1]
    L = ln1w.shape[0]
    Bp = B // batch_splits

    def const_spec(arr):
        zeros = (0,) * arr.ndim
        return pl.BlockSpec(arr.shape, lambda bs, l: zeros)

    def layer_spec(arr):
        tail = (0,) * (arr.ndim - 1)
        return pl.BlockSpec((1,) + arr.shape[1:], lambda bs, l: (l,) + tail)

    def batch_spec(arr):
        return pl.BlockSpec((Bp,) + arr.shape[1:], lambda bs, l: (bs, 0, 0))

    kernel = functools.partial(_encoder_kernel, num_heads=num_head,
                               head_dim=C // num_head)
    return pl.pallas_call(
        kernel,
        out_shape=jax.ShapeDtypeStruct((B, Tp, C), jnp.float32),
        grid=(batch_splits, L),
        in_specs=[
            batch_spec(patch_pad), batch_spec(pos_pad),
            const_spec(attn_bias), const_spec(conv_w), const_spec(conv_b),
            const_spec(cls_tok),
            layer_spec(ln1w), layer_spec(ln1b),
            layer_spec(wq), layer_spec(bq), layer_spec(wk), layer_spec(bk),
            layer_spec(wv), layer_spec(bv),
            layer_spec(projw), layer_spec(projb),
            layer_spec(ln2w), layer_spec(ln2b),
            layer_spec(fc1w), layer_spec(fc1b),
            layer_spec(fc2w), layer_spec(fc2b),
            const_spec(lnfw), const_spec(lnfb),
        ],
        out_specs=pl.BlockSpec((Bp, Tp, C), lambda bs, l: (bs, 0, 0)),
        scratch_shapes=[pltpu.VMEM((Bp, Tp, C), jnp.float32)],
        compiler_params=pltpu.CompilerParams(
            dimension_semantics=("parallel", "arbitrary"),
            vmem_limit_bytes=32 * 1024 * 1024),
    )(patch_pad, pos_pad, attn_bias, conv_w, conv_b, cls_tok,
      ln1w, ln1b, wq, bq, wk, bk, wv, bv, projw, projb,
      ln2w, ln2b, fc1w, fc1b, fc2w, fc2b, lnfw, lnfb)


# ----------------------------------------------------------------------------
# MAE encoder module
# ----------------------------------------------------------------------------
class MAEEncoderPallas:
    def __init__(self, image_size=16, patch_size=2, emb_dim=32, num_layer=2,
                 num_head=2, mask_ratio=0.75, seed=0, batch_splits=1):
        assert emb_dim % num_head == 0
        self.patch_size = patch_size
        self.emb_dim = emb_dim
        self.num_head = num_head
        self.num_layer = num_layer
        self.mask_ratio = mask_ratio
        self.num_patches = (image_size // patch_size) ** 2
        self.remain = int(self.num_patches * (1 - mask_ratio))
        # batch_splits=1 collapses the batch grid (best on v5e/v6e);
        # set 2 on v7x to shard across both TensorCores.
        self.batch_splits = batch_splits

        key = jax.random.PRNGKey(seed)
        self._key, key = jax.random.split(key)           # per-call shuffle key
        ks = iter(jax.random.split(key, 3 + 6 * num_layer))

        def tn(k, shape, std=0.02):
            return (jax.random.truncated_normal(k, -2.0, 2.0, shape,
                                                jnp.float32) * std)

        C, H = emb_dim, num_head
        hd = C // H
        K = 3 * patch_size * patch_size
        scale = hd ** -0.5
        L = num_layer

        # cls token & positional embedding (trunc_normal_, std=0.02)
        self.cls_token = tn(next(ks), (1, C))
        self.pos_emb = tn(next(ks), (self.num_patches, C))
        # patch conv, pre-reshaped to (K, C) with vector order (ci, di, dj)
        conv_w = jax.random.normal(next(ks), (C, 3, patch_size, patch_size),
                                   jnp.float32) * 0.02
        self.conv_w = conv_w.reshape(C, K).T.astype(jnp.bfloat16)     # (K, C)
        self.conv_b = jnp.zeros((1, C), jnp.float32)

        wq_l, wk_l, wv_l, pj_l, f1_l, f2_l = [], [], [], [], [], []
        for _ in range(L):
            wq_l.append(jax.random.normal(next(ks), (C, C), jnp.float32) * 0.02)
            wk_l.append(jax.random.normal(next(ks), (C, C), jnp.float32) * 0.02)
            wv_l.append(jax.random.normal(next(ks), (C, C), jnp.float32) * 0.02)
            pj_l.append(jax.random.normal(next(ks), (C, C), jnp.float32) * 0.02)
            f1_l.append(jax.random.normal(next(ks), (C, 4 * C), jnp.float32) * 0.02)
            f2_l.append(jax.random.normal(next(ks), (4 * C, C), jnp.float32) * 0.02)
        wq = jnp.stack(wq_l)
        wk = jnp.stack(wk_l)
        wv = jnp.stack(wv_l)
        pj = jnp.stack(pj_l)

        # Per-head pre-split layouts so the kernel never lane-slices the
        # activations; attention scale folded into the Q projection (biases
        # are zero, so no bias rescale needed).
        def split_out_heads(w):                              # (L,C,C)->(L,H,C,hd)
            return jnp.moveaxis(w.reshape(L, C, H, hd), 2, 1)

        self.wq = split_out_heads(wq * scale).astype(jnp.bfloat16)
        self.wk = split_out_heads(wk).astype(jnp.bfloat16)
        self.wv = split_out_heads(wv).astype(jnp.bfloat16)
        self.bq = jnp.zeros((L, H, 1, hd), jnp.float32)
        self.bk = jnp.zeros((L, H, 1, hd), jnp.float32)
        self.bv = jnp.zeros((L, H, 1, hd), jnp.float32)
        self.projw = pj.reshape(L, H, hd, C).astype(jnp.bfloat16)     # (L,H,hd,C)
        self.projb = jnp.zeros((L, 1, C), jnp.float32)

        self.ln1w = jnp.ones((L, 1, C), jnp.float32)
        self.ln1b = jnp.zeros((L, 1, C), jnp.float32)
        self.ln2w = jnp.ones((L, 1, C), jnp.float32)
        self.ln2b = jnp.zeros((L, 1, C), jnp.float32)
        self.fc1w = jnp.stack(f1_l).astype(jnp.bfloat16)              # (L,C,4C)
        self.fc1b = jnp.zeros((L, 1, 4 * C), jnp.float32)
        self.fc2w = jnp.stack(f2_l).astype(jnp.bfloat16)              # (L,4C,C)
        self.fc2b = jnp.zeros((L, 1, C), jnp.float32)
        self.lnfw = jnp.ones((1, C), jnp.float32)
        self.lnfb = jnp.zeros((1, C), jnp.float32)

        self._forward = jax.jit(self._forward_impl)

    def _forward_impl(self, imgs, key):
        """imgs: (B, 3, H, W) float32 (NCHW). Fully jitted, no host sync."""
        B, Cin, Himg, Wimg = imgs.shape
        p = self.patch_size
        Hp, Wp = Himg // p, Wimg // p
        N = Hp * Wp
        C = self.emb_dim
        R = self.remain
        T = R + 1
        Tp = -(-T // 8) * 8                               # pad tokens to mult. of 8
        bs = self.batch_splits if (B % self.batch_splits == 0) else 1
        Bp = B // bs
        M = Bp * Tp

        # patchify (glue): (B,3,H,W) -> (B, N, 3*p*p), vector order (ci, di, dj)
        x = imgs.reshape(B, Cin, Hp, p, Wp, p)
        x = jnp.transpose(x, (0, 2, 4, 1, 3, 5)).reshape(B, N, Cin * p * p)

        # on-device PatchShuffle: per-batch random permutation + argsort
        keys = jax.random.split(key, B)
        fwd = jax.vmap(lambda kk: jax.random.permutation(kk, N))(keys)  # (B, N)
        bwd = jnp.argsort(fwd, axis=1)                                  # (B, N)
        sel = fwd[:, :R]                                                # (B, R)

        # gather raw patch vectors + their positional embeddings
        # (embed(gather(raw)) + gather(pos) == shuffle(embed(raw) + pos)[:R])
        patch_sel = jnp.take_along_axis(x, sel[:, :, None], axis=1)     # (B,R,K)
        pos_sel = jnp.take(self.pos_emb, sel, axis=0)                   # (B,R,C)

        # token-axis padding: row 0 reserved for cls, rows 1..R real patches,
        # rows R+1..Tp-1 zero pad (masked out of attention inside the kernel)
        pad = ((0, 0), (1, Tp - 1 - R), (0, 0))
        patch_pad = jnp.pad(patch_sel, pad).astype(jnp.bfloat16)        # (B,Tp,K)
        pos_pad = jnp.pad(pos_sel, pad)                                 # (B,Tp,C)

        # block-diagonal (per batch element inside the folded M axis) + padded
        # key mask; static shapes -> plain numpy constant, zero in-kernel cost
        tok = np.arange(M)
        same_batch = (tok[:, None] // Tp) == (tok[None, :] // Tp)
        valid_key = (tok[None, :] % Tp) < T
        attn_bias = jnp.asarray(
            np.where(same_batch & valid_key, 0.0, -1e30), dtype=jnp.float32)

        feats = _fused_encoder(
            patch_pad, pos_pad, attn_bias, self.conv_w, self.conv_b,
            self.cls_token,
            self.ln1w, self.ln1b, self.wq, self.bq, self.wk, self.bk,
            self.wv, self.bv, self.projw, self.projb,
            self.ln2w, self.ln2b, self.fc1w, self.fc1b,
            self.fc2w, self.fc2b, self.lnfw, self.lnfb,
            num_head=self.num_head, batch_splits=bs)                    # (B,Tp,C)

        features = jnp.transpose(feats[:, :T, :], (1, 0, 2))            # (T,B,C)
        backward_indexes = bwd.T.astype(jnp.int32)                      # (N, B)
        return features, backward_indexes

    def __call__(self, imgs):
        self._key, sub = jax.random.split(self._key)
        return self._forward(imgs, sub)


# ----------------------------------------------------------------------------
if __name__ == "__main__":
    B, image_size, patch_size = 2, 16, 2
    emb_dim, num_layer, num_head, mask_ratio = 32, 2, 2, 0.75

    key = jax.random.PRNGKey(0)
    imgs = jax.random.normal(key, (B, 3, image_size, image_size), jnp.float32)

    enc = MAEEncoderPallas(image_size=image_size, patch_size=patch_size,
                           emb_dim=emb_dim, num_layer=num_layer,
                           num_head=num_head, mask_ratio=mask_ratio, seed=0)
    features, backward_indexes = enc(imgs)
    features = jax.block_until_ready(features)
    backward_indexes = jax.block_until_ready(backward_indexes)

    N = (image_size // patch_size) ** 2
    remain = int(N * (1 - mask_ratio))
    assert features.shape == (remain + 1, B, emb_dim), features.shape
    assert backward_indexes.shape == (N, B), backward_indexes.shape
    assert bool(jnp.all(jnp.isfinite(features)))
    print("KERNEL_OK")
</pallas_src>

<mosaic_0001>
module attributes {stable_mosaic.version = 11 : i64} {
  func.func @_encoder_kernel(%arg0: i32, %arg1: i32, %arg2: memref<2x24x12xbf16, #tpu.memory_space<vmem>>, %arg3: memref<2x24x32xf32, #tpu.memory_space<vmem>>, %arg4: memref<48x48xf32, #tpu.memory_space<vmem>>, %arg5: memref<12x32xbf16, #tpu.memory_space<vmem>>, %arg6: memref<1x32xf32, #tpu.memory_space<vmem>>, %arg7: memref<1x32xf32, #tpu.memory_space<vmem>>, %arg8: memref<1x1x32xf32, #tpu.memory_space<vmem>>, %arg9: memref<1x1x32xf32, #tpu.memory_space<vmem>>, %arg10: memref<1x2x32x16xbf16, #tpu.memory_space<vmem>>, %arg11: memref<1x2x1x16xf32, #tpu.memory_space<vmem>>, %arg12: memref<1x2x32x16xbf16, #tpu.memory_space<vmem>>, %arg13: memref<1x2x1x16xf32, #tpu.memory_space<vmem>>, %arg14: memref<1x2x32x16xbf16, #tpu.memory_space<vmem>>, %arg15: memref<1x2x1x16xf32, #tpu.memory_space<vmem>>, %arg16: memref<1x2x16x32xbf16, #tpu.memory_space<vmem>>, %arg17: memref<1x1x32xf32, #tpu.memory_space<vmem>>, %arg18: memref<1x1x32xf32, #tpu.memory_space<vmem>>, %arg19: memref<1x1x32xf32, #tpu.memory_space<vmem>>, %arg20: memref<1x32x128xbf16, #tpu.memory_space<vmem>>, %arg21: memref<1x1x128xf32, #tpu.memory_space<vmem>>, %arg22: memref<1x128x32xbf16, #tpu.memory_space<vmem>>, %arg23: memref<1x1x32xf32, #tpu.memory_space<vmem>>, %arg24: memref<1x32xf32, #tpu.memory_space<vmem>>, %arg25: memref<1x32xf32, #tpu.memory_space<vmem>>, %arg26: memref<2x24x32xf32, #tpu.memory_space<vmem>>, %arg27: memref<2x24x32xf32, #tpu.memory_space<vmem>>) attributes {dimension_semantics = [#tpu.dimension_semantics<parallel>, #tpu.dimension_semantics<arbitrary>], iteration_bounds = array<i64: 1, 2>, scalar_prefetch = 0 : i64, scratch_operands = 1 : i64, tpu.core_type = #tpu.core_type<tc>, window_params = [{transform_indices = @transform_0, window_bounds = array<i64: 2, 24, 12>}, {transform_indices = @transform_1, window_bounds = array<i64: 2, 24, 32>}, {pipeline_mode = #tpu.pipeline_mode<synchronous>, transform_indices = @transform_2, window_bounds = array<i64: 48, 48>}, {pipeline_mode = #tpu.pipeline_mode<synchronous>, transform_indices = @transform_3, window_bounds = array<i64: 12, 32>}, {pipeline_mode = #tpu.pipeline_mode<synchronous>, transform_indices = @transform_4, window_bounds = array<i64: 1, 32>}, {pipeline_mode = #tpu.pipeline_mode<synchronous>, transform_indices = @transform_5, window_bounds = array<i64: 1, 32>}, {transform_indices = @transform_6, window_bounds = array<i64: 1, 1, 32>}, {transform_indices = @transform_7, window_bounds = array<i64: 1, 1, 32>}, {transform_indices = @transform_8, window_bounds = array<i64: 1, 2, 32, 16>}, {transform_indices = @transform_9, window_bounds = array<i64: 1, 2, 1, 16>}, {transform_indices = @transform_10, window_bounds = array<i64: 1, 2, 32, 16>}, {transform_indices = @transform_11, window_bounds = array<i64: 1, 2, 1, 16>}, {transform_indices = @transform_12, window_bounds = array<i64: 1, 2, 32, 16>}, {transform_indices = @transform_13, window_bounds = array<i64: 1, 2, 1, 16>}, {transform_indices = @transform_14, window_bounds = array<i64: 1, 2, 16, 32>}, {transform_indices = @transform_15, window_bounds = array<i64: 1, 1, 32>}, {transform_indices = @transform_16, window_bounds = array<i64: 1, 1, 32>}, {transform_indices = @transform_17, window_bounds = array<i64: 1, 1, 32>}, {transform_indices = @transform_18, window_bounds = array<i64: 1, 32, 128>}, {transform_indices = @transform_19, window_bounds = array<i64: 1, 1, 128>}, {transform_indices = @transform_20, window_bounds = array<i64: 1, 128, 32>}, {transform_indices = @transform_21, window_bounds = array<i64: 1, 1, 32>}, {pipeline_mode = #tpu.pipeline_mode<synchronous>, transform_indices = @transform_22, window_bounds = array<i64: 1, 32>}, {pipeline_mode = #tpu.pipeline_mode<synchronous>, transform_indices = @transform_23, window_bounds = array<i64: 1, 32>}, {transform_indices = @transform_24, window_bounds = array<i64: 2, 24, 32>}]} {
    %c0_i32 = arith.constant 0 : i32
    %0 = arith.cmpi eq, %arg1, %c0_i32 : i32
    %1 = arith.extui %0 : i1 to i32
    %c0_i32_0 = arith.constant 0 : i32
    %2 = arith.cmpi ne, %1, %c0_i32_0 : i32
    scf.if %2 {
      %c0_118 = arith.constant 0 : index
      %c0_119 = arith.constant 0 : index
      %c0_120 = arith.constant 0 : index
      %181 = vector.load %arg2[%c0_118, %c0_119, %c0_120] : memref<2x24x12xbf16, #tpu.memory_space<vmem>>, vector<2x24x12xbf16>
      %182 = vector.shape_cast %181 : vector<2x24x12xbf16> to vector<48x12xbf16>
      %c0_121 = arith.constant 0 : index
      %c0_122 = arith.constant 0 : index
      %183 = vector.load %arg5[%c0_121, %c0_122] : memref<12x32xbf16, #tpu.memory_space<vmem>>, vector<12x32xbf16>
      %cst_123 = arith.constant dense<0.000000e+00> : vector<48x32xf32>
      %184 = tpu.matmul %182, %183, %cst_123 {dimension_numbers = #tpu.dot_dimension_numbers<[1], [0], [0], [1], [0, 0, 1, 1], [], []>} : vector<48x12xbf16>, vector<12x32xbf16>, vector<48x32xf32> -> vector<48x32xf32>
      %185 = vector.shape_cast %184 : vector<48x32xf32> to vector<2x24x32xf32>
      %c0_124 = arith.constant 0 : index
      %c0_125 = arith.constant 0 : index
      %186 = vector.load %arg6[%c0_124, %c0_125] : memref<1x32xf32, #tpu.memory_space<vmem>>, vector<1x32xf32>
      %187 = vector.shape_cast %186 : vector<1x32xf32> to vector<1x1x32xf32>
      %188 = vector.broadcast %187 : vector<1x1x32xf32> to vector<2x24x32xf32>
      %189 = arith.addf %185, %188 : vector<2x24x32xf32>
      %c0_126 = arith.constant 0 : index
      %c0_127 = arith.constant 0 : index
      %c0_128 = arith.constant 0 : index
      %190 = vector.load %arg3[%c0_126, %c0_127, %c0_128] : memref<2x24x32xf32, #tpu.memory_space<vmem>>, vector<2x24x32xf32>
      %191 = arith.addf %189, %190 : vector<2x24x32xf32>
      %192 = tpu.iota {dimensions = array<i32: 1>} : vector<1x24x1xi32>
      %c0_i32_129 = arith.constant 0 : i32
      %193 = vector.broadcast %c0_i32_129 : i32 to vector<1x24x1xi32>
      %194 = arith.cmpi eq, %192, %193 : vector<1x24x1xi32>
      %c0_130 = arith.constant 0 : index
      %c0_131 = arith.constant 0 : index
      %195 = vector.load %arg7[%c0_130, %c0_131] : memref<1x32xf32, #tpu.memory_space<vmem>>, vector<1x32xf32>
      %196 = vector.shape_cast %194 : vector<1x24x1xi1> to vector<1x24x1xi1>
      %197 = vector.broadcast %196 : vector<1x24x1xi1> to vector<2x24x32xi1>
      %198 = vector.shape_cast %195 : vector<1x32xf32> to vector<1x1x32xf32>
      %199 = vector.broadcast %198 : vector<1x1x32xf32> to vector<2x24x32xf32>
      %200 = arith.select %197, %199, %191 : vector<2x24x32xi1>, vector<2x24x32xf32>
      %c0_132 = arith.constant 0 : index
      %c0_133 = arith.constant 0 : index
      %c0_134 = arith.constant 0 : index
      %201 = vector.load %arg27[%c0_132, %c0_133, %c0_134] : memref<2x24x32xf32, #tpu.memory_space<vmem>>, vector<2x24x32xf32>
      tpu.vector_store %arg27[%c0_132, %c0_133, %c0_134], %200 {strides = array<i32>} : memref<2x24x32xf32, #tpu.memory_space<vmem>>, vector<2x24x32xf32>,
    } else {
    }
    %c0 = arith.constant 0 : index
    %c0_1 = arith.constant 0 : index
    %c0_2 = arith.constant 0 : index
    %3 = vector.load %arg27[%c0, %c0_1, %c0_2] : memref<2x24x32xf32, #tpu.memory_space<vmem>>, vector<2x24x32xf32>
    %4 = vector.shape_cast %3 : vector<2x24x32xf32> to vector<48x32xf32>
    %c0_3 = arith.constant 0 : index
    %c0_4 = arith.constant 0 : index
    %c0_5 = arith.constant 0 : index
    %5 = vector.load %arg8[%c0_3, %c0_4, %c0_5] : memref<1x1x32xf32, #tpu.memory_space<vmem>>, vector<1x1x32xf32>
    %6 = vector.shape_cast %5 : vector<1x1x32xf32> to vector<1x32xf32>
    %c0_6 = arith.constant 0 : index
    %c0_7 = arith.constant 0 : index
    %c0_8 = arith.constant 0 : index
    %7 = vector.load %arg9[%c0_6, %c0_7, %c0_8] : memref<1x1x32xf32, #tpu.memory_space<vmem>>, vector<1x1x32xf32>
    %8 = vector.shape_cast %7 : vector<1x1x32xf32> to vector<1x32xf32>
    %cst = arith.constant dense<0.000000e+00> : vector<48xf32>
    %9 = vector.multi_reduction <add>, %4, %cst [1] : vector<48x32xf32> to vector<48xf32>
    %10 = vector.shape_cast %9 : vector<48xf32> to vector<48x1xf32>
    %cst_9 = arith.constant 3.200000e+01 : f32
    %11 = vector.broadcast %cst_9 : f32 to vector<48x1xf32>
    %12 = arith.divf %10, %11 : vector<48x1xf32>
    %13 = vector.broadcast %12 : vector<48x1xf32> to vector<48x32xf32>
    %14 = arith.subf %4, %13 : vector<48x32xf32>
    %15 = arith.mulf %14, %14 : vector<48x32xf32>
    %cst_10 = arith.constant dense<0.000000e+00> : vector<48xf32>
    %16 = vector.multi_reduction <add>, %15, %cst_10 [1] : vector<48x32xf32> to vector<48xf32>
    %17 = vector.shape_cast %16 : vector<48xf32> to vector<48x1xf32>
    %cst_11 = arith.constant 3.200000e+01 : f32
    %18 = vector.broadcast %cst_11 : f32 to vector<48x1xf32>
    %19 = arith.divf %17, %18 : vector<48x1xf32>
    %cst_12 = arith.constant 9.99999974E-6 : f32
    %20 = vector.broadcast %cst_12 : f32 to vector<48x1xf32>
    %21 = arith.addf %19, %20 : vector<48x1xf32>
    %22 = math.rsqrt %21 : vector<48x1xf32>
    %23 = vector.broadcast %22 : vector<48x1xf32> to vector<48x32xf32>
    %24 = arith.mulf %14, %23 : vector<48x32xf32>
    %25 = vector.broadcast %6 : vector<1x32xf32> to vector<48x32xf32>
    %26 = arith.mulf %24, %25 : vector<48x32xf32>
    %27 = vector.broadcast %8 : vector<1x32xf32> to vector<48x32xf32>
    %28 = arith.addf %26, %27 : vector<48x32xf32>
    %29 = arith.truncf %28 : vector<48x32xf32> to vector<48x32xbf16>
    %c0_13 = arith.constant 0 : index
    %c0_14 = arith.constant 0 : index
    %c0_15 = arith.constant 0 : index
    %c0_16 = arith.constant 0 : index
    %30 = vector.load %arg10[%c0_13, %c0_14, %c0_15, %c0_16] : memref<1x2x32x16xbf16, #tpu.memory_space<vmem>>, vector<1x1x32x16xbf16>
    %31 = vector.shape_cast %30 : vector<1x1x32x16xbf16> to vector<32x16xbf16>
    %cst_17 = arith.constant dense<0.000000e+00> : vector<48x16xf32>
    %32 = tpu.matmul %29, %31, %cst_17 {dimension_numbers = #tpu.dot_dimension_numbers<[1], [0], [0], [1], [0, 0, 1, 1], [], []>} : vector<48x32xbf16>, vector<32x16xbf16>, vector<48x16xf32> -> vector<48x16xf32>
    %c0_18 = arith.constant 0 : index
    %c0_19 = arith.constant 0 : index
    %c0_20 = arith.constant 0 : index
    %c0_21 = arith.constant 0 : index
    %33 = vector.load %arg11[%c0_18, %c0_19, %c0_20, %c0_21] : memref<1x2x1x16xf32, #tpu.memory_space<vmem>>, vector<1x1x1x16xf32>
    %34 = vector.shape_cast %33 : vector<1x1x1x16xf32> to vector<1x16xf32>
    %35 = vector.broadcast %34 : vector<1x16xf32> to vector<48x16xf32>
    %36 = arith.addf %32, %35 : vector<48x16xf32>
    %37 = arith.truncf %36 : vector<48x16xf32> to vector<48x16xbf16>
    %c0_22 = arith.constant 0 : index
    %c1 = arith.constant 1 : index
    %c0_23 = arith.constant 0 : index
    %c0_24 = arith.constant 0 : index
    %38 = vector.load %arg10[%c0_22, %c1, %c0_23, %c0_24] : memref<1x2x32x16xbf16, #tpu.memory_space<vmem>>, vector<1x1x32x16xbf16>
    %39 = vector.shape_cast %38 : vector<1x1x32x16xbf16> to vector<32x16xbf16>
    %cst_25 = arith.constant dense<0.000000e+00> : vector<48x16xf32>
    %40 = tpu.matmul %29, %39, %cst_25 {dimension_numbers = #tpu.dot_dimension_numbers<[1], [0], [0], [1], [0, 0, 1, 1], [], []>} : vector<48x32xbf16>, vector<32x16xbf16>, vector<48x16xf32> -> vector<48x16xf32>
    %c0_26 = arith.constant 0 : index
    %c1_27 = arith.constant 1 : index
    %c0_28 = arith.constant 0 : index
    %c0_29 = arith.constant 0 : index
    %41 = vector.load %arg11[%c0_26, %c1_27, %c0_28, %c0_29] : memref<1x2x1x16xf32, #tpu.memory_space<vmem>>, vector<1x1x1x16xf32>
    %42 = vector.shape_cast %41 : vector<1x1x1x16xf32> to vector<1x16xf32>
    %43 = vector.broadcast %42 : vector<1x16xf32> to vector<48x16xf32>
    %44 = arith.addf %40, %43 : vector<48x16xf32>
    %45 = arith.truncf %44 : vector<48x16xf32> to vector<48x16xbf16>
    %46 = vector.shape_cast %37 : vector<48x16xbf16> to vector<1x48x16xbf16>
    %47 = vector.shape_cast %45 : vector<48x16xbf16> to vector<1x48x16xbf16>
    %48 = tpu.concatenate %46, %47 in 0 : vector<1x48x16xbf16>, vector<1x48x16xbf16> -> vector<2x48x16xbf16>
    %c0_30 = arith.constant 0 : index
    %c0_31 = arith.constant 0 : index
    %c0_32 = arith.constant 0 : index
    %c0_33 = arith.constant 0 : index
    %49 = vector.load %arg12[%c0_30, %c0_31, %c0_32, %c0_33] : memref<1x2x32x16xbf16, #tpu.memory_space<vmem>>, vector<1x1x32x16xbf16>
    %50 = vector.shape_cast %49 : vector<1x1x32x16xbf16> to vector<32x16xbf16>
    %cst_34 = arith.constant dense<0.000000e+00> : vector<48x16xf32>
    %51 = tpu.matmul %29, %50, %cst_34 {dimension_numbers = #tpu.dot_dimension_numbers<[1], [0], [0], [1], [0, 0, 1, 1], [], []>} : vector<48x32xbf16>, vector<32x16xbf16>, vector<48x16xf32> -> vector<48x16xf32>
    %c0_35 = arith.constant 0 : index
    %c0_36 = arith.constant 0 : index
    %c0_37 = arith.constant 0 : index
    %c0_38 = arith.constant 0 : index
    %52 = vector.load %arg13[%c0_35, %c0_36, %c0_37, %c0_38] : memref<1x2x1x16xf32, #tpu.memory_space<vmem>>, vector<1x1x1x16xf32>
    %53 = vector.shape_cast %52 : vector<1x1x1x16xf32> to vector<1x16xf32>
    %54 = vector.broadcast %53 : vector<1x16xf32> to vector<48x16xf32>
    %55 = arith.addf %51, %54 : vector<48x16xf32>
    %56 = arith.truncf %55 : vector<48x16xf32> to vector<48x16xbf16>
    %c0_39 = arith.constant 0 : index
    %c1_40 = arith.constant 1 : index
    %c0_41 = arith.constant 0 : index
    %c0_42 = arith.constant 0 : index
    %57 = vector.load %arg12[%c0_39, %c1_40, %c0_41, %c0_42] : memref<1x2x32x16xbf16, #tpu.memory_space<vmem>>, vector<1x1x32x16xbf16>
    %58 = vector.shape_cast %57 : vector<1x1x32x16xbf16> to vector<32x16xbf16>
    %cst_43 = arith.constant dense<0.000000e+00> : vector<48x16xf32>
    %59 = tpu.matmul %29, %58, %cst_43 {dimension_numbers = #tpu.dot_dimension_numbers<[1], [0], [0], [1], [0, 0, 1, 1], [], []>} : vector<48x32xbf16>, vector<32x16xbf16>, vector<48x16xf32> -> vector<48x16xf32>
    %c0_44 = arith.constant 0 : index
    %c1_45 = arith.constant 1 : index
    %c0_46 = arith.constant 0 : index
    %c0_47 = arith.constant 0 : index
    %60 = vector.load %arg13[%c0_44, %c1_45, %c0_46, %c0_47] : memref<1x2x1x16xf32, #tpu.memory_space<vmem>>, vector<1x1x1x16xf32>
    %61 = vector.shape_cast %60 : vector<1x1x1x16xf32> to vector<1x16xf32>
    %62 = vector.broadcast %61 : vector<1x16xf32> to vector<48x16xf32>
    %63 = arith.addf %59, %62 : vector<48x16xf32>
    %64 = arith.truncf %63 : vector<48x16xf32> to vector<48x16xbf16>
    %65 = vector.shape_cast %56 : vector<48x16xbf16> to vector<1x48x16xbf16>
    %66 = vector.shape_cast %64 : vector<48x16xbf16> to vector<1x48x16xbf16>
    %67 = tpu.concatenate %65, %66 in 0 : vector<1x48x16xbf16>, vector<1x48x16xbf16> -> vector<2x48x16xbf16>
    %c0_48 = arith.constant 0 : index
    %c0_49 = arith.constant 0 : index
    %c0_50 = arith.constant 0 : index
    %c0_51 = arith.constant 0 : index
    %68 = vector.load %arg14[%c0_48, %c0_49, %c0_50, %c0_51] : memref<1x2x32x16xbf16, #tpu.memory_space<vmem>>, vector<1x1x32x16xbf16>
    %69 = vector.shape_cast %68 : vector<1x1x32x16xbf16> to vector<32x16xbf16>
    %cst_52 = arith.constant dense<0.000000e+00> : vector<48x16xf32>
    %70 = tpu.matmul %29, %69, %cst_52 {dimension_numbers = #tpu.dot_dimension_numbers<[1], [0], [0], [1], [0, 0, 1, 1], [], []>} : vector<48x32xbf16>, vector<32x16xbf16>, vector<48x16xf32> -> vector<48x16xf32>
    %c0_53 = arith.constant 0 : index
    %c0_54 = arith.constant 0 : index
    %c0_55 = arith.constant 0 : index
    %c0_56 = arith.constant 0 : index
    %71 = vector.load %arg15[%c0_53, %c0_54, %c0_55, %c0_56] : memref<1x2x1x16xf32, #tpu.memory_space<vmem>>, vector<1x1x1x16xf32>
    %72 = vector.shape_cast %71 : vector<1x1x1x16xf32> to vector<1x16xf32>
    %73 = vector.broadcast %72 : vector<1x16xf32> to vector<48x16xf32>
    %74 = arith.addf %70, %73 : vector<48x16xf32>
    %75 = arith.truncf %74 : vector<48x16xf32> to vector<48x16xbf16>
    %c0_57 = arith.constant 0 : index
    %c1_58 = arith.constant 1 : index
    %c0_59 = arith.constant 0 : index
    %c0_60 = arith.constant 0 : index
    %76 = vector.load %arg14[%c0_57, %c1_58, %c0_59, %c0_60] : memref<1x2x32x16xbf16, #tpu.memory_space<vmem>>, vector<1x1x32x16xbf16>
    %77 = vector.shape_cast %76 : vector<1x1x32x16xbf16> to vector<32x16xbf16>
    %cst_61 = arith.constant dense<0.000000e+00> : vector<48x16xf32>
    %78 = tpu.matmul %29, %77, %cst_61 {dimension_numbers = #tpu.dot_dimension_numbers<[1], [0], [0], [1], [0, 0, 1, 1], [], []>} : vector<48x32xbf16>, vector<32x16xbf16>, vector<48x16xf32> -> vector<48x16xf32>
    %c0_62 = arith.constant 0 : index
    %c1_63 = arith.constant 1 : index
    %c0_64 = arith.constant 0 : index
    %c0_65 = arith.constant 0 : index
    %79 = vector.load %arg15[%c0_62, %c1_63, %c0_64, %c0_65] : memref<1x2x1x16xf32, #tpu.memory_space<vmem>>, vector<1x1x1x16xf32>
    %80 = vector.shape_cast %79 : vector<1x1x1x16xf32> to vector<1x16xf32>
    %81 = vector.broadcast %80 : vector<1x16xf32> to vector<48x16xf32>
    %82 = arith.addf %78, %81 : vector<48x16xf32>
    %83 = arith.truncf %82 : vector<48x16xf32> to vector<48x16xbf16>
    %84 = vector.shape_cast %75 : vector<48x16xbf16> to vector<1x48x16xbf16>
    %85 = vector.shape_cast %83 : vector<48x16xbf16> to vector<1x48x16xbf16>
    %86 = tpu.concatenate %84, %85 in 0 : vector<1x48x16xbf16>, vector<1x48x16xbf16> -> vector<2x48x16xbf16>
    "tpu.trace_start"() <{level = 10 : i32, message = "hqd,hkd->hqk"}> : () -> ()
    %cst_66 = arith.constant dense<0.000000e+00> : vector<2x48x48xf32>
    %87 = tpu.matmul %48, %67, %cst_66 {dimension_numbers = #tpu.dot_dimension_numbers<[2], [2], [1], [1], [0, 0, 0, 1, 1, 1], [0], [0]>} : vector<2x48x16xbf16>, vector<2x48x16xbf16>, vector<2x48x48xf32> -> vector<2x48x48xf32>
    "tpu.trace_stop"() : () -> ()
    %c0_67 = arith.constant 0 : index
    %c0_68 = arith.constant 0 : index
    %88 = vector.load %arg4[%c0_67, %c0_68] : memref<48x48xf32, #tpu.memory_space<vmem>>, vector<48x48xf32>
    %89 = vector.shape_cast %88 : vector<48x48xf32> to vector<1x48x48xf32>
    %90 = vector.broadcast %89 : vector<1x48x48xf32> to vector<2x48x48xf32>
    %91 = arith.addf %87, %90 : vector<2x48x48xf32>
    %cst_69 = arith.constant dense<0xFF800000> : vector<2x48xf32>
    %92 = vector.multi_reduction <maximumf>, %91, %cst_69 [2] : vector<2x48x48xf32> to vector<2x48xf32>
    %93 = vector.shape_cast %92 : vector<2x48xf32> to vector<2x48x1xf32>
    %94 = vector.broadcast %93 : vector<2x48x1xf32> to vector<2x48x48xf32>
    %95 = arith.subf %91, %94 : vector<2x48x48xf32>
    %96 = math.exp %95 : vector<2x48x48xf32>
    %cst_70 = arith.constant dense<0.000000e+00> : vector<2x48xf32>
    %97 = vector.multi_reduction <add>, %96, %cst_70 [2] : vector<2x48x48xf32> to vector<2x48xf32>
    %98 = vector.shape_cast %97 : vector<2x48xf32> to vector<2x48x1xf32>
    %99 = tpu.reciprocal %98 {approx = true} : vector<2x48x1xf32> -> vector<2x48x1xf32>
    %100 = vector.broadcast %99 : vector<2x48x1xf32> to vector<2x48x48xf32>
    %101 = arith.mulf %96, %100 : vector<2x48x48xf32>
    %102 = arith.truncf %101 : vector<2x48x48xf32> to vector<2x48x48xbf16>
    "tpu.trace_start"() <{level = 10 : i32, message = "hqk,hkd->hqd"}> : () -> ()
    %cst_71 = arith.constant dense<0.000000e+00> : vector<2x48x16xf32>
    %103 = tpu.matmul %102, %86, %cst_71 {dimension_numbers = #tpu.dot_dimension_numbers<[2], [1], [1], [2], [0, 0, 0, 1, 1, 2], [0], [0]>} : vector<2x48x48xbf16>, vector<2x48x16xbf16>, vector<2x48x16xf32> -> vector<2x48x16xf32>
    "tpu.trace_stop"() : () -> ()
    %c0_72 = arith.constant 0 : index
    %c0_73 = arith.constant 0 : index
    %c0_74 = arith.constant 0 : index
    %104 = vector.load %arg17[%c0_72, %c0_73, %c0_74] : memref<1x1x32xf32, #tpu.memory_space<vmem>>, vector<1x1x32xf32>
    %105 = vector.shape_cast %104 : vector<1x1x32xf32> to vector<1x32xf32>
    %106 = vector.extract_strided_slice %103 {offsets = [0, 0, 0], sizes = [1, 48, 16], strides = [1, 1, 1]} : vector<2x48x16xf32> to vector<1x48x16xf32>
    %107 = vector.shape_cast %106 : vector<1x48x16xf32> to vector<48x16xf32>
    %108 = arith.truncf %107 : vector<48x16xf32> to vector<48x16xbf16>
    %c0_75 = arith.constant 0 : index
    %c0_76 = arith.constant 0 : index
    %c0_77 = arith.constant 0 : index
    %c0_78 = arith.constant 0 : index
    %109 = vector.load %arg16[%c0_75, %c0_76, %c0_77, %c0_78] : memref<1x2x16x32xbf16, #tpu.memory_space<vmem>>, vector<1x1x16x32xbf16>
    %110 = vector.shape_cast %109 : vector<1x1x16x32xbf16> to vector<16x32xbf16>
    %cst_79 = arith.constant dense<0.000000e+00> : vector<48x32xf32>
    %111 = tpu.matmul %108, %110, %cst_79 {dimension_numbers = #tpu.dot_dimension_numbers<[1], [0], [0], [1], [0, 0, 1, 1], [], []>} : vector<48x16xbf16>, vector<16x32xbf16>, vector<48x32xf32> -> vector<48x32xf32>
    %112 = vector.broadcast %105 : vector<1x32xf32> to vector<48x32xf32>
    %113 = arith.addf %112, %111 : vector<48x32xf32>
    %114 = vector.extract_strided_slice %103 {offsets = [1, 0, 0], sizes = [1, 48, 16], strides = [1, 1, 1]} : vector<2x48x16xf32> to vector<1x48x16xf32>
    %115 = vector.shape_cast %114 : vector<1x48x16xf32> to vector<48x16xf32>
    %116 = arith.truncf %115 : vector<48x16xf32> to vector<48x16xbf16>
    %c0_80 = arith.constant 0 : index
    %c1_81 = arith.constant 1 : index
    %c0_82 = arith.constant 0 : index
    %c0_83 = arith.constant 0 : index
    %117 = vector.load %arg16[%c0_80, %c1_81, %c0_82, %c0_83] : memref<1x2x16x32xbf16, #tpu.memory_space<vmem>>, vector<1x1x16x32xbf16>
    %118 = vector.shape_cast %117 : vector<1x1x16x32xbf16> to vector<16x32xbf16>
    %cst_84 = arith.constant dense<0.000000e+00> : vector<48x32xf32>
    %119 = tpu.matmul %116, %118, %cst_84 {dimension_numbers = #tpu.dot_dimension_numbers<[1], [0], [0], [1], [0, 0, 1, 1], [], []>} : vector<48x16xbf16>, vector<16x32xbf16>, vector<48x32xf32> -> vector<48x32xf32>
    %120 = arith.addf %113, %119 : vector<48x32xf32>
    %121 = arith.addf %4, %120 : vector<48x32xf32>
    %c0_85 = arith.constant 0 : index
    %c0_86 = arith.constant 0 : index
    %c0_87 = arith.constant 0 : index
    %122 = vector.load %arg18[%c0_85, %c0_86, %c0_87] : memref<1x1x32xf32, #tpu.memory_space<vmem>>, vector<1x1x32xf32>
    %123 = vector.shape_cast %122 : vector<1x1x32xf32> to vector<1x32xf32>
    %c0_88 = arith.constant 0 : index
    %c0_89 = arith.constant 0 : index
    %c0_90 = arith.constant 0 : index
    %124 = vector.load %arg19[%c0_88, %c0_89, %c0_90] : memref<1x1x32xf32, #tpu.memory_space<vmem>>, vector<1x1x32xf32>
    %125 = vector.shape_cast %124 : vector<1x1x32xf32> to vector<1x32xf32>
    %cst_91 = arith.constant dense<0.000000e+00> : vector<48xf32>
    %126 = vector.multi_reduction <add>, %121, %cst_91 [1] : vector<48x32xf32> to vector<48xf32>
    %127 = vector.shape_cast %126 : vector<48xf32> to vector<48x1xf32>
    %cst_92 = arith.constant 3.200000e+01 : f32
    %128 = vector.broadcast %cst_92 : f32 to vector<48x1xf32>
    %129 = arith.divf %127, %128 : vector<48x1xf32>
    %130 = vector.broadcast %129 : vector<48x1xf32> to vector<48x32xf32>
    %131 = arith.subf %121, %130 : vector<48x32xf32>
    %132 = arith.mulf %131, %131 : vector<48x32xf32>
    %cst_93 = arith.constant dense<0.000000e+00> : vector<48xf32>
    %133 = vector.multi_reduction <add>, %132, %cst_93 [1] : vector<48x32xf32> to vector<48xf32>
    %134 = vector.shape_cast %133 : vector<48xf32> to vector<48x1xf32>
    %cst_94 = arith.constant 3.200000e+01 : f32
    %135 = vector.broadcast %cst_94 : f32 to vector<48x1xf32>
    %136 = arith.divf %134, %135 : vector<48x1xf32>
    %cst_95 = arith.constant 9.99999974E-6 : f32
    %137 = vector.broadcast %cst_95 : f32 to vector<48x1xf32>
    %138 = arith.addf %136, %137 : vector<48x1xf32>
    %139 = math.rsqrt %138 : vector<48x1xf32>
    %140 = vector.broadcast %139 : vector<48x1xf32> to vector<48x32xf32>
    %141 = arith.mulf %131, %140 : vector<48x32xf32>
    %142 = vector.broadcast %123 : vector<1x32xf32> to vector<48x32xf32>
    %143 = arith.mulf %141, %142 : vector<48x32xf32>
    %144 = vector.broadcast %125 : vector<1x32xf32> to vector<48x32xf32>
    %145 = arith.addf %143, %144 : vector<48x32xf32>
    %146 = arith.truncf %145 : vector<48x32xf32> to vector<48x32xbf16>
    %c0_96 = arith.constant 0 : index
    %c0_97 = arith.constant 0 : index
    %c0_98 = arith.constant 0 : index
    %147 = vector.load %arg20[%c0_96, %c0_97, %c0_98] : memref<1x32x128xbf16, #tpu.memory_space<vmem>>, vector<1x32x128xbf16>
    %148 = vector.shape_cast %147 : vector<1x32x128xbf16> to vector<32x128xbf16>
    %cst_99 = arith.constant dense<0.000000e+00> : vector<48x128xf32>
    %149 = tpu.matmul %146, %148, %cst_99 {dimension_numbers = #tpu.dot_dimension_numbers<[1], [0], [0], [1], [0, 0, 1, 1], [], []>} : vector<48x32xbf16>, vector<32x128xbf16>, vector<48x128xf32> -> vector<48x128xf32>
    %c0_100 = arith.constant 0 : index
    %c0_101 = arith.constant 0 : index
    %c0_102 = arith.constant 0 : index
    %150 = vector.load %arg21[%c0_100, %c0_101, %c0_102] : memref<1x1x128xf32, #tpu.memory_space<vmem>>, vector<1x1x128xf32>
    %151 = vector.shape_cast %150 : vector<1x1x128xf32> to vector<1x128xf32>
    %152 = vector.broadcast %151 : vector<1x128xf32> to vector<48x128xf32>
    %153 = arith.addf %149, %152 : vector<48x128xf32>
    %154 = arith.mulf %153, %153 : vector<48x128xf32>
    %155 = arith.mulf %153, %154 : vector<48x128xf32>
    %cst_103 = arith.constant 4.471500e-02 : f32
    %156 = vector.broadcast %cst_103 : f32 to vector<48x128xf32>
    %157 = arith.mulf %156, %155 : vector<48x128xf32>
    %158 = arith.addf %153, %157 : vector<48x128xf32>
    %cst_104 = arith.constant 0.797884583 : f32
    %159 = vector.broadcast %cst_104 : f32 to vector<48x128xf32>
    %160 = arith.mulf %159, %158 : vector<48x128xf32>
    %161 = math.tanh %160 : vector<48x128xf32>
    %cst_105 = arith.constant 1.000000e+00 : f32
    %162 = vector.broadcast %cst_105 : f32 to vector<48x128xf32>
    %163 = arith.addf %162, %161 : vector<48x128xf32>
    %cst_106 = arith.constant 5.000000e-01 : f32
    %164 = vector.broadcast %cst_106 : f32 to vector<48x128xf32>
    %165 = arith.mulf %164, %163 : vector<48x128xf32>
    %166 = arith.mulf %153, %165 : vector<48x128xf32>
    %167 = arith.truncf %166 : vector<48x128xf32> to vector<48x128xbf16>
    %c0_107 = arith.constant 0 : index
    %c0_108 = arith.constant 0 : index
    %c0_109 = arith.constant 0 : index
    %168 = vector.load %arg22[%c0_107, %c0_108, %c0_109] : memref<1x128x32xbf16, #tpu.memory_space<vmem>>, vector<1x128x32xbf16>
    %169 = vector.shape_cast %168 : vector<1x128x32xbf16> to vector<128x32xbf16>
    %cst_110 = arith.constant dense<0.000000e+00> : vector<48x32xf32>
    %170 = tpu.matmul %167, %169, %cst_110 {dimension_numbers = #tpu.dot_dimension_numbers<[1], [0], [0], [1], [0, 0, 1, 1], [], []>} : vector<48x128xbf16>, vector<128x32xbf16>, vector<48x32xf32> -> vector<48x32xf32>
    %c0_111 = arith.constant 0 : index
    %c0_112 = arith.constant 0 : index
    %c0_113 = arith.constant 0 : index
    %171 = vector.load %arg23[%c0_111, %c0_112, %c0_113] : memref<1x1x32xf32, #tpu.memory_space<vmem>>, vector<1x1x32xf32>
    %172 = vector.shape_cast %171 : vector<1x1x32xf32> to vector<1x32xf32>
    %173 = vector.broadcast %172 : vector<1x32xf32> to vector<48x32xf32>
    %174 = arith.addf %170, %173 : vector<48x32xf32>
    %175 = arith.addf %121, %174 : vector<48x32xf32>
    %176 = vector.shape_cast %175 : vector<48x32xf32> to vector<2x24x32xf32>
    %c0_114 = arith.constant 0 : index
    %c0_115 = arith.constant 0 : index
    %c0_116 = arith.constant 0 : index
    %177 = vector.load %arg27[%c0_114, %c0_115, %c0_116] : memref<2x24x32xf32, #tpu.memory_space<vmem>>, vector<2x24x32xf32>
    tpu.vector_store %arg27[%c0_114, %c0_115, %c0_116], %176 {strides = array<i32>} : memref<2x24x32xf32, #tpu.memory_space<vmem>>, vector<2x24x32xf32>,
    %c1_i32 = arith.constant 1 : i32
    %178 = arith.cmpi eq, %arg1, %c1_i32 : i32
    %179 = arith.extui %178 : i1 to i32
    %c0_i32_117 = arith.constant 0 : i32
    %180 = arith.cmpi ne, %179, %c0_i32_117 : i32
    scf.if %180 {
      %c0_118 = arith.constant 0 : index
      %c0_119 = arith.constant 0 : index
      %181 = vector.load %arg24[%c0_118, %c0_119] : memref<1x32xf32, #tpu.memory_space<vmem>>, vector<1x32xf32>
      %c0_120 = arith.constant 0 : index
      %c0_121 = arith.constant 0 : index
      %182 = vector.load %arg25[%c0_120, %c0_121] : memref<1x32xf32, #tpu.memory_space<vmem>>, vector<1x32xf32>
      %cst_122 = arith.constant dense<0.000000e+00> : vector<48xf32>
      %183 = vector.multi_reduction <add>, %175, %cst_122 [1] : vector<48x32xf32> to vector<48xf32>
      %184 = vector.shape_cast %183 : vector<48xf32> to vector<48x1xf32>
      %cst_123 = arith.constant 3.200000e+01 : f32
      %185 = vector.broadcast %cst_123 : f32 to vector<48x1xf32>
      %186 = arith.divf %184, %185 : vector<48x1xf32>
      %187 = vector.broadcast %186 : vector<48x1xf32> to vector<48x32xf32>
      %188 = arith.subf %175, %187 : vector<48x32xf32>
      %189 = arith.mulf %188, %188 : vector<48x32xf32>
      %cst_124 = arith.constant dense<0.000000e+00> : vector<48xf32>
      %190 = vector.multi_reduction <add>, %189, %cst_124 [1] : vector<48x32xf32> to vector<48xf32>
      %191 = vector.shape_cast %190 : vector<48xf32> to vector<48x1xf32>
      %cst_125 = arith.constant 3.200000e+01 : f32
      %192 = vector.broadcast %cst_125 : f32 to vector<48x1xf32>
      %193 = arith.divf %191, %192 : vector<48x1xf32>
      %cst_126 = arith.constant 9.99999974E-6 : f32
      %194 = vector.broadcast %cst_126 : f32 to vector<48x1xf32>
      %195 = arith.addf %193, %194 : vector<48x1xf32>
      %196 = math.rsqrt %195 : vector<48x1xf32>
      %197 = vector.broadcast %196 : vector<48x1xf32> to vector<48x32xf32>
      %198 = arith.mulf %188, %197 : vector<48x32xf32>
      %199 = vector.broadcast %181 : vector<1x32xf32> to vector<48x32xf32>
      %200 = arith.mulf %198, %199 : vector<48x32xf32>
      %201 = vector.broadcast %182 : vector<1x32xf32> to vector<48x32xf32>
      %202 = arith.addf %200, %201 : vector<48x32xf32>
      %203 = vector.shape_cast %202 : vector<48x32xf32> to vector<2x24x32xf32>
      %c0_127 = arith.constant 0 : index
      %c0_128 = arith.constant 0 : index
      %c0_129 = arith.constant 0 : index
      %204 = vector.load %arg26[%c0_127, %c0_128, %c0_129] : memref<2x24x32xf32, #tpu.memory_space<vmem>>, vector<2x24x32xf32>
      tpu.vector_store %arg26[%c0_127, %c0_128, %c0_129], %203 {strides = array<i32>} : memref<2x24x32xf32, #tpu.memory_space<vmem>>, vector<2x24x32xf32>,
    } else {
    }
    return
  }
  func.func @transform_0(%arg0: i32, %arg1: i32) -> (i32, i32, i32) {
    %c0_i32 = arith.constant 0 : i32
    %c0_i32_0 = arith.constant 0 : i32
    %c0_i32_1 = arith.constant 0 : i32
    return %arg0, %c0_i32, %c0_i32_0 : i32, i32, i32
  }
  func.func @transform_1(%arg0: i32, %arg1: i32) -> (i32, i32, i32) {
    %c0_i32 = arith.constant 0 : i32
    %c0_i32_0 = arith.constant 0 : i32
    %c0_i32_1 = arith.constant 0 : i32
    return %arg0, %c0_i32, %c0_i32_0 : i32, i32, i32
  }
  func.func @transform_2(%arg0: i32, %arg1: i32) -> (i32, i32) {
    %c0_i32 = arith.constant 0 : i32
    %c0_i32_0 = arith.constant 0 : i32
    %c0_i32_1 = arith.constant 0 : i32
    return %c0_i32, %c0_i32_0 : i32, i32
  }
  func.func @transform_3(%arg0: i32, %arg1: i32) -> (i32, i32) {
    %c0_i32 = arith.constant 0 : i32
    %c0_i32_0 = arith.constant 0 : i32
    %c0_i32_1 = arith.constant 0 : i32
    return %c0_i32, %c0_i32_0 : i32, i32
  }
  func.func @transform_4(%arg0: i32, %arg1: i32) -> (i32, i32) {
    %c0_i32 = arith.constant 0 : i32
    %c0_i32_0 = arith.constant 0 : i32
    %c0_i32_1 = arith.constant 0 : i32
    return %c0_i32, %c0_i32_0 : i32, i32
  }
  func.func @transform_5(%arg0: i32, %arg1: i32) -> (i32, i32) {
    %c0_i32 = arith.constant 0 : i32
    %c0_i32_0 = arith.constant 0 : i32
    %c0_i32_1 = arith.constant 0 : i32
    return %c0_i32, %c0_i32_0 : i32, i32
  }
  func.func @transform_6(%arg0: i32, %arg1: i32) -> (i32, i32, i32) {
    %c0_i32 = arith.constant 0 : i32
    %c0_i32_0 = arith.constant 0 : i32
    %c0_i32_1 = arith.constant 0 : i32
    return %arg1, %c0_i32, %c0_i32_0 : i32, i32, i32
  }
  func.func @transform_7(%arg0: i32, %arg1: i32) -> (i32, i32, i32) {
    %c0_i32 = arith.constant 0 : i32
    %c0_i32_0 = arith.constant 0 : i32
    %c0_i32_1 = arith.constant 0 : i32
    return %arg1, %c0_i32, %c0_i32_0 : i32, i32, i32
  }
  func.func @transform_8(%arg0: i32, %arg1: i32) -> (i32, i32, i32, i32) {
    %c0_i32 = arith.constant 0 : i32
    %c0_i32_0 = arith.constant 0 : i32
    %c0_i32_1 = arith.constant 0 : i32
    %c0_i32_2 = arith.constant 0 : i32
    return %arg1, %c0_i32, %c0_i32_0, %c0_i32_1 : i32, i32, i32, i32
  }
  func.func @transform_9(%arg0: i32, %arg1: i32) -> (i32, i32, i32, i32) {
    %c0_i32 = arith.constant 0 : i32
    %c0_i32_0 = arith.constant 0 : i32
    %c0_i32_1 = arith.constant 0 : i32
    %c0_i32_2 = arith.constant 0 : i32
    return %arg1, %c0_i32, %c0_i32_0, %c0_i32_1 : i32, i32, i32, i32
  }
  func.func @transform_10(%arg0: i32, %arg1: i32) -> (i32, i32, i32, i32) {
    %c0_i32 = arith.constant 0 : i32
    %c0_i32_0 = arith.constant 0 : i32
    %c0_i32_1 = arith.constant 0 : i32
    %c0_i32_2 = arith.constant 0 : i32
    return %arg1, %c0_i32, %c0_i32_0, %c0_i32_1 : i32, i32, i32, i32
  }
  func.func @transform_11(%arg0: i32, %arg1: i32) -> (i32, i32, i32, i32) {
    %c0_i32 = arith.constant 0 : i32
    %c0_i32_0 = arith.constant 0 : i32
    %c0_i32_1 = arith.constant 0 : i32
    %c0_i32_2 = arith.constant 0 : i32
    return %arg1, %c0_i32, %c0_i32_0, %c0_i32_1 : i32, i32, i32, i32
  }
  func.func @transform_12(%arg0: i32, %arg1: i32) -> (i32, i32, i32, i32) {
    %c0_i32 = arith.constant 0 : i32
    %c0_i32_0 = arith.constant 0 : i32
    %c0_i32_1 = arith.constant 0 : i32
    %c0_i32_2 = arith.constant 0 : i32
    return %arg1, %c0_i32, %c0_i32_0, %c0_i32_1 : i32, i32, i32, i32
  }
  func.func @transform_13(%arg0: i32, %arg1: i32) -> (i32, i32, i32, i32) {
    %c0_i32 = arith.constant 0 : i32
    %c0_i32_0 = arith.constant 0 : i32
    %c0_i32_1 = arith.constant 0 : i32
    %c0_i32_2 = arith.constant 0 : i32
    return %arg1, %c0_i32, %c0_i32_0, %c0_i32_1 : i32, i32, i32, i32
  }
  func.func @transform_14(%arg0: i32, %arg1: i32) -> (i32, i32, i32, i32) {
    %c0_i32 = arith.constant 0 : i32
    %c0_i32_0 = arith.constant 0 : i32
    %c0_i32_1 = arith.constant 0 : i32
    %c0_i32_2 = arith.constant 0 : i32
    return %arg1, %c0_i32, %c0_i32_0, %c0_i32_1 : i32, i32, i32, i32
  }
  func.func @transform_15(%arg0: i32, %arg1: i32) -> (i32, i32, i32) {
    %c0_i32 = arith.constant 0 : i32
    %c0_i32_0 = arith.constant 0 : i32
    %c0_i32_1 = arith.constant 0 : i32
    return %arg1, %c0_i32, %c0_i32_0 : i32, i32, i32
  }
  func.func @transform_16(%arg0: i32, %arg1: i32) -> (i32, i32, i32) {
    %c0_i32 = arith.constant 0 : i32
    %c0_i32_0 = arith.constant 0 : i32
    %c0_i32_1 = arith.constant 0 : i32
    return %arg1, %c0_i32, %c0_i32_0 : i32, i32, i32
  }
  func.func @transform_17(%arg0: i32, %arg1: i32) -> (i32, i32, i32) {
    %c0_i32 = arith.constant 0 : i32
    %c0_i32_0 = arith.constant 0 : i32
    %c0_i32_1 = arith.constant 0 : i32
    return %arg1, %c0_i32, %c0_i32_0 : i32, i32, i32
  }
  func.func @transform_18(%arg0: i32, %arg1: i32) -> (i32, i32, i32) {
    %c0_i32 = arith.constant 0 : i32
    %c0_i32_0 = arith.constant 0 : i32
    %c0_i32_1 = arith.constant 0 : i32
    return %arg1, %c0_i32, %c0_i32_0 : i32, i32, i32
  }
  func.func @transform_19(%arg0: i32, %arg1: i32) -> (i32, i32, i32) {
    %c0_i32 = arith.constant 0 : i32
    %c0_i32_0 = arith.constant 0 : i32
    %c0_i32_1 = arith.constant 0 : i32
    return %arg1, %c0_i32, %c0_i32_0 : i32, i32, i32
  }
  func.func @transform_20(%arg0: i32, %arg1: i32) -> (i32, i32, i32) {
    %c0_i32 = arith.constant 0 : i32
    %c0_i32_0 = arith.constant 0 : i32
    %c0_i32_1 = arith.constant 0 : i32
    return %arg1, %c0_i32, %c0_i32_0 : i32, i32, i32
  }
  func.func @transform_21(%arg0: i32, %arg1: i32) -> (i32, i32, i32) {
    %c0_i32 = arith.constant 0 : i32
    %c0_i32_0 = arith.constant 0 : i32
    %c0_i32_1 = arith.constant 0 : i32
    return %arg1, %c0_i32, %c0_i32_0 : i32, i32, i32
  }
  func.func @transform_22(%arg0: i32, %arg1: i32) -> (i32, i32) {
    %c0_i32 = arith.constant 0 : i32
    %c0_i32_0 = arith.constant 0 : i32
    %c0_i32_1 = arith.constant 0 : i32
    return %c0_i32, %c0_i32_0 : i32, i32
  }
  func.func @transform_23(%arg0: i32, %arg1: i32) -> (i32, i32) {
    %c0_i32 = arith.constant 0 : i32
    %c0_i32_0 = arith.constant 0 : i32
    %c0_i32_1 = arith.constant 0 : i32
    return %c0_i32, %c0_i32_0 : i32, i32
  }
  func.func @transform_24(%arg0: i32, %arg1: i32) -> (i32, i32, i32) {
    %c0_i32 = arith.constant 0 : i32
    %c0_i32_0 = arith.constant 0 : i32
    %c0_i32_1 = arith.constant 0 : i32
    return %arg0, %c0_i32, %c0_i32_0 : i32, i32, i32
  }
}

</mosaic_0001>

<llo_original>
// kernel: _forward_impl.1
$region0: #{_forward_impl.1}
  #allocation0 [shape = 'u32[]', space=smem, size = 0x4, offset = 0x4, fixed_abs, tag = 'smem constant byte address 0x4 - core index']
  #allocation1 [shape = 'u32[144,128]{1,0:T(1,128)}', space=vmem, size = 0x12000, scoped, tag = 'internal scratch']
  #allocation2 [shape = 'f32[2,24,32]{2,1,0:T(8,128)}', space=vmem, size = 0x6000, scoped, tag = 'scratch operand']
  %s0 = inlined_call_operand.vmem [shape: bf16[2,24,12], index: 0, kind: input, shape index: {}]
  %s1 = inlined_call_operand.vmem [shape: f32[2,24,32], index: 1, kind: input, shape index: {}]
  %s2 = inlined_call_operand.vmem [shape: f32[48,48], index: 2, kind: input, shape index: {}]
  %s3 = inlined_call_operand.vmem [shape: bf16[12,32], index: 3, kind: input, shape index: {}]
  %s4 = inlined_call_operand.vmem [shape: f32[1,32], index: 4, kind: input, shape index: {}, may-alias: {4,23}]
  %s5 = inlined_call_operand.vmem [shape: f32[1,32], index: 5, kind: input, shape index: {}]
  %s6 = inlined_call_operand.vmem [shape: f32[2,1,32], index: 6, kind: input, shape index: {}, may-alias: {6,16}]
  %s7 = inlined_call_operand.vmem [shape: f32[2,1,32], index: 7, kind: input, shape index: {}, may-alias: {7,15,17,21}]
  %s8 = inlined_call_operand.vmem [shape: bf16[2,2,32,16], index: 8, kind: input, shape index: {}]
  %s9 = inlined_call_operand.vmem [shape: f32[2,2,1,16], index: 9, kind: input, shape index: {}, may-alias: {9,11,13}]
  %s10 = inlined_call_operand.vmem [shape: bf16[2,2,32,16], index: 10, kind: input, shape index: {}]
  %s11 = inlined_call_operand.vmem [shape: f32[2,2,1,16], index: 11, kind: input, shape index: {}, may-alias: {9,11,13}]
  %s12 = inlined_call_operand.vmem [shape: bf16[2,2,32,16], index: 12, kind: input, shape index: {}]
  %s13 = inlined_call_operand.vmem [shape: f32[2,2,1,16], index: 13, kind: input, shape index: {}, may-alias: {9,11,13}]
  %s14 = inlined_call_operand.vmem [shape: bf16[2,2,16,32], index: 14, kind: input, shape index: {}]
  %s15 = inlined_call_operand.vmem [shape: f32[2,1,32], index: 15, kind: input, shape index: {}, may-alias: {7,15,17,21}]
  %s16 = inlined_call_operand.vmem [shape: f32[2,1,32], index: 16, kind: input, shape index: {}, may-alias: {6,16}]
  %s17 = inlined_call_operand.vmem [shape: f32[2,1,32], index: 17, kind: input, shape index: {}, may-alias: {7,15,17,21}]
  %s18 = inlined_call_operand.vmem [shape: bf16[2,32,128], index: 18, kind: input, shape index: {}]
  %s19 = inlined_call_operand.vmem [shape: f32[2,1,128], index: 19, kind: input, shape index: {}]
  %s20 = inlined_call_operand.vmem [shape: bf16[2,128,32], index: 20, kind: input, shape index: {}]
  %s21 = inlined_call_operand.vmem [shape: f32[2,1,32], index: 21, kind: input, shape index: {}, may-alias: {7,15,17,21}]
  %s22 = inlined_call_operand.vmem [shape: f32[1,32], index: 22, kind: input, shape index: {}]
  %s23 = inlined_call_operand.vmem [shape: f32[1,32], index: 23, kind: input, shape index: {}, may-alias: {4,23}]
  %s24 = inlined_call_operand.vmem [shape: f32[2,24,32], index: 24, kind: output, shape index: {}]
  %s25 = sld [smem:[#allocation0]]
  $region137: #{_forward_impl.1} parent=0
    _
  %s27 = ssub.s32 1, %s25
  %s28 = scalar_select 0, %s27, %s25
  loop: start=0, step=1, limit=4
  $region2: #{_forward_impl.1} parent=0 // loop_pre_header
    _
  $region3: #{_forward_impl.1} parent=0 // loop_header
    %s30 = sphi 0, %s34
    %p31 = scmp.ge.s32.totalorder %s30, 4
    %s37 = sphi 0, %s49
    %s38 = sphi 0, %s45
    %s39 = sphi 0, %s37
    %s40 = sphi 0, %s38
    %s41 = sphi 0, %s39
    %s42 = sphi 0, %s40
    %s52 = sphi 0, %s54
    %s55 = sphi 0, %s52
    %s56 = sphi 0, %s55
    %s72 = sphi 0, %s56
    %s78 = sphi 0, %s80
    %s81 = sphi 0, %s78
    %s82 = sphi 0, %s81
    %s98 = sphi 0, %s82
    %s102 = sphi 0, %s102
    %s104 = sphi 0, %s102
    %s105 = sphi 0, %s104
    %s119 = sphi 0, %s105
    %s123 = sphi 0, %s123
    %s125 = sphi 0, %s123
    %s126 = sphi 0, %s125
    %s140 = sphi 0, %s126
    %s144 = sphi 0, %s144
    %s146 = sphi 0, %s144
    %s147 = sphi 0, %s146
    %s161 = sphi 0, %s147
    %s165 = sphi 0, %s165
    %s167 = sphi 0, %s165
    %s168 = sphi 0, %s167
    %s182 = sphi 0, %s168
    %s188 = sphi 0, %s190
    %s191 = sphi 0, %s188
    %s192 = sphi 0, %s191
    %s208 = sphi 0, %s192
    %s214 = sphi 0, %s216
    %s217 = sphi 0, %s214
    %s218 = sphi 0, %s217
    %s234 = sphi 0, %s218
    %s240 = sphi 0, %s242
    %s243 = sphi 0, %s240
    %s244 = sphi 0, %s243
    %s260 = sphi 0, %s244
    %s266 = sphi 0, %s268
    %s269 = sphi 0, %s266
    %s270 = sphi 0, %s269
    %s286 = sphi 0, %s270
    %s292 = sphi 0, %s294
    %s295 = sphi 0, %s292
    %s296 = sphi 0, %s295
    %s312 = sphi 0, %s296
    %s318 = sphi 0, %s320
    %s321 = sphi 0, %s318
    %s322 = sphi 0, %s321
    %s338 = sphi 0, %s322
    %s344 = sphi 0, %s346
    %s347 = sphi 0, %s344
    %s348 = sphi 0, %s347
    %s364 = sphi 0, %s348
    %s370 = sphi 0, %s372
    %s373 = sphi 0, %s370
    %s374 = sphi 0, %s373
    %s390 = sphi 0, %s374
    %s396 = sphi 0, %s398
    %s399 = sphi 0, %s396
    %s400 = sphi 0, %s399
    %s416 = sphi 0, %s400
    %s422 = sphi 0, %s424
    %s425 = sphi 0, %s422
    %s426 = sphi 0, %s425
    %s442 = sphi 0, %s426
    %s448 = sphi 0, %s450
    %s451 = sphi 0, %s448
    %s452 = sphi 0, %s451
    %s468 = sphi 0, %s452
    %s474 = sphi 0, %s476
    %s477 = sphi 0, %s474
    %s478 = sphi 0, %s477
    %s494 = sphi 0, %s478
    %s500 = sphi 0, %s502
    %s503 = sphi 0, %s500
    %s504 = sphi 0, %s503
    %s520 = sphi 0, %s504
    %s526 = sphi 0, %s528
    %s529 = sphi 0, %s526
    %s530 = sphi 0, %s529
    %s546 = sphi 0, %s530
    %s552 = sphi 0, %s554
    %s555 = sphi 0, %s552
    %s556 = sphi 0, %s555
    %s572 = sphi 0, %s556
    %s578 = sphi 0, %s580
    %s581 = sphi 0, %s578
    %s582 = sphi 0, %s581
    %s598 = sphi 0, %s582
    %s602 = sphi 0, %s602
    %s604 = sphi 0, %s602
    %s605 = sphi 0, %s604
    %s619 = sphi 0, %s605
    %s623 = sphi 0, %s623
    %s625 = sphi 0, %s623
    %s626 = sphi 0, %s625
    %s640 = sphi 0, %s626
    %s646 = sphi 0, %s648
    %s649 = sphi 0, %s646
    %s650 = sphi 0, %s649
    %s666 = sphi 0, %s650
  $region4: #{_forward_impl.1} parent=0 // loop_header_branch
    %33 = sbr.rel (%p31) target = $region8
  $region5: #{_forward_impl.1} parent=0 // loop_body
    %s35 = ssub.s32 %s30, 1
    %s36 = ssub.s32 %s30, 2
    %s43 = sadd.s32 1, %s38
    %p44 = scmp.ge.s32.totalorder %s43, 2
    %s45 = scalar_select %p44, 0, %s43
    %s46 = sadd.s32 1, %s37
    %s47 = scalar_select %p44, %s46, %s37
    %p48 = scmp.ge.s32.totalorder %s47, 1
    %s49 = scalar_select %p48, 0, %s47
    %s50 = ssub.s32 %s37, %s49
    %p51 = scmp.eq.s32.totalorder %s50, 0
    %s53 = sadd.s32 %s52, 1
    %s54 = scalar_select %p51, %s52, %s53
    %p57 = pneg %p51
    %p58 = scmp.eq.s32.totalorder %s30, 1
    %p59 = por %p57, %p58
    %p60 = scmp.ne.s32.totalorder %s52, %s55
    %p61 = scmp.eq.s32.totalorder %s30, 0
    %p62 = por %p60, %p61
    %p63 = scmp.ne.s32.totalorder %s52, %s55
    %p64 = scmp.eq.s32.totalorder %s35, 1
    %p65 = por %p63, %p64
    %p66 = scmp.ne.s32.totalorder %s55, %s56
    %p67 = scmp.eq.s32.totalorder %s35, 0
    %p68 = por %p66, %p67
    %p69 = scmp.ne.s32.totalorder %s55, %s56
    %p70 = scmp.eq.s32.totalorder %s36, 1
    %p71 = por %p69, %p70
    %p73 = scmp.ne.s32.totalorder %s56, %s72
    %p74 = scmp.eq.s32.totalorder %s36, 0
    %p75 = por %p73, %p74
    %s76 = ssub.s32 %s37, %s49
    %p77 = scmp.eq.s32.totalorder %s76, 0
    %s79 = sadd.s32 %s78, 1
    %s80 = scalar_select %p77, %s78, %s79
    %p83 = pneg %p77
    %p84 = scmp.eq.s32.totalorder %s30, 1
    %p85 = por %p83, %p84
    %p86 = scmp.ne.s32.totalorder %s78, %s81
    %p87 = scmp.eq.s32.totalorder %s30, 0
    %p88 = por %p86, %p87
    %p89 = scmp.ne.s32.totalorder %s78, %s81
    %p90 = scmp.eq.s32.totalorder %s35, 1
    %p91 = por %p89, %p90
    %p92 = scmp.ne.s32.totalorder %s81, %s82
    %p93 = scmp.eq.s32.totalorder %s35, 0
    %p94 = por %p92, %p93
    %p95 = scmp.ne.s32.totalorder %s81, %s82
    %p96 = scmp.eq.s32.totalorder %s36, 1
    %p97 = por %p95, %p96
    %p99 = scmp.ne.s32.totalorder %s82, %s98
    %p100 = scmp.eq.s32.totalorder %s36, 0
    %p101 = por %p99, %p100
    %s103 = sadd.s32 %s102, 1
    %p106 = scmp.eq.s32.totalorder %s30, 1
    %p107 = scmp.ne.s32.totalorder %s102, %s104
    %p108 = scmp.eq.s32.totalorder %s30, 0
    %p109 = por %p107, %p108
    %p110 = scmp.ne.s32.totalorder %s102, %s104
    %p111 = scmp.eq.s32.totalorder %s35, 1
    %p112 = por %p110, %p111
    %p113 = scmp.ne.s32.totalorder %s104, %s105
    %p114 = scmp.eq.s32.totalorder %s35, 0
    %p115 = por %p113, %p114
    %p116 = scmp.ne.s32.totalorder %s104, %s105
    %p117 = scmp.eq.s32.totalorder %s36, 1
    %p118 = por %p116, %p117
    %p120 = scmp.ne.s32.totalorder %s105, %s119
    %p121 = scmp.eq.s32.totalorder %s36, 0
    %p122 = por %p120, %p121
    %s124 = sadd.s32 %s123, 1
    %p127 = scmp.eq.s32.totalorder %s30, 1
    %p128 = scmp.ne.s32.totalorder %s123, %s125
    %p129 = scmp.eq.s32.totalorder %s30, 0
    %p130 = por %p128, %p129
    %p131 = scmp.ne.s32.totalorder %s123, %s125
    %p132 = scmp.eq.s32.totalorder %s35, 1
    %p133 = por %p131, %p132
    %p134 = scmp.ne.s32.totalorder %s125, %s126
    %p135 = scmp.eq.s32.totalorder %s35, 0
    %p136 = por %p134, %p135
    %p137 = scmp.ne.s32.totalorder %s125, %s126
    %p138 = scmp.eq.s32.totalorder %s36, 1
    %p139 = por %p137, %p138
    %p141 = scmp.ne.s32.totalorder %s126, %s140
    %p142 = scmp.eq.s32.totalorder %s36, 0
    %p143 = por %p141, %p142
    %s145 = sadd.s32 %s144, 1
    %p148 = scmp.eq.s32.totalorder %s30, 1
    %p149 = scmp.ne.s32.totalorder %s144, %s146
    %p150 = scmp.eq.s32.totalorder %s30, 0
    %p151 = por %p149, %p150
    %p152 = scmp.ne.s32.totalorder %s144, %s146
    %p153 = scmp.eq.s32.totalorder %s35, 1
    %p154 = por %p152, %p153
    %p155 = scmp.ne.s32.totalorder %s146, %s147
    %p156 = scmp.eq.s32.totalorder %s35, 0
    %p157 = por %p155, %p156
    %p158 = scmp.ne.s32.totalorder %s146, %s147
    %p159 = scmp.eq.s32.totalorder %s36, 1
    %p160 = por %p158, %p159
    %p162 = scmp.ne.s32.totalorder %s147, %s161
    %p163 = scmp.eq.s32.totalorder %s36, 0
    %p164 = por %p162, %p163
    %s166 = sadd.s32 %s165, 1
    %p169 = scmp.eq.s32.totalorder %s30, 1
    %p170 = scmp.ne.s32.totalorder %s165, %s167
    %p171 = scmp.eq.s32.totalorder %s30, 0
    %p172 = por %p170, %p171
    %p173 = scmp.ne.s32.totalorder %s165, %s167
    %p174 = scmp.eq.s32.totalorder %s35, 1
    %p175 = por %p173, %p174
    %p176 = scmp.ne.s32.totalorder %s167, %s168
    %p177 = scmp.eq.s32.totalorder %s35, 0
    %p178 = por %p176, %p177
    %p179 = scmp.ne.s32.totalorder %s167, %s168
    %p180 = scmp.eq.s32.totalorder %s36, 1
    %p181 = por %p179, %p180
    %p183 = scmp.ne.s32.totalorder %s168, %s182
    %p184 = scmp.eq.s32.totalorder %s36, 0
    %p185 = por %p183, %p184
    %s186 = ssub.s32 %s38, %s45
    %p187 = scmp.eq.s32.totalorder %s186, 0
    %s189 = sadd.s32 %s188, 1
    %s190 = scalar_select %p187, %s188, %s189
    %p193 = pneg %p187
    %p194 = scmp.eq.s32.totalorder %s30, 1
    %p195 = por %p193, %p194
    %p196 = scmp.ne.s32.totalorder %s188, %s191
    %p197 = scmp.eq.s32.totalorder %s30, 0
    %p198 = por %p196, %p197
    %p199 = scmp.ne.s32.totalorder %s188, %s191
    %p200 = scmp.eq.s32.totalorder %s35, 1
    %p201 = por %p199, %p200
    %p202 = scmp.ne.s32.totalorder %s191, %s192
    %p203 = scmp.eq.s32.totalorder %s35, 0
    %p204 = por %p202, %p203
    %p205 = scmp.ne.s32.totalorder %s191, %s192
    %p206 = scmp.eq.s32.totalorder %s36, 1
    %p207 = por %p205, %p206
    %p209 = scmp.ne.s32.totalorder %s192, %s208
    %p210 = scmp.eq.s32.totalorder %s36, 0
    %p211 = por %p209, %p210
    %s212 = ssub.s32 %s38, %s45
    %p213 = scmp.eq.s32.totalorder %s212, 0
    %s215 = sadd.s32 %s214, 1
    %s216 = scalar_select %p213, %s214, %s215
    %p219 = pneg %p213
    %p220 = scmp.eq.s32.totalorder %s30, 1
    %p221 = por %p219, %p220
    %p222 = scmp.ne.s32.totalorder %s214, %s217
    %p223 = scmp.eq.s32.totalorder %s30, 0
    %p224 = por %p222, %p223
    %p225 = scmp.ne.s32.totalorder %s214, %s217
    %p226 = scmp.eq.s32.totalorder %s35, 1
    %p227 = por %p225, %p226
    %p228 = scmp.ne.s32.totalorder %s217, %s218
    %p229 = scmp.eq.s32.totalorder %s35, 0
    %p230 = por %p228, %p229
    %p231 = scmp.ne.s32.totalorder %s217, %s218
    %p232 = scmp.eq.s32.totalorder %s36, 1
    %p233 = por %p231, %p232
    %p235 = scmp.ne.s32.totalorder %s218, %s234
    %p236 = scmp.eq.s32.totalorder %s36, 0
    %p237 = por %p235, %p236
    %s238 = ssub.s32 %s38, %s45
    %p239 = scmp.eq.s32.totalorder %s238, 0
    %s241 = sadd.s32 %s240, 1
    %s242 = scalar_select %p239, %s240, %s241
    %p245 = pneg %p239
    %p246 = scmp.eq.s32.totalorder %s30, 1
    %p247 = por %p245, %p246
    %p248 = scmp.ne.s32.totalorder %s240, %s243
    %p249 = scmp.eq.s32.totalorder %s30, 0
    %p250 = por %p248, %p249
    %p251 = scmp.ne.s32.totalorder %s240, %s243
    %p252 = scmp.eq.s32.totalorder %s35, 1
    %p253 = por %p251, %p252
    %p254 = scmp.ne.s32.totalorder %s243, %s244
    %p255 = scmp.eq.s32.totalorder %s35, 0
    %p256 = por %p254, %p255
    %p257 = scmp.ne.s32.totalorder %s243, %s244
    %p258 = scmp.eq.s32.totalorder %s36, 1
    %p259 = por %p257, %p258
    %p261 = scmp.ne.s32.totalorder %s244, %s260
    %p262 = scmp.eq.s32.totalorder %s36, 0
    %p263 = por %p261, %p262
    %s264 = ssub.s32 %s38, %s45
    %p265 = scmp.eq.s32.totalorder %s264, 0
    %s267 = sadd.s32 %s266, 1
    %s268 = scalar_select %p265, %s266, %s267
    %p271 = pneg %p265
    %p272 = scmp.eq.s32.totalorder %s30, 1
    %p273 = por %p271, %p272
    %p274 = scmp.ne.s32.totalorder %s266, %s269
    %p275 = scmp.eq.s32.totalorder %s30, 0
    %p276 = por %p274, %p275
    %p277 = scmp.ne.s32.totalorder %s266, %s269
    %p278 = scmp.eq.s32.totalorder %s35, 1
    %p279 = por %p277, %p278
    %p280 = scmp.ne.s32.totalorder %s269, %s270
    %p281 = scmp.eq.s32.totalorder %s35, 0
    %p282 = por %p280, %p281
    %p283 = scmp.ne.s32.totalorder %s269, %s270
    %p284 = scmp.eq.s32.totalorder %s36, 1
    %p285 = por %p283, %p284
    %p287 = scmp.ne.s32.totalorder %s270, %s286
    %p288 = scmp.eq.s32.totalorder %s36, 0
    %p289 = por %p287, %p288
    %s290 = ssub.s32 %s38, %s45
    %p291 = scmp.eq.s32.totalorder %s290, 0
    %s293 = sadd.s32 %s292, 1
    %s294 = scalar_select %p291, %s292, %s293
    %p297 = pneg %p291
    %p298 = scmp.eq.s32.totalorder %s30, 1
    %p299 = por %p297, %p298
    %p300 = scmp.ne.s32.totalorder %s292, %s295
    %p301 = scmp.eq.s32.totalorder %s30, 0
    %p302 = por %p300, %p301
    %p303 = scmp.ne.s32.totalorder %s292, %s295
    %p304 = scmp.eq.s32.totalorder %s35, 1
    %p305 = por %p303, %p304
    %p306 = scmp.ne.s32.totalorder %s295, %s296
    %p307 = scmp.eq.s32.totalorder %s35, 0
    %p308 = por %p306, %p307
    %p309 = scmp.ne.s32.totalorder %s295, %s296
    %p310 = scmp.eq.s32.totalorder %s36, 1
    %p311 = por %p309, %p310
    %p313 = scmp.ne.s32.totalorder %s296, %s312
    %p314 = scmp.eq.s32.totalorder %s36, 0
    %p315 = por %p313, %p314
    %s316 = ssub.s32 %s38, %s45
    %p317 = scmp.eq.s32.totalorder %s316, 0
    %s319 = sadd.s32 %s318, 1
    %s320 = scalar_select %p317, %s318, %s319
    %p323 = pneg %p317
    %p324 = scmp.eq.s32.totalorder %s30, 1
    %p325 = por %p323, %p324
    %p326 = scmp.ne.s32.totalorder %s318, %s321
    %p327 = scmp.eq.s32.totalorder %s30, 0
    %p328 = por %p326, %p327
    %p329 = scmp.ne.s32.totalorder %s318, %s321
    %p330 = scmp.eq.s32.totalorder %s35, 1
    %p331 = por %p329, %p330
    %p332 = scmp.ne.s32.totalorder %s321, %s322
    %p333 = scmp.eq.s32.totalorder %s35, 0
    %p334 = por %p332, %p333
    %p335 = scmp.ne.s32.totalorder %s321, %s322
    %p336 = scmp.eq.s32.totalorder %s36, 1
    %p337 = por %p335, %p336
    %p339 = scmp.ne.s32.totalorder %s322, %s338
    %p340 = scmp.eq.s32.totalorder %s36, 0
    %p341 = por %p339, %p340
    %s342 = ssub.s32 %s38, %s45
    %p343 = scmp.eq.s32.totalorder %s342, 0
    %s345 = sadd.s32 %s344, 1
    %s346 = scalar_select %p343, %s344, %s345
    %p349 = pneg %p343
    %p350 = scmp.eq.s32.totalorder %s30, 1
    %p351 = por %p349, %p350
    %p352 = scmp.ne.s32.totalorder %s344, %s347
    %p353 = scmp.eq.s32.totalorder %s30, 0
    %p354 = por %p352, %p353
    %p355 = scmp.ne.s32.totalorder %s344, %s347
    %p356 = scmp.eq.s32.totalorder %s35, 1
    %p357 = por %p355, %p356
    %p358 = scmp.ne.s32.totalorder %s347, %s348
    %p359 = scmp.eq.s32.totalorder %s35, 0
    %p360 = por %p358, %p359
    %p361 = scmp.ne.s32.totalorder %s347, %s348
    %p362 = scmp.eq.s32.totalorder %s36, 1
    %p363 = por %p361, %p362
    %p365 = scmp.ne.s32.totalorder %s348, %s364
    %p366 = scmp.eq.s32.totalorder %s36, 0
    %p367 = por %p365, %p366
    %s368 = ssub.s32 %s38, %s45
    %p369 = scmp.eq.s32.totalorder %s368, 0
    %s371 = sadd.s32 %s370, 1
    %s372 = scalar_select %p369, %s370, %s371
    %p375 = pneg %p369
    %p376 = scmp.eq.s32.totalorder %s30, 1
    %p377 = por %p375, %p376
    %p378 = scmp.ne.s32.totalorder %s370, %s373
    %p379 = scmp.eq.s32.totalorder %s30, 0
    %p380 = por %p378, %p379
    %p381 = scmp.ne.s32.totalorder %s370, %s373
    %p382 = scmp.eq.s32.totalorder %s35, 1
    %p383 = por %p381, %p382
    %p384 = scmp.ne.s32.totalorder %s373, %s374
    %p385 = scmp.eq.s32.totalorder %s35, 0
    %p386 = por %p384, %p385
    %p387 = scmp.ne.s32.totalorder %s373, %s374
    %p388 = scmp.eq.s32.totalorder %s36, 1
    %p389 = por %p387, %p388
    %p391 = scmp.ne.s32.totalorder %s374, %s390
    %p392 = scmp.eq.s32.totalorder %s36, 0
    %p393 = por %p391, %p392
    %s394 = ssub.s32 %s38, %s45
    %p395 = scmp.eq.s32.totalorder %s394, 0
    %s397 = sadd.s32 %s396, 1
    %s398 = scalar_select %p395, %s396, %s397
    %p401 = pneg %p395
    %p402 = scmp.eq.s32.totalorder %s30, 1
    %p403 = por %p401, %p402
    %p404 = scmp.ne.s32.totalorder %s396, %s399
    %p405 = scmp.eq.s32.totalorder %s30, 0
    %p406 = por %p404, %p405
    %p407 = scmp.ne.s32.totalorder %s396, %s399
    %p408 = scmp.eq.s32.totalorder %s35, 1
    %p409 = por %p407, %p408
    %p410 = scmp.ne.s32.totalorder %s399, %s400
    %p411 = scmp.eq.s32.totalorder %s35, 0
    %p412 = por %p410, %p411
    %p413 = scmp.ne.s32.totalorder %s399, %s400
    %p414 = scmp.eq.s32.totalorder %s36, 1
    %p415 = por %p413, %p414
    %p417 = scmp.ne.s32.totalorder %s400, %s416
    %p418 = scmp.eq.s32.totalorder %s36, 0
    %p419 = por %p417, %p418
    %s420 = ssub.s32 %s38, %s45
    %p421 = scmp.eq.s32.totalorder %s420, 0
    %s423 = sadd.s32 %s422, 1
    %s424 = scalar_select %p421, %s422, %s423
    %p427 = pneg %p421
    %p428 = scmp.eq.s32.totalorder %s30, 1
    %p429 = por %p427, %p428
    %p430 = scmp.ne.s32.totalorder %s422, %s425
    %p431 = scmp.eq.s32.totalorder %s30, 0
    %p432 = por %p430, %p431
    %p433 = scmp.ne.s32.totalorder %s422, %s425
    %p434 = scmp.eq.s32.totalorder %s35, 1
    %p435 = por %p433, %p434
    %p436 = scmp.ne.s32.totalorder %s425, %s426
    %p437 = scmp.eq.s32.totalorder %s35, 0
    %p438 = por %p436, %p437
    %p439 = scmp.ne.s32.totalorder %s425, %s426
    %p440 = scmp.eq.s32.totalorder %s36, 1
    %p441 = por %p439, %p440
    %p443 = scmp.ne.s32.totalorder %s426, %s442
    %p444 = scmp.eq.s32.totalorder %s36, 0
    %p445 = por %p443, %p444
    %s446 = ssub.s32 %s38, %s45
    %p447 = scmp.eq.s32.totalorder %s446, 0
    %s449 = sadd.s32 %s448, 1
    %s450 = scalar_select %p447, %s448, %s449
    %p453 = pneg %p447
    %p454 = scmp.eq.s32.totalorder %s30, 1
    %p455 = por %p453, %p454
    %p456 = scmp.ne.s32.totalorder %s448, %s451
    %p457 = scmp.eq.s32.totalorder %s30, 0
    %p458 = por %p456, %p457
    %p459 = scmp.ne.s32.totalorder %s448, %s451
    %p460 = scmp.eq.s32.totalorder %s35, 1
    %p461 = por %p459, %p460
    %p462 = scmp.ne.s32.totalorder %s451, %s452
    %p463 = scmp.eq.s32.totalorder %s35, 0
    %p464 = por %p462, %p463
    %p465 = scmp.ne.s32.totalorder %s451, %s452
    %p466 = scmp.eq.s32.totalorder %s36, 1
    %p467 = por %p465, %p466
    %p469 = scmp.ne.s32.totalorder %s452, %s468
    %p470 = scmp.eq.s32.totalorder %s36, 0
    %p471 = por %p469, %p470
    %s472 = ssub.s32 %s38, %s45
    %p473 = scmp.eq.s32.totalorder %s472, 0
    %s475 = sadd.s32 %s474, 1
    %s476 = scalar_select %p473, %s474, %s475
    %p479 = pneg %p473
    %p480 = scmp.eq.s32.totalorder %s30, 1
    %p481 = por %p479, %p480
    %p482 = scmp.ne.s32.totalorder %s474, %s477
    %p483 = scmp.eq.s32.totalorder %s30, 0
    %p484 = por %p482, %p483
    %p485 = scmp.ne.s32.totalorder %s474, %s477
    %p486 = scmp.eq.s32.totalorder %s35, 1
    %p487 = por %p485, %p486
    %p488 = scmp.ne.s32.totalorder %s477, %s478
    %p489 = scmp.eq.s32.totalorder %s35, 0
    %p490 = por %p488, %p489
    %p491 = scmp.ne.s32.totalorder %s477, %s478
    %p492 = scmp.eq.s32.totalorder %s36, 1
    %p493 = por %p491, %p492
    %p495 = scmp.ne.s32.totalorder %s478, %s494
    %p496 = scmp.eq.s32.totalorder %s36, 0
    %p497 = por %p495, %p496
    %s498 = ssub.s32 %s38, %s45
    %p499 = scmp.eq.s32.totalorder %s498, 0
    %s501 = sadd.s32 %s500, 1
    %s502 = scalar_select %p499, %s500, %s501
    %p505 = pneg %p499
    %p506 = scmp.eq.s32.totalorder %s30, 1
    %p507 = por %p505, %p506
    %p508 = scmp.ne.s32.totalorder %s500, %s503
    %p509 = scmp.eq.s32.totalorder %s30, 0
    %p510 = por %p508, %p509
    %p511 = scmp.ne.s32.totalorder %s500, %s503
    %p512 = scmp.eq.s32.totalorder %s35, 1
    %p513 = por %p511, %p512
    %p514 = scmp.ne.s32.totalorder %s503, %s504
    %p515 = scmp.eq.s32.totalorder %s35, 0
    %p516 = por %p514, %p515
    %p517 = scmp.ne.s32.totalorder %s503, %s504
    %p518 = scmp.eq.s32.totalorder %s36, 1
    %p519 = por %p517, %p518
    %p521 = scmp.ne.s32.totalorder %s504, %s520
    %p522 = scmp.eq.s32.totalorder %s36, 0
    %p523 = por %p521, %p522
    %s524 = ssub.s32 %s38, %s45
    %p525 = scmp.eq.s32.totalorder %s524, 0
    %s527 = sadd.s32 %s526, 1
    %s528 = scalar_select %p525, %s526, %s527
    %p531 = pneg %p525
    %p532 = scmp.eq.s32.totalorder %s30, 1
    %p533 = por %p531, %p532
    %p534 = scmp.ne.s32.totalorder %s526, %s529
    %p535 = scmp.eq.s32.totalorder %s30, 0
    %p536 = por %p534, %p535
    %p537 = scmp.ne.s32.totalorder %s526, %s529
    %p538 = scmp.eq.s32.totalorder %s35, 1
    %p539 = por %p537, %p538
    %p540 = scmp.ne.s32.totalorder %s529, %s530
    %p541 = scmp.eq.s32.totalorder %s35, 0
    %p542 = por %p540, %p541
    %p543 = scmp.ne.s32.totalorder %s529, %s530
    %p544 = scmp.eq.s32.totalorder %s36, 1
    %p545 = por %p543, %p544
    %p547 = scmp.ne.s32.totalorder %s530, %s546
    %p548 = scmp.eq.s32.totalorder %s36, 0
    %p549 = por %p547, %p548
    %s550 = ssub.s32 %s38, %s45
    %p551 = scmp.eq.s32.totalorder %s550, 0
    %s553 = sadd.s32 %s552, 1
    %s554 = scalar_select %p551, %s552, %s553
    %p557 = pneg %p551
    %p558 = scmp.eq.s32.totalorder %s30, 1
    %p559 = por %p557, %p558
    %p560 = scmp.ne.s32.totalorder %s552, %s555
    %p561 = scmp.eq.s32.totalorder %s30, 0
    %p562 = por %p560, %p561
    %p563 = scmp.ne.s32.totalorder %s552, %s555
    %p564 = scmp.eq.s32.totalorder %s35, 1
    %p565 = por %p563, %p564
    %p566 = scmp.ne.s32.totalorder %s555, %s556
    %p567 = scmp.eq.s32.totalorder %s35, 0
    %p568 = por %p566, %p567
    %p569 = scmp.ne.s32.totalorder %s555, %s556
    %p570 = scmp.eq.s32.totalorder %s36, 1
    %p571 = por %p569, %p570
    %p573 = scmp.ne.s32.totalorder %s556, %s572
    %p574 = scmp.eq.s32.totalorder %s36, 0
    %p575 = por %p573, %p574
    %s576 = ssub.s32 %s38, %s45
    %p577 = scmp.eq.s32.totalorder %s576, 0
    %s579 = sadd.s32 %s578, 1
    %s580 = scalar_select %p577, %s578, %s579
    %p583 = pneg %p577
    %p584 = scmp.eq.s32.totalorder %s30, 1
    %p585 = por %p583, %p584
    %p586 = scmp.ne.s32.totalorder %s578, %s581
    %p587 = scmp.eq.s32.totalorder %s30, 0
    %p588 = por %p586, %p587
    %p589 = scmp.ne.s32.totalorder %s578, %s581
    %p590 = scmp.eq.s32.totalorder %s35, 1
    %p591 = por %p589, %p590
    %p592 = scmp.ne.s32.totalorder %s581, %s582
    %p593 = scmp.eq.s32.totalorder %s35, 0
    %p594 = por %p592, %p593
    %p595 = scmp.ne.s32.totalorder %s581, %s582
    %p596 = scmp.eq.s32.totalorder %s36, 1
    %p597 = por %p595, %p596
    %p599 = scmp.ne.s32.totalorder %s582, %s598
    %p600 = scmp.eq.s32.totalorder %s36, 0
    %p601 = por %p599, %p600
    %s603 = sadd.s32 %s602, 1
    %p606 = scmp.eq.s32.totalorder %s30, 1
    %p607 = scmp.ne.s32.totalorder %s602, %s604
    %p608 = scmp.eq.s32.totalorder %s30, 0
    %p609 = por %p607, %p608
    %p610 = scmp.ne.s32.totalorder %s602, %s604
    %p611 = scmp.eq.s32.totalorder %s35, 1
    %p612 = por %p610, %p611
    %p613 = scmp.ne.s32.totalorder %s604, %s605
    %p614 = scmp.eq.s32.totalorder %s35, 0
    %p615 = por %p613, %p614
    %p616 = scmp.ne.s32.totalorder %s604, %s605
    %p617 = scmp.eq.s32.totalorder %s36, 1
    %p618 = por %p616, %p617
    %p620 = scmp.ne.s32.totalorder %s605, %s619
    %p621 = scmp.eq.s32.totalorder %s36, 0
    %p622 = por %p620, %p621
    %s624 = sadd.s32 %s623, 1
    %p627 = scmp.eq.s32.totalorder %s30, 1
    %p628 = scmp.ne.s32.totalorder %s623, %s625
    %p629 = scmp.eq.s32.totalorder %s30, 0
    %p630 = por %p628, %p629
    %p631 = scmp.ne.s32.totalorder %s623, %s625
    %p632 = scmp.eq.s32.totalorder %s35, 1
    %p633 = por %p631, %p632
    %p634 = scmp.ne.s32.totalorder %s625, %s626
    %p635 = scmp.eq.s32.totalorder %s35, 0
    %p636 = por %p634, %p635
    %p637 = scmp.ne.s32.totalorder %s625, %s626
    %p638 = scmp.eq.s32.totalorder %s36, 1
    %p639 = por %p637, %p638
    %p641 = scmp.ne.s32.totalorder %s626, %s640
    %p642 = scmp.eq.s32.totalorder %s36, 0
    %p643 = por %p641, %p642
    %s644 = ssub.s32 %s37, %s49
    %p645 = scmp.eq.s32.totalorder %s644, 0
    %s647 = sadd.s32 %s646, 1
    %s648 = scalar_select %p645, %s646, %s647
    %p651 = pneg %p645
    %p652 = scmp.eq.s32.totalorder %s30, 1
    %p653 = por %p651, %p652
    %p654 = scmp.ne.s32.totalorder %s646, %s649
    %p655 = scmp.eq.s32.totalorder %s30, 0
    %p656 = por %p654, %p655
    %p657 = scmp.ne.s32.totalorder %s646, %s649
    %p658 = scmp.eq.s32.totalorder %s35, 1
    %p659 = por %p657, %p658
    %p660 = scmp.ne.s32.totalorder %s649, %s650
    %p661 = scmp.eq.s32.totalorder %s35, 0
    %p662 = por %p660, %p661
    %p663 = scmp.ne.s32.totalorder %s649, %s650
    %p664 = scmp.eq.s32.totalorder %s36, 1
    %p665 = por %p663, %p664
    %p667 = scmp.ne.s32.totalorder %s650, %s666
    %p668 = scmp.eq.s32.totalorder %s36, 0
    %p669 = por %p667, %p668
    %p670 = scmp.le.s32.totalorder 1, %s30
    %p671 = scmp.lt.s32.totalorder %s30, 3
    %p672 = pnand %p670, %p671
    %p673 = pneg %p672
    // Predicated region
    $region9: #{_forward_impl.1} parent=5 // pred_check
      _
    $region10: #{_forward_impl.1} parent=5 // pred_check_branch
      %675 = sbr.rel (%p672) target = $region12
    $region11: #{_forward_impl.1} parent=5 // pred_region
      %s676 = ssub.s32 %s30, 1
      // Predicated region
      $region13: #{_forward_impl.1} parent=11 // pred_check
        %p677 = pneg %p68
      $region14: #{_forward_impl.1} parent=11 // pred_check_branch
        %679 = sbr.rel (%p677) target = $region16
      $region15: #{_forward_impl.1} parent=11 // pred_region
        %s680 = smul.u32 2, %s39
        %p681 = scmp.lt.s32.totalorder %s680, 1
        %s682 = scalar_select %p681, %s680, 1
        %s683 = smul.addr %s682, 3
        %s684 = smul.addr %s683, 4
        %s685 = scalar_lea.vmem %s0, %s684
        %s686 = smul.u32 2, %s39
      $region16: #{_forward_impl.1} parent=11 // pred_fallthru
        _
      // Predicated region
      $region17: #{_forward_impl.1} parent=11 // pred_check
        %p687 = pneg %p94
      $region18: #{_forward_impl.1} parent=11 // pred_check_branch
        %689 = sbr.rel (%p687) target = $region20
      $region19: #{_forward_impl.1} parent=11 // pred_region
        %s690 = smul.u32 2, %s39
        %p691 = scmp.lt.s32.totalorder %s690, 1
        %s692 = scalar_select %p691, %s690, 1
        %s693 = smul.addr %s692, 3
        %s694 = smul.addr %s693, 8
        %s695 = scalar_lea.vmem %s1, %s694
        %s696 = smul.u32 2, %s39
      $region20: #{_forward_impl.1} parent=11 // pred_fallthru
        _
      // Predicated region
      $region21: #{_forward_impl.1} parent=11 // pred_check
        %p697 = pneg %p115
      $region22: #{_forward_impl.1} parent=11 // pred_check_branch
        %699 = sbr.rel (%p697) target = $region24
      $region23: #{_forward_impl.1} parent=11 // pred_region
        _
      $region24: #{_forward_impl.1} parent=11 // pred_fallthru
        _
      // Predicated region
      $region25: #{_forward_impl.1} parent=11 // pred_check
        %p700 = pneg %p136
      $region26: #{_forward_impl.1} parent=11 // pred_check_branch
        %702 = sbr.rel (%p700) target = $region28
      $region27: #{_forward_impl.1} parent=11 // pred_region
        _
      $region28: #{_forward_impl.1} parent=11 // pred_fallthru
        _
      // Predicated region
      $region29: #{_forward_impl.1} parent=11 // pred_check
        %p703 = pneg %p157
      $region30: #{_forward_impl.1} parent=11 // pred_check_branch
        %705 = sbr.rel (%p703) target = $region32
      $region31: #{_forward_impl.1} parent=11 // pred_region
        _
      $region32: #{_forward_impl.1} parent=11 // pred_fallthru
        _
      // Predicated region
      $region33: #{_forward_impl.1} parent=11 // pred_check
        %p706 = pneg %p178
      $region34: #{_forward_impl.1} parent=11 // pred_check_branch
        %708 = sbr.rel (%p706) target = $region36
      $region35: #{_forward_impl.1} parent=11 // pred_region
        _
      $region36: #{_forward_impl.1} parent=11 // pred_fallthru
        _
      // Predicated region
      $region37: #{_forward_impl.1} parent=11 // pred_check
        %p709 = pneg %p615
      $region38: #{_forward_impl.1} parent=11 // pred_check_branch
        %711 = sbr.rel (%p709) target = $region40
      $region39: #{_forward_impl.1} parent=11 // pred_region
        _
      $region40: #{_forward_impl.1} parent=11 // pred_fallthru
        _
      // Predicated region
      $region41: #{_forward_impl.1} parent=11 // pred_check
        %p712 = pneg %p636
      $region42: #{_forward_impl.1} parent=11 // pred_check_branch
        %714 = sbr.rel (%p712) target = $region44
      $region43: #{_forward_impl.1} parent=11 // pred_region
        _
      $region44: #{_forward_impl.1} parent=11 // pred_fallthru
        _
    $region12: #{_forward_impl.1} parent=5 // pred_fallthru
      _
    %p715 = scmp.lt.s32.totalorder %s30, 2
    // Predicated region
    $region45: #{_forward_impl.1} parent=5 // pred_check
      %p716 = pneg %p715
    $region46: #{_forward_impl.1} parent=5 // pred_check_branch
      %718 = sbr.rel (%p716) target = $region48
    $region47: #{_forward_impl.1} parent=5 // pred_region
      // Predicated region
      $region49: #{_forward_impl.1} parent=47 // pred_check
        %p719 = pneg %p198
      $region50: #{_forward_impl.1} parent=47 // pred_check_branch
        %721 = sbr.rel (%p719) target = $region52
      $region51: #{_forward_impl.1} parent=47 // pred_region
        %p722 = scmp.lt.s32.totalorder %s38, 1
        %s723 = scalar_select %p722, %s38, 1
        %s724 = scalar_lea.vmem %s6, %s723
      $region52: #{_forward_impl.1} parent=47 // pred_fallthru
        _
      // Predicated region
      $region53: #{_forward_impl.1} parent=47 // pred_check
        %p725 = pneg %p224
      $region54: #{_forward_impl.1} parent=47 // pred_check_branch
        %727 = sbr.rel (%p725) target = $region56
      $region55: #{_forward_impl.1} parent=47 // pred_region
        %p728 = scmp.lt.s32.totalorder %s38, 1
        %s729 = scalar_select %p728, %s38, 1
        %s730 = scalar_lea.vmem %s7, %s729
      $region56: #{_forward_impl.1} parent=47 // pred_fallthru
        _
      // Predicated region
      $region57: #{_forward_impl.1} parent=47 // pred_check
        %p731 = pneg %p250
      $region58: #{_forward_impl.1} parent=47 // pred_check_branch
        %733 = sbr.rel (%p731) target = $region60
      $region59: #{_forward_impl.1} parent=47 // pred_region
        %p734 = scmp.lt.s32.totalorder %s38, 1
        %s735 = scalar_select %p734, %s38, 1
        %s736 = smul.addr %s735, 8
        %s737 = smul.addr %s736, 4
        %s738 = scalar_lea.vmem %s8, %s737
      $region60: #{_forward_impl.1} parent=47 // pred_fallthru
        _
      // Predicated region
      $region61: #{_forward_impl.1} parent=47 // pred_check
        %p739 = pneg %p276
      $region62: #{_forward_impl.1} parent=47 // pred_check_branch
        %741 = sbr.rel (%p739) target = $region64
      $region63: #{_forward_impl.1} parent=47 // pred_region
        %p742 = scmp.lt.s32.totalorder %s38, 1
        %s743 = scalar_select %p742, %s38, 1
        %s744 = smul.addr %s743, 2
        %s745 = scalar_lea.vmem %s9, %s744
      $region64: #{_forward_impl.1} parent=47 // pred_fallthru
        _
      // Predicated region
      $region65: #{_forward_impl.1} parent=47 // pred_check
        %p746 = pneg %p302
      $region66: #{_forward_impl.1} parent=47 // pred_check_branch
        %748 = sbr.rel (%p746) target = $region68
      $region67: #{_forward_impl.1} parent=47 // pred_region
        %p749 = scmp.lt.s32.totalorder %s38, 1
        %s750 = scalar_select %p749, %s38, 1
        %s751 = smul.addr %s750, 8
        %s752 = smul.addr %s751, 4
        %s753 = scalar_lea.vmem %s10, %s752
      $region68: #{_forward_impl.1} parent=47 // pred_fallthru
        _
      // Predicated region
      $region69: #{_forward_impl.1} parent=47 // pred_check
        %p754 = pneg %p328
      $region70: #{_forward_impl.1} parent=47 // pred_check_branch
        %756 = sbr.rel (%p754) target = $region72
      $region71: #{_forward_impl.1} parent=47 // pred_region
        %p757 = scmp.lt.s32.totalorder %s38, 1
        %s758 = scalar_select %p757, %s38, 1
        %s759 = smul.addr %s758, 2
        %s760 = scalar_lea.vmem %s11, %s759
      $region72: #{_forward_impl.1} parent=47 // pred_fallthru
        _
      // Predicated region
      $region73: #{_forward_impl.1} parent=47 // pred_check
        %p761 = pneg %p354
      $region74: #{_forward_impl.1} parent=47 // pred_check_branch
        %763 = sbr.rel (%p761) target = $region76
      $region75: #{_forward_impl.1} parent=47 // pred_region
        %p764 = scmp.lt.s32.totalorder %s38, 1
        %s765 = scalar_select %p764, %s38, 1
        %s766 = smul.addr %s765, 8
        %s767 = smul.addr %s766, 4
        %s768 = scalar_lea.vmem %s12, %s767
      $region76: #{_forward_impl.1} parent=47 // pred_fallthru
        _
      // Predicated region
      $region77: #{_forward_impl.1} parent=47 // pred_check
        %p769 = pneg %p380
      $region78: #{_forward_impl.1} parent=47 // pred_check_branch
        %771 = sbr.rel (%p769) target = $region80
      $region79: #{_forward_impl.1} parent=47 // pred_region
        %p772 = scmp.lt.s32.totalorder %s38, 1
        %s773 = scalar_select %p772, %s38, 1
        %s774 = smul.addr %s773, 2
        %s775 = scalar_lea.vmem %s13, %s774
      $region80: #{_forward_impl.1} parent=47 // pred_fallthru
        _
      // Predicated region
      $region81: #{_forward_impl.1} parent=47 // pred_check
        %p776 = pneg %p406
      $region82: #{_forward_impl.1} parent=47 // pred_check_branch
        %778 = sbr.rel (%p776) target = $region84
      $region83: #{_forward_impl.1} parent=47 // pred_region
        %p779 = scmp.lt.s32.totalorder %s38, 1
        %s780 = scalar_select %p779, %s38, 1
        %s781 = smul.addr %s780, 4
        %s782 = smul.addr %s781, 4
        %s783 = scalar_lea.vmem %s14, %s782
      $region84: #{_forward_impl.1} parent=47 // pred_fallthru
        _
      // Predicated region
      $region85: #{_forward_impl.1} parent=47 // pred_check
        %p784 = pneg %p432
      $region86: #{_forward_impl.1} parent=47 // pred_check_branch
        %786 = sbr.rel (%p784) target = $region88
      $region87: #{_forward_impl.1} parent=47 // pred_region
        %p787 = scmp.lt.s32.totalorder %s38, 1
        %s788 = scalar_select %p787, %s38, 1
        %s789 = scalar_lea.vmem %s15, %s788
      $region88: #{_forward_impl.1} parent=47 // pred_fallthru
        _
      // Predicated region
      $region89: #{_forward_impl.1} parent=47 // pred_check
        %p790 = pneg %p458
      $region90: #{_forward_impl.1} parent=47 // pred_check_branch
        %792 = sbr.rel (%p790) target = $region92
      $region91: #{_forward_impl.1} parent=47 // pred_region
        %p793 = scmp.lt.s32.totalorder %s38, 1
        %s794 = scalar_select %p793, %s38, 1
        %s795 = scalar_lea.vmem %s16, %s794
      $region92: #{_forward_impl.1} parent=47 // pred_fallthru
        _
      // Predicated region
      $region93: #{_forward_impl.1} parent=47 // pred_check
        %p796 = pneg %p484
      $region94: #{_forward_impl.1} parent=47 // pred_check_branch
        %798 = sbr.rel (%p796) target = $region96
      $region95: #{_forward_impl.1} parent=47 // pred_region
        %p799 = scmp.lt.s32.totalorder %s38, 1
        %s800 = scalar_select %p799, %s38, 1
        %s801 = scalar_lea.vmem %s17, %s800
      $region96: #{_forward_impl.1} parent=47 // pred_fallthru
        _
      // Predicated region
      $region97: #{_forward_impl.1} parent=47 // pred_check
        %p802 = pneg %p510
      $region98: #{_forward_impl.1} parent=47 // pred_check_branch
        %804 = sbr.rel (%p802) target = $region100
      $region99: #{_forward_impl.1} parent=47 // pred_region
        %p805 = scmp.lt.s32.totalorder %s38, 1
        %s806 = scalar_select %p805, %s38, 1
        %s807 = smul.addr %s806, 4
        %s808 = smul.addr %s807, 4
        %s809 = scalar_lea.vmem %s18, %s808
      $region100: #{_forward_impl.1} parent=47 // pred_fallthru
        _
      // Predicated region
      $region101: #{_forward_impl.1} parent=47 // pred_check
        %p810 = pneg %p536
      $region102: #{_forward_impl.1} parent=47 // pred_check_branch
        %812 = sbr.rel (%p810) target = $region104
      $region103: #{_forward_impl.1} parent=47 // pred_region
        %p813 = scmp.lt.s32.totalorder %s38, 1
        %s814 = scalar_select %p813, %s38, 1
        %s815 = scalar_lea.vmem %s19, %s814
      $region104: #{_forward_impl.1} parent=47 // pred_fallthru
        _
      // Predicated region
      $region105: #{_forward_impl.1} parent=47 // pred_check
        %p816 = pneg %p562
      $region106: #{_forward_impl.1} parent=47 // pred_check_branch
        %818 = sbr.rel (%p816) target = $region108
      $region107: #{_forward_impl.1} parent=47 // pred_region
        %p819 = scmp.lt.s32.totalorder %s38, 1
        %s820 = scalar_select %p819, %s38, 1
        %s821 = smul.addr %s820, 16
        %s822 = smul.addr %s821, 4
        %s823 = scalar_lea.vmem %s20, %s822
      $region108: #{_forward_impl.1} parent=47 // pred_fallthru
        _
      // Predicated region
      $region109: #{_forward_impl.1} parent=47 // pred_check
        %p824 = pneg %p588
      $region110: #{_forward_impl.1} parent=47 // pred_check_branch
        %826 = sbr.rel (%p824) target = $region112
      $region111: #{_forward_impl.1} parent=47 // pred_region
        %p827 = scmp.lt.s32.totalorder %s38, 1
        %s828 = scalar_select %p827, %s38, 1
        %s829 = scalar_lea.vmem %s21, %s828
      $region112: #{_forward_impl.1} parent=47 // pred_fallthru
        _
    $region48: #{_forward_impl.1} parent=5 // pred_fallthru
      _
    %p830 = scmp.le.s32.totalorder 1, %s30
    %p831 = scmp.lt.s32.totalorder %s30, 3
    %p832 = pnand %p830, %p831
    %p833 = pneg %p832
    // Predicated region
    $region113: #{_forward_impl.1} parent=5 // pred_check
      _
    $region114: #{_forward_impl.1} parent=5 // pred_check_branch
      %835 = sbr.rel (%p832) target = $region116
    $region115: #{_forward_impl.1} parent=5 // pred_region
      %s836 = ssub.s32 %s30, 1
      %s837 = smul.u32 2, %s39
      %p838 = scmp.lt.s32.totalorder %s837, 1
      %s839 = scalar_select %p838, %s837, 1
      %s840 = smul.addr %s839, 3
      %s841 = smul.addr %s840, 4
      %s842 = scalar_lea.vmem %s0, %s841
      %p843 = pneg %p68
      %p844 = pneg %p65
      %s845 = smul.u32 2, %s39
      %p846 = scmp.lt.s32.totalorder %s845, 1
      %s847 = scalar_select %p846, %s845, 1
      %s848 = smul.addr %s847, 3
      %s849 = smul.addr %s848, 8
      %s850 = scalar_lea.vmem %s1, %s849
      %p851 = pneg %p94
      %p852 = pneg %p91
      %p853 = pneg %p115
      %p854 = pneg %p112
      %p855 = pneg %p136
      %p856 = pneg %p133
      %p857 = pneg %p157
      %p858 = pneg %p154
      %p859 = pneg %p178
      %p860 = pneg %p175
      %p861 = scmp.lt.s32.totalorder %s40, 1
      %s862 = scalar_select %p861, %s40, 1
      %s863 = scalar_lea.vmem %s6, %s862
      %p864 = pneg %p204
      %p865 = pneg %p201
      %p866 = scmp.lt.s32.totalorder %s40, 1
      %s867 = scalar_select %p866, %s40, 1
      %s868 = scalar_lea.vmem %s7, %s867
      %p869 = pneg %p230
      %p870 = pneg %p227
      %p871 = scmp.lt.s32.totalorder %s40, 1
      %s872 = scalar_select %p871, %s40, 1
      %s873 = smul.addr %s872, 8
      %s874 = smul.addr %s873, 4
      %s875 = scalar_lea.vmem %s8, %s874
      %p876 = pneg %p256
      %p877 = pneg %p253
      %p878 = scmp.lt.s32.totalorder %s40, 1
      %s879 = scalar_select %p878, %s40, 1
      %s880 = smul.addr %s879, 2
      %s881 = scalar_lea.vmem %s9, %s880
      %p882 = pneg %p282
      %p883 = pneg %p279
      %p884 = scmp.lt.s32.totalorder %s40, 1
      %s885 = scalar_select %p884, %s40, 1
      %s886 = smul.addr %s885, 8
      %s887 = smul.addr %s886, 4
      %s888 = scalar_lea.vmem %s10, %s887
      %p889 = pneg %p308
      %p890 = pneg %p305
      %p891 = scmp.lt.s32.totalorder %s40, 1
      %s892 = scalar_select %p891, %s40, 1
      %s893 = smul.addr %s892, 2
      %s894 = scalar_lea.vmem %s11, %s893
      %p895 = pneg %p334
      %p896 = pneg %p331
      %p897 = scmp.lt.s32.totalorder %s40, 1
      %s898 = scalar_select %p897, %s40, 1
      %s899 = smul.addr %s898, 8
      %s900 = smul.addr %s899, 4
      %s901 = scalar_lea.vmem %s12, %s900
      %p902 = pneg %p360
      %p903 = pneg %p357
      %p904 = scmp.lt.s32.totalorder %s40, 1
      %s905 = scalar_select %p904, %s40, 1
      %s906 = smul.addr %s905, 2
      %s907 = scalar_lea.vmem %s13, %s906
      %p908 = pneg %p386
      %p909 = pneg %p383
      %p910 = scmp.lt.s32.totalorder %s40, 1
      %s911 = scalar_select %p910, %s40, 1
      %s912 = smul.addr %s911, 4
      %s913 = smul.addr %s912, 4
      %s914 = scalar_lea.vmem %s14, %s913
      %p915 = pneg %p412
      %p916 = pneg %p409
      %p917 = scmp.lt.s32.totalorder %s40, 1
      %s918 = scalar_select %p917, %s40, 1
      %s919 = scalar_lea.vmem %s15, %s918
      %p920 = pneg %p438
      %p921 = pneg %p435
      %p922 = scmp.lt.s32.totalorder %s40, 1
      %s923 = scalar_select %p922, %s40, 1
      %s924 = scalar_lea.vmem %s16, %s923
      %p925 = pneg %p464
      %p926 = pneg %p461
      %p927 = scmp.lt.s32.totalorder %s40, 1
      %s928 = scalar_select %p927, %s40, 1
      %s929 = scalar_lea.vmem %s17, %s928
      %p930 = pneg %p490
      %p931 = pneg %p487
      %p932 = scmp.lt.s32.totalorder %s40, 1
      %s933 = scalar_select %p932, %s40, 1
      %s934 = smul.addr %s933, 4
      %s935 = smul.addr %s934, 4
      %s936 = scalar_lea.vmem %s18, %s935
      %p937 = pneg %p516
      %p938 = pneg %p513
      %p939 = scmp.lt.s32.totalorder %s40, 1
      %s940 = scalar_select %p939, %s40, 1
      %s941 = scalar_lea.vmem %s19, %s940
      %p942 = pneg %p542
      %p943 = pneg %p539
      %p944 = scmp.lt.s32.totalorder %s40, 1
      %s945 = scalar_select %p944, %s40, 1
      %s946 = smul.addr %s945, 16
      %s947 = smul.addr %s946, 4
      %s948 = scalar_lea.vmem %s20, %s947
      %p949 = pneg %p568
      %p950 = pneg %p565
      %p951 = scmp.lt.s32.totalorder %s40, 1
      %s952 = scalar_select %p951, %s40, 1
      %s953 = scalar_lea.vmem %s21, %s952
      %p954 = pneg %p594
      %p955 = pneg %p591
      %p956 = pneg %p615
      %p957 = pneg %p612
      %p958 = pneg %p636
      %p959 = pneg %p633
      %p960 = pneg %p662
      %p961 = pneg %p659
      %s962 = smul.u32 2, %s39
      %p963 = scmp.lt.s32.totalorder %s962, 1
      %s964 = scalar_select %p963, %s962, 1
      %s965 = smul.addr %s964, 3
      %s966 = smul.addr %s965, 8
      %s967 = scalar_lea.vmem %s24, %s966
      %s968 = smul.u32 2, %s39
      %p969 = scmp.lt.s32.totalorder %s968, 1
      %s970 = scalar_select %p969, %s968, 1
      %s971 = smul.addr %s970, 3
      %s972 = smul.addr %s971, 4
      %s973 = scalar_lea.vmem %s0, %s972
      %s974 = smul.u32 2, %s39
      %s975 = smul.u32 2, %s39
      %p976 = scmp.lt.s32.totalorder %s975, 1
      %s977 = scalar_select %p976, %s975, 1
      %s978 = smul.addr %s977, 3
      %s979 = smul.addr %s978, 8
      %s980 = scalar_lea.vmem %s1, %s979
      %s981 = smul.u32 2, %s39
      %p982 = scmp.lt.s32.totalorder %s40, 1
      %s983 = scalar_select %p982, %s40, 1
      %s984 = scalar_lea.vmem %s6, %s983
      %p985 = scmp.lt.s32.totalorder %s40, 1
      %s986 = scalar_select %p985, %s40, 1
      %s987 = scalar_lea.vmem %s7, %s986
      %p988 = scmp.lt.s32.totalorder %s40, 1
      %s989 = scalar_select %p988, %s40, 1
      %s990 = smul.addr %s989, 8
      %s991 = smul.addr %s990, 4
      %s992 = scalar_lea.vmem %s8, %s991
      %p993 = scmp.lt.s32.totalorder %s40, 1
      %s994 = scalar_select %p993, %s40, 1
      %s995 = smul.addr %s994, 2
      %s996 = scalar_lea.vmem %s9, %s995
      %p997 = scmp.lt.s32.totalorder %s40, 1
      %s998 = scalar_select %p997, %s40, 1
      %s999 = smul.addr %s998, 8
      %s1000 = smul.addr %s999, 4
      %s1001 = scalar_lea.vmem %s10, %s1000
      %p1002 = scmp.lt.s32.totalorder %s40, 1
      %s1003 = scalar_select %p1002, %s40, 1
      %s1004 = smul.addr %s1003, 2
      %s1005 = scalar_lea.vmem %s11, %s1004
      %p1006 = scmp.lt.s32.totalorder %s40, 1
      %s1007 = scalar_select %p1006, %s40, 1
      %s1008 = smul.addr %s1007, 8
      %s1009 = smul.addr %s1008, 4
      %s1010 = scalar_lea.vmem %s12, %s1009
      %p1011 = scmp.lt.s32.totalorder %s40, 1
      %s1012 = scalar_select %p1011, %s40, 1
      %s1013 = smul.addr %s1012, 2
      %s1014 = scalar_lea.vmem %s13, %s1013
      %p1015 = scmp.lt.s32.totalorder %s40, 1
      %s1016 = scalar_select %p1015, %s40, 1
      %s1017 = smul.addr %s1016, 4
      %s1018 = smul.addr %s1017, 4
      %s1019 = scalar_lea.vmem %s14, %s1018
      %p1020 = scmp.lt.s32.totalorder %s40, 1
      %s1021 = scalar_select %p1020, %s40, 1
      %s1022 = scalar_lea.vmem %s15, %s1021
      %p1023 = scmp.lt.s32.totalorder %s40, 1
      %s1024 = scalar_select %p1023, %s40, 1
      %s1025 = scalar_lea.vmem %s16, %s1024
      %p1026 = scmp.lt.s32.totalorder %s40, 1
      %s1027 = scalar_select %p1026, %s40, 1
      %s1028 = scalar_lea.vmem %s17, %s1027
      %p1029 = scmp.lt.s32.totalorder %s40, 1
      %s1030 = scalar_select %p1029, %s40, 1
      %s1031 = smul.addr %s1030, 4
      %s1032 = smul.addr %s1031, 4
      %s1033 = scalar_lea.vmem %s18, %s1032
      %p1034 = scmp.lt.s32.totalorder %s40, 1
      %s1035 = scalar_select %p1034, %s40, 1
      %s1036 = scalar_lea.vmem %s19, %s1035
      %p1037 = scmp.lt.s32.totalorder %s40, 1
      %s1038 = scalar_select %p1037, %s40, 1
      %s1039 = smul.addr %s1038, 16
      %s1040 = smul.addr %s1039, 4
      %s1041 = scalar_lea.vmem %s20, %s1040
      %p1042 = scmp.lt.s32.totalorder %s40, 1
      %s1043 = scalar_select %p1042, %s40, 1
      %s1044 = scalar_lea.vmem %s21, %s1043
      %s1045 = smul.u32 2, %s39
      %p1046 = scmp.lt.s32.totalorder %s1045, 1
      %s1047 = scalar_select %p1046, %s1045, 1
      %s1048 = smul.addr %s1047, 3
      %s1049 = smul.addr %s1048, 8
      %s1050 = scalar_lea.vmem %s24, %s1049
      %s1051 = smul.u32 2, %s39
      %p1053 = scmp.eq.s32.totalorder %s40, 0
      // Predicated region
      $region117: #{_forward_impl.1} parent=115 // pred_check
        %p1054 = pneg %p1053
      $region118: #{_forward_impl.1} parent=115 // pred_check_branch
        %1056 = sbr.rel (%p1054) target = $region120
      $region119: #{_forward_impl.1} parent=115 // pred_region
        %v1057 = vld [vmem:[%s973] sm:$0xf]
        %v1058 = vld [vmem:[%s973 + $0x4] sm:$0xf]
        %v1059 = vld [vmem:[%s973 + $0x8] sm:$0xf]
        %v1060 = vld [vmem:[%s973 + $0xc] sm:$0xf]
        %v1061 = vld [vmem:[%s973 + $0x10] sm:$0xf]
        %v1062 = vld [vmem:[%s973 + $0x14] sm:$0xf]
        %v1063 = vld [vmem:[%s3] sm:$0xf]
        %v1064 = vld [vmem:[%s3 + $0x4] sm:$0x3]
        %v1071 = vunpack.c.l.b16 %v1057
        %v1072 = vunpack.c.l.b16 %v1058
        %v1073 = vunpack.c.l.b16 %v1059
        %v1074 = vunpack.c.l.b16 %v1060
        %v1075 = vunpack.c.l.b16 %v1061
        %v1076 = vunpack.c.l.b16 %v1062
        %v1077 = vpack.c.b16 %v1072, %v1071
        %v1078 = vpack.c.b16 %v1074, %v1073
        %v1079 = vpack.c.b16 %v1076, %v1075
        %v1082 = vunpack.c.l.b16 %v1063
        %v1083 = vunpack.c.l.b16 %v1064
        %v1084 = vpack.c.b16 %v1083, %v1082
        %vm1085 = vcmask 97280
        %v1087 = vsel %vm1085, %v1077, 0
        %v1090 = vsel %vm1085, %v1078, 0
        %v1093 = vsel %vm1085, %v1079, 0
        %vm1095 = vcmask 1045504
        %v1097 = vsel %vm1095, %v1084, 0
        %1099 = vmatprep.subr.bf16.mxu0 0
        %1100 = vmatpush1.bf16.msra.mxu0 0
        %1101 = vmatprep.subr.bf16.mxu0 0
        %1102 = vmatpush1.bf16.msra.mxu0 0
        %1103 = vmatprep.subr.bf16.mxu0 0
        %1104 = vmatpush1.bf16.msra.mxu0 0
        %1105 = vmatprep.subr.bf16.mxu0 0
        %1106 = vmatpush1.bf16.msra.mxu0 0
        %1107 = vmatprep.subr.bf16.mxu0 0
        %1108 = vmatpush1.bf16.msra.mxu0 0
        %1109 = vmatprep.subr.bf16.mxu0 0
        %1110 = vmatpush1.bf16.msra.mxu0 0
        %1111 = vmatprep.subr.bf16.mxu0 0
        %1112 = vmatpush1.bf16.msra.mxu0 0
        %1113 = vmatprep.subr.bf16.mxu0 0
        %1114 = vmatpush1.bf16.msra.mxu0 %v1097
        %1115 = vmatprep.subr.bf16.mxu0 0
        %1116 = vmatpush2.bf16.msra.mxu0 0
        %1117 = vmatprep.subr.bf16.mxu0 0
        %1118 = vmatpush2.bf16.msra.mxu0 0
        %1119 = vmatprep.subr.bf16.mxu0 0
        %1120 = vmatpush2.bf16.msra.mxu0 0
        %1121 = vmatprep.subr.bf16.mxu0 0
        %1122 = vmatpush2.bf16.msra.mxu0 0
        %1123 = vmatprep.subr.bf16.mxu0 0
        %1124 = vmatpush2.bf16.msra.mxu0 0
        %1125 = vmatprep.subr.bf16.mxu0 0
        %1126 = vmatpush2.bf16.msra.mxu0 0
        %1127 = vmatprep.subr.bf16.mxu0 0
        %1128 = vmatpush2.bf16.msra.mxu0 0
        %1129 = vmatprep.subr.bf16.mxu0 0
        %1130 = vmatpush2.bf16.msra.mxu0 0
        %1131 = vmatprep.mubr.bf16.mxu0 0
        %1132 = vmatmul.mubr.bf16.gmra.mxu0 %v1087
        %v1133 = vpop.f32.mrf.mxu0
        %v1134 = vadd.f32 0.0, %v1133
        %v1135 = vpop.f32.mrf.mxu0
        %v1136 = vpop.f32.mrf.mxu0
        %v1137 = vadd.f32 0.0, %v1136
        %v1138 = vpop.f32.mrf.mxu0
        %1139 = vmatprep.mubr.bf16.mxu0 0
        %1140 = vmatmul.mubr.bf16.gmra.mxu0 %v1090
        %v1141 = vpop.f32.mrf.mxu0
        %v1142 = vadd.f32 0.0, %v1141
        %v1143 = vpop.f32.mrf.mxu0
        %v1144 = vpop.f32.mrf.mxu0
        %v1145 = vadd.f32 0.0, %v1144
        %v1146 = vpop.f32.mrf.mxu0
        %1147 = vmatprep.mubr.bf16.mxu0 0
        %1148 = vmatmul.mubr.bf16.gmra.mxu0 %v1093
        %v1149 = vpop.f32.mrf.mxu0
        %v1150 = vadd.f32 0.0, %v1149
        %v1151 = vpop.f32.mrf.mxu0
        %v1152 = vpop.f32.mrf.mxu0
        %v1153 = vadd.f32 0.0, %v1152
        %v1154 = vpop.f32.mrf.mxu0
        %1155 = vdwg.mxu0
        %v1156 = vld [vmem:[%s4] sm:$0x1]
        %v1158 = vlaneseq
        %v1159 = vshrl.u32 %v1158, 7
        %v1160 = vsub.s32 0, %v1159
        %v1161 = vrot.slane %v1156, %v1160
        %v1163 = vadd.f32 %v1134, %v1161
        %v1164 = vadd.f32 %v1137, %v1161
        %v1165 = vadd.f32 %v1142, %v1161
        %v1166 = vadd.f32 %v1145, %v1161
        %v1167 = vadd.f32 %v1150, %v1161
        %v1168 = vadd.f32 %v1153, %v1161
        %v1169 = vld [vmem:[%s980] sm:$0xff]
        %v1170 = vld [vmem:[%s980 + $0x8] sm:$0xff]
        %v1171 = vld [vmem:[%s980 + $0x10] sm:$0xff]
        %v1172 = vld [vmem:[%s980 + $0x18] sm:$0xff]
        %v1173 = vld [vmem:[%s980 + $0x20] sm:$0xff]
        %v1174 = vld [vmem:[%s980 + $0x28] sm:$0xff]
        %v1175 = vadd.f32 %v1163, %v1169
        %v1176 = vadd.f32 %v1164, %v1170
        %v1177 = vadd.f32 %v1165, %v1171
        %v1178 = vadd.f32 %v1166, %v1172
        %v1179 = vadd.f32 %v1167, %v1173
        %v1180 = vadd.f32 %v1168, %v1174
        %v1181 = vlaneseq
        %v1182 = vshrl.u32 %v1181, 7
        %v1183 = vadd.s32 %v1182, 8
        %v1184 = vadd.s32 %v1182, 16
        %vm1185 = vcmp.eq.s32.totalorder %v1182, 0
        %vm1186 = vcmp.eq.s32.totalorder %v1183, 0
        %vm1187 = vcmp.eq.s32.totalorder %v1184, 0
        %v1188 = vld [vmem:[%s5] sm:$0x1]
        %v1189 = vsel %vm1185, 1, 0
        %v1190 = vsel %vm1186, 1, 0
        %v1191 = vsel %vm1187, 1, 0
        %vm1192 = vcmp.eq.s32.totalorder %v1189, 1
        %vm1193 = vcmp.eq.s32.totalorder %v1190, 1
        %vm1194 = vcmp.eq.s32.totalorder %v1191, 1
        %v1196 = vlaneseq
        %v1197 = vshrl.u32 %v1196, 7
        %v1198 = vsub.s32 0, %v1197
        %v1199 = vrot.slane %v1188, %v1198
        %v1201 = vsel %vm1192, %v1199, %v1175
        %v1202 = vsel %vm1193, %v1199, %v1176
        %v1203 = vsel %vm1194, %v1199, %v1177
        %v1204 = vsel %vm1192, %v1199, %v1178
        %v1205 = vsel %vm1193, %v1199, %v1179
        %v1206 = vsel %vm1194, %v1199, %v1180
        %vm1207 = vcmask 261120
        %1208 = vst.msk [vmem:[#allocation2] sm:$0xff] %vm1207, %v1201
        %1209 = vst.msk [vmem:[#allocation2 + $0x8] sm:$0xff] %vm1207, %v1202
        %1210 = vst.msk [vmem:[#allocation2 + $0x10] sm:$0xff] %vm1207, %v1203
        %1211 = vst.msk [vmem:[#allocation2 + $0x18] sm:$0xff] %vm1207, %v1204
        %1212 = vst.msk [vmem:[#allocation2 + $0x20] sm:$0xff] %vm1207, %v1205
        %1213 = vst.msk [vmem:[#allocation2 + $0x28] sm:$0xff] %vm1207, %v1206
      $region120: #{_forward_impl.1} parent=115 // pred_fallthru
        _
      %v1214 = vld [vmem:[#allocation2] sm:$0xff]
      %v1215 = vld [vmem:[#allocation2 + $0x8] sm:$0xff]
      %v1216 = vld [vmem:[#allocation2 + $0x10] sm:$0xff]
      %v1217 = vld [vmem:[#allocation2 + $0x18] sm:$0xff]
      %v1218 = vld [vmem:[#allocation2 + $0x20] sm:$0xff]
      %v1219 = vld [vmem:[#allocation2 + $0x28] sm:$0xff]
      %v1220 = vld [vmem:[%s984] sm:$0x1]
      %v1221 = vld [vmem:[%s987] sm:$0x1]
      %vm1222 = vcmask 261120
      %v1223 = vsel %vm1222, %v1214, 0.0
      %1224 = vadd.xlane.f32.xlu0 %v1223
      %v1225 = vpop.xlane.xlu0 %1224
      %v1226 = vsel %vm1222, %v1215, 0.0
      %1227 = vadd.xlane.f32.xlu0 %v1226
      %v1228 = vpop.xlane.xlu0 %1227
      %v1229 = vsel %vm1222, %v1216, 0.0
      %1230 = vadd.xlane.f32.xlu0 %v1229
      %v1231 = vpop.xlane.xlu0 %1230
      %v1232 = vsel %vm1222, %v1217, 0.0
      %1233 = vadd.xlane.f32.xlu0 %v1232
      %v1234 = vpop.xlane.xlu0 %1233
      %v1235 = vsel %vm1222, %v1218, 0.0
      %1236 = vadd.xlane.f32.xlu0 %v1235
      %v1237 = vpop.xlane.xlu0 %1236
      %v1238 = vsel %vm1222, %v1219, 0.0
      %1239 = vadd.xlane.f32.xlu0 %v1238
      %v1240 = vpop.xlane.xlu0 %1239
      %v1241 = vrcp.pop 32.0
      %v1242 = vmul.f32 %v1225, %v1241
      %v1243 = vmul.f32 %v1228, %v1241
      %v1244 = vmul.f32 %v1231, %v1241
      %v1245 = vmul.f32 %v1234, %v1241
      %v1246 = vmul.f32 %v1237, %v1241
      %v1247 = vmul.f32 %v1240, %v1241
      %v1248 = vsub.f32 %v1214, %v1242
      %v1249 = vsub.f32 %v1215, %v1243
      %v1250 = vsub.f32 %v1216, %v1244
      %v1251 = vsub.f32 %v1217, %v1245
      %v1252 = vsub.f32 %v1218, %v1246
      %v1253 = vsub.f32 %v1219, %v1247
      %v1254 = vmul.f32 %v1248, %v1248
      %v1255 = vmul.f32 %v1249, %v1249
      %v1256 = vmul.f32 %v1250, %v1250
      %v1257 = vmul.f32 %v1251, %v1251
      %v1258 = vmul.f32 %v1252, %v1252
      %v1259 = vmul.f32 %v1253, %v1253
      %v1260 = vsel %vm1222, %v1254, 0.0
      %1261 = vadd.xlane.f32.xlu0 %v1260
      %v1262 = vpop.xlane.xlu0 %1261
      %v1263 = vsel %vm1222, %v1255, 0.0
      %1264 = vadd.xlane.f32.xlu0 %v1263
      %v1265 = vpop.xlane.xlu0 %1264
      %v1266 = vsel %vm1222, %v1256, 0.0
      %1267 = vadd.xlane.f32.xlu0 %v1266
      %v1268 = vpop.xlane.xlu0 %1267
      %v1269 = vsel %vm1222, %v1257, 0.0
      %1270 = vadd.xlane.f32.xlu0 %v1269
      %v1271 = vpop.xlane.xlu0 %1270
      %v1272 = vsel %vm1222, %v1258, 0.0
      %1273 = vadd.xlane.f32.xlu0 %v1272
      %v1274 = vpop.xlane.xlu0 %1273
      %v1275 = vsel %vm1222, %v1259, 0.0
      %1276 = vadd.xlane.f32.xlu0 %v1275
      %v1277 = vpop.xlane.xlu0 %1276
      %v1278 = vmul.f32 %v1262, %v1241
      %v1279 = vmul.f32 %v1265, %v1241
      %v1280 = vmul.f32 %v1268, %v1241
      %v1281 = vmul.f32 %v1271, %v1241
      %v1282 = vmul.f32 %v1274, %v1241
      %v1283 = vmul.f32 %v1277, %v1241
      %v1284 = vadd.f32 %v1278, 1e-05
      %v1285 = vadd.f32 %v1279, 1e-05
      %v1286 = vadd.f32 %v1280, 1e-05
      %v1287 = vadd.f32 %v1281, 1e-05
      %v1288 = vadd.f32 %v1282, 1e-05
      %v1289 = vadd.f32 %v1283, 1e-05
      %v1290 = vrsqrt.pop %v1284
      %v1291 = vrsqrt.pop %v1285
      %v1292 = vrsqrt.pop %v1286
      %v1293 = vrsqrt.pop %v1287
      %v1294 = vrsqrt.pop %v1288
      %v1295 = vrsqrt.pop %v1289
      %v1296 = vmul.f32 %v1248, %v1290
      %v1297 = vmul.f32 %v1249, %v1291
      %v1298 = vmul.f32 %v1250, %v1292
      %v1299 = vmul.f32 %v1251, %v1293
      %v1300 = vmul.f32 %v1252, %v1294
      %v1301 = vmul.f32 %v1253, %v1295
      %v1303 = vlaneseq
      %v1304 = vshrl.u32 %v1303, 7
      %v1305 = vsub.s32 0, %v1304
      %v1306 = vrot.slane %v1220, %v1305
      %v1308 = vmul.f32 %v1296, %v1306
      %v1309 = vmul.f32 %v1297, %v1306
      %v1310 = vmul.f32 %v1298, %v1306
      %v1311 = vmul.f32 %v1299, %v1306
      %v1312 = vmul.f32 %v1300, %v1306
      %v1313 = vmul.f32 %v1301, %v1306
      %v1315 = vlaneseq
      %v1316 = vshrl.u32 %v1315, 7
      %v1317 = vsub.s32 0, %v1316
      %v1318 = vrot.slane %v1221, %v1317
      %v1320 = vadd.f32 %v1308, %v1318
      %v1321 = vadd.f32 %v1309, %v1318
      %v1322 = vadd.f32 %v1310, %v1318
      %v1323 = vadd.f32 %v1311, %v1318
      %v1324 = vadd.f32 %v1312, %v1318
      %v1325 = vadd.f32 %v1313, %v1318
      %v1326 = vpack.c.bf16 %v1321, %v1320
      %v1327 = vpack.c.bf16 %v1323, %v1322
      %v1328 = vpack.c.bf16 %v1325, %v1324
      %v1329 = vld [vmem:[%s992] sm:$0xf]
      %v1330 = vld [vmem:[%s992 + $0x4] sm:$0xf]
      %v1331 = vld [vmem:[%s992 + $0x8] sm:$0xf]
      %v1332 = vld [vmem:[%s992 + $0xc] sm:$0xf]
      %v1333 = vld [vmem:[%s996] sm:$0x1]
      %v1335 = vlaneseq
      %v1336 = vshrl.u32 %v1335, 7
      %v1337 = vsub.s32 0, %v1336
      %v1338 = vrot.slane %v1333, %v1337
      %v1344 = vunpack.c.l.b16 %v1329
      %v1345 = vunpack.c.l.b16 %v1330
      %v1346 = vunpack.c.l.b16 %v1331
      %v1347 = vunpack.c.l.b16 %v1332
      %v1348 = vpack.c.b16 %v1345, %v1344
      %v1349 = vpack.c.b16 %v1347, %v1346
      %v1353 = vsel %vm1222, %v1326, 0
      %v1356 = vsel %vm1222, %v1327, 0
      %v1359 = vsel %vm1222, %v1328, 0
      %1361 = vmatprep.subr.bf16.mxu0 0
      %1362 = vmatpush1.bf16.msra.mxu0 0
      %1363 = vmatprep.subr.bf16.mxu0 0
      %1364 = vmatpush1.bf16.msra.mxu0 0
      %1365 = vmatprep.subr.bf16.mxu0 0
      %1366 = vmatpush1.bf16.msra.mxu0 0
      %1367 = vmatprep.subr.bf16.mxu0 0
      %1368 = vmatpush1.bf16.msra.mxu0 0
      %1369 = vmatprep.subr.bf16.mxu0 0
      %1370 = vmatpush1.bf16.msra.mxu0 0
      %1371 = vmatprep.subr.bf16.mxu0 0
      %1372 = vmatpush1.bf16.msra.mxu0 0
      %1373 = vmatprep.subr.bf16.mxu0 0
      %1374 = vmatpush1.bf16.msra.mxu0 %v1349
      %1375 = vmatprep.subr.bf16.mxu0 0
      %1376 = vmatpush1.bf16.msra.mxu0 %v1348
      %1377 = vmatprep.subr.bf16.mxu0 0
      %1378 = vmatpush2.bf16.msra.mxu0 0
      %1379 = vmatprep.subr.bf16.mxu0 0
      %1380 = vmatpush2.bf16.msra.mxu0 0
      %1381 = vmatprep.subr.bf16.mxu0 0
      %1382 = vmatpush2.bf16.msra.mxu0 0
      %1383 = vmatprep.subr.bf16.mxu0 0
      %1384 = vmatpush2.bf16.msra.mxu0 0
      %1385 = vmatprep.subr.bf16.mxu0 0
      %1386 = vmatpush2.bf16.msra.mxu0 0
      %1387 = vmatprep.subr.bf16.mxu0 0
      %1388 = vmatpush2.bf16.msra.mxu0 0
      %1389 = vmatprep.subr.bf16.mxu0 0
      %1390 = vmatpush2.bf16.msra.mxu0 0
      %1391 = vmatprep.subr.bf16.mxu0 0
      %1392 = vmatpush2.bf16.msra.mxu0 0
      %1393 = vmatprep.mubr.bf16.mxu0 0
      %1394 = vmatmul.mubr.bf16.gmra.mxu0 %v1353
      %v1395 = vpop.f32.mrf.mxu0
      %v1396 = vadd.f32 %v1338, %v1395
      %v1397 = vpop.f32.mrf.mxu0
      %v1398 = vpop.f32.mrf.mxu0
      %v1399 = vadd.f32 %v1338, %v1398
      %v1400 = vpop.f32.mrf.mxu0
      %1401 = vmatprep.mubr.bf16.mxu0 0
      %1402 = vmatmul.mubr.bf16.gmra.mxu0 %v1356
      %v1403 = vpop.f32.mrf.mxu0
      %v1404 = vadd.f32 %v1338, %v1403
      %v1405 = vpop.f32.mrf.mxu0
      %v1406 = vpop.f32.mrf.mxu0
      %v1407 = vadd.f32 %v1338, %v1406
      %v1408 = vpop.f32.mrf.mxu0
      %1409 = vmatprep.mubr.bf16.mxu0 0
      %1410 = vmatmul.mubr.bf16.gmra.mxu0 %v1359
      %v1411 = vpop.f32.mrf.mxu0
      %v1412 = vadd.f32 %v1338, %v1411
      %v1413 = vpop.f32.mrf.mxu0
      %v1414 = vpop.f32.mrf.mxu0
      %v1415 = vadd.f32 %v1338, %v1414
      %v1416 = vpop.f32.mrf.mxu0
      %1417 = vdwg.mxu0
      %v1418 = vpack.c.bf16 %v1399, %v1396
      %v1419 = vpack.c.bf16 %v1407, %v1404
      %v1420 = vpack.c.bf16 %v1415, %v1412
      %s1421 = scalar_lea.vmem %s992, 16
      %v1422 = vld [vmem:[%s1421] sm:$0xf]
      %v1423 = vld [vmem:[%s1421 + $0x4] sm:$0xf]
      %v1424 = vld [vmem:[%s1421 + $0x8] sm:$0xf]
      %v1425 = vld [vmem:[%s1421 + $0xc] sm:$0xf]
      %s1426 = scalar_lea.vmem %s996, 1
      %v1427 = vld [vmem:[%s1426] sm:$0x1]
      %v1429 = vlaneseq
      %v1430 = vshrl.u32 %v1429, 7
      %v1431 = vsub.s32 0, %v1430
      %v1432 = vrot.slane %v1427, %v1431
      %v1438 = vunpack.c.l.b16 %v1422
      %v1439 = vunpack.c.l.b16 %v1423
      %v1440 = vunpack.c.l.b16 %v1424
      %v1441 = vunpack.c.l.b16 %v1425
      %v1442 = vpack.c.b16 %v1439, %v1438
      %v1443 = vpack.c.b16 %v1441, %v1440
      %1446 = vmatprep.subr.bf16.mxu0 0
      %1447 = vmatpush1.bf16.msra.mxu0 0
      %1448 = vmatprep.subr.bf16.mxu0 0
      %1449 = vmatpush1.bf16.msra.mxu0 0
      %1450 = vmatprep.subr.bf16.mxu0 0
      %1451 = vmatpush1.bf16.msra.mxu0 0
      %1452 = vmatprep.subr.bf16.mxu0 0
      %1453 = vmatpush1.bf16.msra.mxu0 0
      %1454 = vmatprep.subr.bf16.mxu0 0
      %1455 = vmatpush1.bf16.msra.mxu0 0
      %1456 = vmatprep.subr.bf16.mxu0 0
      %1457 = vmatpush1.bf16.msra.mxu0 0
      %1458 = vmatprep.subr.bf16.mxu0 0
      %1459 = vmatpush1.bf16.msra.mxu0 %v1443
      %1460 = vmatprep.subr.bf16.mxu0 0
      %1461 = vmatpush1.bf16.msra.mxu0 %v1442
      %1462 = vmatprep.subr.bf16.mxu0 0
      %1463 = vmatpush2.bf16.msra.mxu0 0
      %1464 = vmatprep.subr.bf16.mxu0 0
      %1465 = vmatpush2.bf16.msra.mxu0 0
      %1466 = vmatprep.subr.bf16.mxu0 0
      %1467 = vmatpush2.bf16.msra.mxu0 0
      %1468 = vmatprep.subr.bf16.mxu0 0
      %1469 = vmatpush2.bf16.msra.mxu0 0
      %1470 = vmatprep.subr.bf16.mxu0 0
      %1471 = vmatpush2.bf16.msra.mxu0 0
      %1472 = vmatprep.subr.bf16.mxu0 0
      %1473 = vmatpush2.bf16.msra.mxu0 0
      %1474 = vmatprep.subr.bf16.mxu0 0
      %1475 = vmatpush2.bf16.msra.mxu0 0
      %1476 = vmatprep.subr.bf16.mxu0 0
      %1477 = vmatpush2.bf16.msra.mxu0 0
      %1478 = vmatprep.mubr.bf16.mxu0 0
      %1479 = vmatmul.mubr.bf16.gmra.mxu0 %v1353
      %v1480 = vpop.f32.mrf.mxu0
      %v1481 = vadd.f32 %v1432, %v1480
      %v1482 = vpop.f32.mrf.mxu0
      %v1483 = vpop.f32.mrf.mxu0
      %v1484 = vadd.f32 %v1432, %v1483
      %v1485 = vpop.f32.mrf.mxu0
      %1486 = vmatprep.mubr.bf16.mxu0 0
      %1487 = vmatmul.mubr.bf16.gmra.mxu0 %v1356
      %v1488 = vpop.f32.mrf.mxu0
      %v1489 = vadd.f32 %v1432, %v1488
      %v1490 = vpop.f32.mrf.mxu0
      %v1491 = vpop.f32.mrf.mxu0
      %v1492 = vadd.f32 %v1432, %v1491
      %v1493 = vpop.f32.mrf.mxu0
      %1494 = vmatprep.mubr.bf16.mxu0 0
      %1495 = vmatmul.mubr.bf16.gmra.mxu0 %v1359
      %v1496 = vpop.f32.mrf.mxu0
      %v1497 = vadd.f32 %v1432, %v1496
      %v1498 = vpop.f32.mrf.mxu0
      %v1499 = vpop.f32.mrf.mxu0
      %v1500 = vadd.f32 %v1432, %v1499
      %v1501 = vpop.f32.mrf.mxu0
      %1502 = vdwg.mxu0
      %v1503 = vpack.c.bf16 %v1484, %v1481
      %v1504 = vpack.c.bf16 %v1492, %v1489
      %v1505 = vpack.c.bf16 %v1500, %v1497
      %v1506 = vld [vmem:[%s1001] sm:$0xf]
      %v1507 = vld [vmem:[%s1001 + $0x4] sm:$0xf]
      %v1508 = vld [vmem:[%s1001 + $0x8] sm:$0xf]
      %v1509 = vld [vmem:[%s1001 + $0xc] sm:$0xf]
      %v1510 = vld [vmem:[%s1005] sm:$0x1]
      %v1512 = vlaneseq
      %v1513 = vshrl.u32 %v1512, 7
      %v1514 = vsub.s32 0, %v1513
      %v1515 = vrot.slane %v1510, %v1514
      %v1521 = vunpack.c.l.b16 %v1506
      %v1522 = vunpack.c.l.b16 %v1507
      %v1523 = vunpack.c.l.b16 %v1508
      %v1524 = vunpack.c.l.b16 %v1509
      %v1525 = vpack.c.b16 %v1522, %v1521
      %v1526 = vpack.c.b16 %v1524, %v1523
      %1529 = vmatprep.subr.bf16.mxu0 0
      %1530 = vmatpush1.bf16.msra.mxu0 0
      %1531 = vmatprep.subr.bf16.mxu0 0
      %1532 = vmatpush1.bf16.msra.mxu0 0
      %1533 = vmatprep.subr.bf16.mxu0 0
      %1534 = vmatpush1.bf16.msra.mxu0 0
      %1535 = vmatprep.subr.bf16.mxu0 0
      %1536 = vmatpush1.bf16.msra.mxu0 0
      %1537 = vmatprep.subr.bf16.mxu0 0
      %1538 = vmatpush1.bf16.msra.mxu0 0
      %1539 = vmatprep.subr.bf16.mxu0 0
      %1540 = vmatpush1.bf16.msra.mxu0 0
      %1541 = vmatprep.subr.bf16.mxu0 0
      %1542 = vmatpush1.bf16.msra.mxu0 %v1526
      %1543 = vmatprep.subr.bf16.mxu0 0
      %1544 = vmatpush1.bf16.msra.mxu0 %v1525
      %1545 = vmatprep.subr.bf16.mxu0 0
      %1546 = vmatpush2.bf16.msra.mxu0 0
      %1547 = vmatprep.subr.bf16.mxu0 0
      %1548 = vmatpush2.bf16.msra.mxu0 0
      %1549 = vmatprep.subr.bf16.mxu0 0
      %1550 = vmatpush2.bf16.msra.mxu0 0
      %1551 = vmatprep.subr.bf16.mxu0 0
      %1552 = vmatpush2.bf16.msra.mxu0 0
      %1553 = vmatprep.subr.bf16.mxu0 0
      %1554 = vmatpush2.bf16.msra.mxu0 0
      %1555 = vmatprep.subr.bf16.mxu0 0
      %1556 = vmatpush2.bf16.msra.mxu0 0
      %1557 = vmatprep.subr.bf16.mxu0 0
      %1558 = vmatpush2.bf16.msra.mxu0 0
      %1559 = vmatprep.subr.bf16.mxu0 0
      %1560 = vmatpush2.bf16.msra.mxu0 0
      %1561 = vmatprep.mubr.bf16.mxu0 0
      %1562 = vmatmul.mubr.bf16.gmra.mxu0 %v1353
      %v1563 = vpop.f32.mrf.mxu0
      %v1564 = vadd.f32 %v1515, %v1563
      %v1565 = vpop.f32.mrf.mxu0
      %v1566 = vpop.f32.mrf.mxu0
      %v1567 = vadd.f32 %v1515, %v1566
      %v1568 = vpop.f32.mrf.mxu0
      %1569 = vmatprep.mubr.bf16.mxu0 0
      %1570 = vmatmul.mubr.bf16.gmra.mxu0 %v1356
      %v1571 = vpop.f32.mrf.mxu0
      %v1572 = vadd.f32 %v1515, %v1571
      %v1573 = vpop.f32.mrf.mxu0
      %v1574 = vpop.f32.mrf.mxu0
      %v1575 = vadd.f32 %v1515, %v1574
      %v1576 = vpop.f32.mrf.mxu0
      %1577 = vmatprep.mubr.bf16.mxu0 0
      %1578 = vmatmul.mubr.bf16.gmra.mxu0 %v1359
      %v1579 = vpop.f32.mrf.mxu0
      %v1580 = vadd.f32 %v1515, %v1579
      %v1581 = vpop.f32.mrf.mxu0
      %v1582 = vpop.f32.mrf.mxu0
      %v1583 = vadd.f32 %v1515, %v1582
      %v1584 = vpop.f32.mrf.mxu0
      %1585 = vdwg.mxu0
      %v1586 = vpack.c.bf16 %v1567, %v1564
      %v1587 = vpack.c.bf16 %v1575, %v1572
      %v1588 = vpack.c.bf16 %v1583, %v1580
      %s1589 = scalar_lea.vmem %s1001, 16
      %v1590 = vld [vmem:[%s1589] sm:$0xf]
      %v1591 = vld [vmem:[%s1589 + $0x4] sm:$0xf]
      %v1592 = vld [vmem:[%s1589 + $0x8] sm:$0xf]
      %v1593 = vld [vmem:[%s1589 + $0xc] sm:$0xf]
      %s1594 = scalar_lea.vmem %s1005, 1
      %v1595 = vld [vmem:[%s1594] sm:$0x1]
      %v1597 = vlaneseq
      %v1598 = vshrl.u32 %v1597, 7
      %v1599 = vsub.s32 0, %v1598
      %v1600 = vrot.slane %v1595, %v1599
      %v1606 = vunpack.c.l.b16 %v1590
      %v1607 = vunpack.c.l.b16 %v1591
      %v1608 = vunpack.c.l.b16 %v1592
      %v1609 = vunpack.c.l.b16 %v1593
      %v1610 = vpack.c.b16 %v1607, %v1606
      %v1611 = vpack.c.b16 %v1609, %v1608
      %1614 = vmatprep.subr.bf16.mxu0 0
      %1615 = vmatpush1.bf16.msra.mxu0 0
      %1616 = vmatprep.subr.bf16.mxu0 0
      %1617 = vmatpush1.bf16.msra.mxu0 0
      %1618 = vmatprep.subr.bf16.mxu0 0
      %1619 = vmatpush1.bf16.msra.mxu0 0
      %1620 = vmatprep.subr.bf16.mxu0 0
      %1621 = vmatpush1.bf16.msra.mxu0 0
      %1622 = vmatprep.subr.bf16.mxu0 0
      %1623 = vmatpush1.bf16.msra.mxu0 0
      %1624 = vmatprep.subr.bf16.mxu0 0
      %1625 = vmatpush1.bf16.msra.mxu0 0
      %1626 = vmatprep.subr.bf16.mxu0 0
      %1627 = vmatpush1.bf16.msra.mxu0 %v1611
      %1628 = vmatprep.subr.bf16.mxu0 0
      %1629 = vmatpush1.bf16.msra.mxu0 %v1610
      %1630 = vmatprep.subr.bf16.mxu0 0
      %1631 = vmatpush2.bf16.msra.mxu0 0
      %1632 = vmatprep.subr.bf16.mxu0 0
      %1633 = vmatpush2.bf16.msra.mxu0 0
      %1634 = vmatprep.subr.bf16.mxu0 0
      %1635 = vmatpush2.bf16.msra.mxu0 0
      %1636 = vmatprep.subr.bf16.mxu0 0
      %1637 = vmatpush2.bf16.msra.mxu0 0
      %1638 = vmatprep.subr.bf16.mxu0 0
      %1639 = vmatpush2.bf16.msra.mxu0 0
      %1640 = vmatprep.subr.bf16.mxu0 0
      %1641 = vmatpush2.bf16.msra.mxu0 0
      %1642 = vmatprep.subr.bf16.mxu0 0
      %1643 = vmatpush2.bf16.msra.mxu0 0
      %1644 = vmatprep.subr.bf16.mxu0 0
      %1645 = vmatpush2.bf16.msra.mxu0 0
      %1646 = vmatprep.mubr.bf16.mxu0 0
      %1647 = vmatmul.mubr.bf16.gmra.mxu0 %v1353
      %v1648 = vpop.f32.mrf.mxu0
      %v1649 = vadd.f32 %v1600, %v1648
      %v1650 = vpop.f32.mrf.mxu0
      %v1651 = vpop.f32.mrf.mxu0
      %v1652 = vadd.f32 %v1600, %v1651
      %v1653 = vpop.f32.mrf.mxu0
      %1654 = vmatprep.mubr.bf16.mxu0 0
      %1655 = vmatmul.mubr.bf16.gmra.mxu0 %v1356
      %v1656 = vpop.f32.mrf.mxu0
      %v1657 = vadd.f32 %v1600, %v1656
      %v1658 = vpop.f32.mrf.mxu0
      %v1659 = vpop.f32.mrf.mxu0
      %v1660 = vadd.f32 %v1600, %v1659
      %v1661 = vpop.f32.mrf.mxu0
      %1662 = vmatprep.mubr.bf16.mxu0 0
      %1663 = vmatmul.mubr.bf16.gmra.mxu0 %v1359
      %v1664 = vpop.f32.mrf.mxu0
      %v1665 = vadd.f32 %v1600, %v1664
      %v1666 = vpop.f32.mrf.mxu0
      %v1667 = vpop.f32.mrf.mxu0
      %v1668 = vadd.f32 %v1600, %v1667
      %v1669 = vpop.f32.mrf.mxu0
      %1670 = vdwg.mxu0
      %v1671 = vpack.c.bf16 %v1652, %v1649
      %v1672 = vpack.c.bf16 %v1660, %v1657
      %v1673 = vpack.c.bf16 %v1668, %v1665
      %v1674 = vld [vmem:[%s1010] sm:$0xf]
      %v1675 = vld [vmem:[%s1010 + $0x4] sm:$0xf]
      %v1676 = vld [vmem:[%s1010 + $0x8] sm:$0xf]
      %v1677 = vld [vmem:[%s1010 + $0xc] sm:$0xf]
      %v1678 = vld [vmem:[%s1014] sm:$0x1]
      %v1680 = vlaneseq
      %v1681 = vshrl.u32 %v1680, 7
      %v1682 = vsub.s32 0, %v1681
      %v1683 = vrot.slane %v1678, %v1682
      %v1689 = vunpack.c.l.b16 %v1674
      %v1690 = vunpack.c.l.b16 %v1675
      %v1691 = vunpack.c.l.b16 %v1676
      %v1692 = vunpack.c.l.b16 %v1677
      %v1693 = vpack.c.b16 %v1690, %v1689
      %v1694 = vpack.c.b16 %v1692, %v1691
      %1697 = vmatprep.subr.bf16.mxu0 0
      %1698 = vmatpush1.bf16.msra.mxu0 0
      %1699 = vmatprep.subr.bf16.mxu0 0
      %1700 = vmatpush1.bf16.msra.mxu0 0
      %1701 = vmatprep.subr.bf16.mxu0 0
      %1702 = vmatpush1.bf16.msra.mxu0 0
      %1703 = vmatprep.subr.bf16.mxu0 0
      %1704 = vmatpush1.bf16.msra.mxu0 0
      %1705 = vmatprep.subr.bf16.mxu0 0
      %1706 = vmatpush1.bf16.msra.mxu0 0
      %1707 = vmatprep.subr.bf16.mxu0 0
      %1708 = vmatpush1.bf16.msra.mxu0 0
      %1709 = vmatprep.subr.bf16.mxu0 0
      %1710 = vmatpush1.bf16.msra.mxu0 %v1694
      %1711 = vmatprep.subr.bf16.mxu0 0
      %1712 = vmatpush1.bf16.msra.mxu0 %v1693
      %1713 = vmatprep.subr.bf16.mxu0 0
      %1714 = vmatpush2.bf16.msra.mxu0 0
      %1715 = vmatprep.subr.bf16.mxu0 0
      %1716 = vmatpush2.bf16.msra.mxu0 0
      %1717 = vmatprep.subr.bf16.mxu0 0
      %1718 = vmatpush2.bf16.msra.mxu0 0
      %1719 = vmatprep.subr.bf16.mxu0 0
      %1720 = vmatpush2.bf16.msra.mxu0 0
      %1721 = vmatprep.subr.bf16.mxu0 0
      %1722 = vmatpush2.bf16.msra.mxu0 0
      %1723 = vmatprep.subr.bf16.mxu0 0
      %1724 = vmatpush2.bf16.msra.mxu0 0
      %1725 = vmatprep.subr.bf16.mxu0 0
      %1726 = vmatpush2.bf16.msra.mxu0 0
      %1727 = vmatprep.subr.bf16.mxu0 0
      %1728 = vmatpush2.bf16.msra.mxu0 0
      %1729 = vmatprep.mubr.bf16.mxu0 0
      %1730 = vmatmul.mubr.bf16.gmra.mxu0 %v1353
      %v1731 = vpop.f32.mrf.mxu0
      %v1732 = vadd.f32 %v1683, %v1731
      %v1733 = vpop.f32.mrf.mxu0
      %v1734 = vpop.f32.mrf.mxu0
      %v1735 = vadd.f32 %v1683, %v1734
      %v1736 = vpop.f32.mrf.mxu0
      %1737 = vmatprep.mubr.bf16.mxu0 0
      %1738 = vmatmul.mubr.bf16.gmra.mxu0 %v1356
      %v1739 = vpop.f32.mrf.mxu0
      %v1740 = vadd.f32 %v1683, %v1739
      %v1741 = vpop.f32.mrf.mxu0
      %v1742 = vpop.f32.mrf.mxu0
      %v1743 = vadd.f32 %v1683, %v1742
      %v1744 = vpop.f32.mrf.mxu0
      %1745 = vmatprep.mubr.bf16.mxu0 0
      %1746 = vmatmul.mubr.bf16.gmra.mxu0 %v1359
      %v1747 = vpop.f32.mrf.mxu0
      %v1748 = vadd.f32 %v1683, %v1747
      %v1749 = vpop.f32.mrf.mxu0
      %v1750 = vpop.f32.mrf.mxu0
      %v1751 = vadd.f32 %v1683, %v1750
      %v1752 = vpop.f32.mrf.mxu0
      %1753 = vdwg.mxu0
      %v1754 = vpack.c.bf16 %v1735, %v1732
      %v1755 = vpack.c.bf16 %v1743, %v1740
      %v1756 = vpack.c.bf16 %v1751, %v1748
      %s1757 = scalar_lea.vmem %s1010, 16
      %v1758 = vld [vmem:[%s1757] sm:$0xf]
      %v1759 = vld [vmem:[%s1757 + $0x4] sm:$0xf]
      %v1760 = vld [vmem:[%s1757 + $0x8] sm:$0xf]
      %v1761 = vld [vmem:[%s1757 + $0xc] sm:$0xf]
      %s1762 = scalar_lea.vmem %s1014, 1
      %v1763 = vld [vmem:[%s1762] sm:$0x1]
      %v1765 = vlaneseq
      %v1766 = vshrl.u32 %v1765, 7
      %v1767 = vsub.s32 0, %v1766
      %v1768 = vrot.slane %v1763, %v1767
      %v1774 = vunpack.c.l.b16 %v1758
      %v1775 = vunpack.c.l.b16 %v1759
      %v1776 = vunpack.c.l.b16 %v1760
      %v1777 = vunpack.c.l.b16 %v1761
      %v1778 = vpack.c.b16 %v1775, %v1774
      %v1779 = vpack.c.b16 %v1777, %v1776
      %1782 = vmatprep.subr.bf16.mxu0 0
      %1783 = vmatpush1.bf16.msra.mxu0 0
      %1784 = vmatprep.subr.bf16.mxu0 0
      %1785 = vmatpush1.bf16.msra.mxu0 0
      %1786 = vmatprep.subr.bf16.mxu0 0
      %1787 = vmatpush1.bf16.msra.mxu0 0
      %1788 = vmatprep.subr.bf16.mxu0 0
      %1789 = vmatpush1.bf16.msra.mxu0 0
      %1790 = vmatprep.subr.bf16.mxu0 0
      %1791 = vmatpush1.bf16.msra.mxu0 0
      %1792 = vmatprep.subr.bf16.mxu0 0
      %1793 = vmatpush1.bf16.msra.mxu0 0
      %1794 = vmatprep.subr.bf16.mxu0 0
      %1795 = vmatpush1.bf16.msra.mxu0 %v1779
      %1796 = vmatprep.subr.bf16.mxu0 0
      %1797 = vmatpush1.bf16.msra.mxu0 %v1778
      %1798 = vmatprep.subr.bf16.mxu0 0
      %1799 = vmatpush2.bf16.msra.mxu0 0
      %1800 = vmatprep.subr.bf16.mxu0 0
      %1801 = vmatpush2.bf16.msra.mxu0 0
      %1802 = vmatprep.subr.bf16.mxu0 0
      %1803 = vmatpush2.bf16.msra.mxu0 0
      %1804 = vmatprep.subr.bf16.mxu0 0
      %1805 = vmatpush2.bf16.msra.mxu0 0
      %1806 = vmatprep.subr.bf16.mxu0 0
      %1807 = vmatpush2.bf16.msra.mxu0 0
      %1808 = vmatprep.subr.bf16.mxu0 0
      %1809 = vmatpush2.bf16.msra.mxu0 0
      %1810 = vmatprep.subr.bf16.mxu0 0
      %1811 = vmatpush2.bf16.msra.mxu0 0
      %1812 = vmatprep.subr.bf16.mxu0 0
      %1813 = vmatpush2.bf16.msra.mxu0 0
      %1814 = vmatprep.mubr.bf16.mxu0 0
      %1815 = vmatmul.mubr.bf16.gmra.mxu0 %v1353
      %v1816 = vpop.f32.mrf.mxu0
      %v1817 = vadd.f32 %v1768, %v1816
      %v1818 = vpop.f32.mrf.mxu0
      %v1819 = vpop.f32.mrf.mxu0
      %v1820 = vadd.f32 %v1768, %v1819
      %v1821 = vpop.f32.mrf.mxu0
      %1822 = vmatprep.mubr.bf16.mxu0 0
      %1823 = vmatmul.mubr.bf16.gmra.mxu0 %v1356
      %v1824 = vpop.f32.mrf.mxu0
      %v1825 = vadd.f32 %v1768, %v1824
      %v1826 = vpop.f32.mrf.mxu0
      %v1827 = vpop.f32.mrf.mxu0
      %v1828 = vadd.f32 %v1768, %v1827
      %v1829 = vpop.f32.mrf.mxu0
      %1830 = vmatprep.mubr.bf16.mxu0 0
      %1831 = vmatmul.mubr.bf16.gmra.mxu0 %v1359
      %v1832 = vpop.f32.mrf.mxu0
      %v1833 = vadd.f32 %v1768, %v1832
      %v1834 = vpop.f32.mrf.mxu0
      %v1835 = vpop.f32.mrf.mxu0
      %v1836 = vadd.f32 %v1768, %v1835
      %v1837 = vpop.f32.mrf.mxu0
      %1838 = vdwg.mxu0
      %v1839 = vpack.c.bf16 %v1820, %v1817
      %v1840 = vpack.c.bf16 %v1828, %v1825
      %v1841 = vpack.c.bf16 %v1836, %v1833
      %v1842 = vld [vmem:[%s2] sm:$0xff]
      %v1843 = vld [vmem:[%s2 + $0x8] sm:$0xff]
      %v1844 = vld [vmem:[%s2 + $0x10] sm:$0xff]
      %v1845 = vld [vmem:[%s2 + $0x18] sm:$0xff]
      %v1846 = vld [vmem:[%s2 + $0x20] sm:$0xff]
      %v1847 = vld [vmem:[%s2 + $0x28] sm:$0xff]
      %vm1848 = vcmask 130048
      %v1850 = vsel %vm1848, %v1418, 0
      %v1853 = vsel %vm1848, %v1419, 0
      %v1856 = vsel %vm1848, %v1420, 0
      %v1859 = vsel %vm1848, %v1586, 0
      %v1862 = vsel %vm1848, %v1587, 0
      %v1865 = vsel %vm1848, %v1588, 0
      %1867 = vmatprep.subr.bf16.mxu0 0
      %1868 = vmatpush1.bf16.xpose.msra.mxu0 0
      %1869 = vmatprep.subr.bf16.mxu0 0
      %1870 = vmatpush1.bf16.xpose.msra.mxu0 0
      %1871 = vmatprep.subr.bf16.mxu0 0
      %1872 = vmatpush1.bf16.xpose.msra.mxu0 0
      %1873 = vmatprep.subr.bf16.mxu0 0
      %1874 = vmatpush1.bf16.xpose.msra.mxu0 0
      %1875 = vmatprep.subr.bf16.mxu0 0
      %1876 = vmatpush1.bf16.xpose.msra.mxu0 0
      %1877 = vmatprep.subr.bf16.mxu0 0
      %1878 = vmatpush1.bf16.xpose.msra.mxu0 %v1865
      %1879 = vmatprep.subr.bf16.mxu0 0
      %1880 = vmatpush1.bf16.xpose.msra.mxu0 %v1862
      %1881 = vmatprep.subr.bf16.mxu0 0
      %1882 = vmatpush1.bf16.xpose.msra.mxu0 %v1859
      %1883 = vmatprep.subr.bf16.mxu0 0
      %1884 = vmatpush2.bf16.xpose.msra.mxu0 0
      %1885 = vmatprep.subr.bf16.mxu0 0
      %1886 = vmatpush2.bf16.xpose.msra.mxu0 0
      %1887 = vmatprep.subr.bf16.mxu0 0
      %1888 = vmatpush2.bf16.xpose.msra.mxu0 0
      %1889 = vmatprep.subr.bf16.mxu0 0
      %1890 = vmatpush2.bf16.xpose.msra.mxu0 0
      %1891 = vmatprep.subr.bf16.mxu0 0
      %1892 = vmatpush2.bf16.xpose.msra.mxu0 0
      %1893 = vmatprep.subr.bf16.mxu0 0
      %1894 = vmatpush2.bf16.xpose.msra.mxu0 0
      %1895 = vmatprep.subr.bf16.mxu0 0
      %1896 = vmatpush2.bf16.xpose.msra.mxu0 0
      %1897 = vmatprep.subr.bf16.mxu0 0
      %1898 = vmatpush2.bf16.xpose.msra.mxu0 0
      %1899 = vmatprep.mubr.bf16.mxu0 0
      %1900 = vmatmul.mubr.bf16.gmra.mxu0 %v1850
      %v1901 = vpop.f32.mrf.mxu0
      %v1902 = vadd.f32 %v1842, %v1901
      %v1903 = vpop.f32.mrf.mxu0
      %v1904 = vpop.f32.mrf.mxu0
      %v1905 = vadd.f32 %v1843, %v1904
      %v1906 = vpop.f32.mrf.mxu0
      %1907 = vmatprep.mubr.bf16.mxu0 0
      %1908 = vmatmul.mubr.bf16.gmra.mxu0 %v1853
      %v1909 = vpop.f32.mrf.mxu0
      %v1910 = vadd.f32 %v1844, %v1909
      %v1911 = vpop.f32.mrf.mxu0
      %v1912 = vpop.f32.mrf.mxu0
      %v1913 = vadd.f32 %v1845, %v1912
      %v1914 = vpop.f32.mrf.mxu0
      %1915 = vmatprep.mubr.bf16.mxu0 0
      %1916 = vmatmul.mubr.bf16.gmra.mxu0 %v1856
      %v1917 = vpop.f32.mrf.mxu0
      %v1918 = vadd.f32 %v1846, %v1917
      %v1919 = vpop.f32.mrf.mxu0
      %v1920 = vpop.f32.mrf.mxu0
      %v1921 = vadd.f32 %v1847, %v1920
      %v1922 = vpop.f32.mrf.mxu0
      %1923 = vdwg.mxu0
      %v1925 = vsel %vm1848, %v1503, 0
      %v1928 = vsel %vm1848, %v1504, 0
      %v1931 = vsel %vm1848, %v1505, 0
      %v1934 = vsel %vm1848, %v1671, 0
      %v1937 = vsel %vm1848, %v1672, 0
      %v1940 = vsel %vm1848, %v1673, 0
      %1942 = vmatprep.subr.bf16.mxu0 0
      %1943 = vmatpush1.bf16.xpose.msra.mxu0 0
      %1944 = vmatprep.subr.bf16.mxu0 0
      %1945 = vmatpush1.bf16.xpose.msra.mxu0 0
      %1946 = vmatprep.subr.bf16.mxu0 0
      %1947 = vmatpush1.bf16.xpose.msra.mxu0 0
      %1948 = vmatprep.subr.bf16.mxu0 0
      %1949 = vmatpush1.bf16.xpose.msra.mxu0 0
      %1950 = vmatprep.subr.bf16.mxu0 0
      %1951 = vmatpush1.bf16.xpose.msra.mxu0 0
      %1952 = vmatprep.subr.bf16.mxu0 0
      %1953 = vmatpush1.bf16.xpose.msra.mxu0 %v1940
      %1954 = vmatprep.subr.bf16.mxu0 0
      %1955 = vmatpush1.bf16.xpose.msra.mxu0 %v1937
      %1956 = vmatprep.subr.bf16.mxu0 0
      %1957 = vmatpush1.bf16.xpose.msra.mxu0 %v1934
      %1958 = vmatprep.subr.bf16.mxu0 0
      %1959 = vmatpush2.bf16.xpose.msra.mxu0 0
      %1960 = vmatprep.subr.bf16.mxu0 0
      %1961 = vmatpush2.bf16.xpose.msra.mxu0 0
      %1962 = vmatprep.subr.bf16.mxu0 0
      %1963 = vmatpush2.bf16.xpose.msra.mxu0 0
      %1964 = vmatprep.subr.bf16.mxu0 0
      %1965 = vmatpush2.bf16.xpose.msra.mxu0 0
      %1966 = vmatprep.subr.bf16.mxu0 0
      %1967 = vmatpush2.bf16.xpose.msra.mxu0 0
      %1968 = vmatprep.subr.bf16.mxu0 0
      %1969 = vmatpush2.bf16.xpose.msra.mxu0 0
      %1970 = vmatprep.subr.bf16.mxu0 0
      %1971 = vmatpush2.bf16.xpose.msra.mxu0 0
      %1972 = vmatprep.subr.bf16.mxu0 0
      %1973 = vmatpush2.bf16.xpose.msra.mxu0 0
      %1974 = vmatprep.mubr.bf16.mxu0 0
      %1975 = vmatmul.mubr.bf16.gmra.mxu0 %v1925
      %v1976 = vpop.f32.mrf.mxu0
      %v1977 = vadd.f32 %v1842, %v1976
      %v1978 = vpop.f32.mrf.mxu0
      %v1979 = vpop.f32.mrf.mxu0
      %v1980 = vadd.f32 %v1843, %v1979
      %v1981 = vpop.f32.mrf.mxu0
      %1982 = vmatprep.mubr.bf16.mxu0 0
      %1983 = vmatmul.mubr.bf16.gmra.mxu0 %v1928
      %v1984 = vpop.f32.mrf.mxu0
      %v1985 = vadd.f32 %v1844, %v1984
      %v1986 = vpop.f32.mrf.mxu0
      %v1987 = vpop.f32.mrf.mxu0
      %v1988 = vadd.f32 %v1845, %v1987
      %v1989 = vpop.f32.mrf.mxu0
      %1990 = vmatprep.mubr.bf16.mxu0 0
      %1991 = vmatmul.mubr.bf16.gmra.mxu0 %v1931
      %v1992 = vpop.f32.mrf.mxu0
      %v1993 = vadd.f32 %v1846, %v1992
      %v1994 = vpop.f32.mrf.mxu0
      %v1995 = vpop.f32.mrf.mxu0
      %v1996 = vadd.f32 %v1847, %v1995
      %v1997 = vpop.f32.mrf.mxu0
      %1998 = vdwg.mxu0
      %vm1999 = vcmask 392192
      %v2000 = vsel %vm1999, %v1902, -inf
      %2001 = vmax.xlane.f32.xlu0 %v2000
      %v2002 = vpop.xlane.xlu0 %2001
      %v2003 = vsel %vm1999, %v1905, -inf
      %2004 = vmax.xlane.f32.xlu0 %v2003
      %v2005 = vpop.xlane.xlu0 %2004
      %v2006 = vsel %vm1999, %v1910, -inf
      %2007 = vmax.xlane.f32.xlu0 %v2006
      %v2008 = vpop.xlane.xlu0 %2007
      %v2009 = vsel %vm1999, %v1913, -inf
      %2010 = vmax.xlane.f32.xlu0 %v2009
      %v2011 = vpop.xlane.xlu0 %2010
      %v2012 = vsel %vm1999, %v1918, -inf
      %2013 = vmax.xlane.f32.xlu0 %v2012
      %v2014 = vpop.xlane.xlu0 %2013
      %v2015 = vsel %vm1999, %v1921, -inf
      %2016 = vmax.xlane.f32.xlu0 %v2015
      %v2017 = vpop.xlane.xlu0 %2016
      %v2018 = vsel %vm1999, %v1977, -inf
      %2019 = vmax.xlane.f32.xlu0 %v2018
      %v2020 = vpop.xlane.xlu0 %2019
      %v2021 = vsel %vm1999, %v1980, -inf
      %2022 = vmax.xlane.f32.xlu0 %v2021
      %v2023 = vpop.xlane.xlu0 %2022
      %v2024 = vsel %vm1999, %v1985, -inf
      %2025 = vmax.xlane.f32.xlu0 %v2024
      %v2026 = vpop.xlane.xlu0 %2025
      %v2027 = vsel %vm1999, %v1988, -inf
      %2028 = vmax.xlane.f32.xlu0 %v2027
      %v2029 = vpop.xlane.xlu0 %2028
      %v2030 = vsel %vm1999, %v1993, -inf
      %2031 = vmax.xlane.f32.xlu0 %v2030
      %v2032 = vpop.xlane.xlu0 %2031
      %v2033 = vsel %vm1999, %v1996, -inf
      %2034 = vmax.xlane.f32.xlu0 %v2033
      %v2035 = vpop.xlane.xlu0 %2034
      %v2036 = vsub.f32 %v1902, %v2002
      %v2037 = vsub.f32 %v1905, %v2005
      %v2038 = vsub.f32 %v1910, %v2008
      %v2039 = vsub.f32 %v1913, %v2011
      %v2040 = vsub.f32 %v1918, %v2014
      %v2041 = vsub.f32 %v1921, %v2017
      %v2042 = vsub.f32 %v1977, %v2020
      %v2043 = vsub.f32 %v1980, %v2023
      %v2044 = vsub.f32 %v1985, %v2026
      %v2045 = vsub.f32 %v1988, %v2029
      %v2046 = vsub.f32 %v1993, %v2032
      %v2047 = vsub.f32 %v1996, %v2035
      %v2048 = vmul.f32 %v2036, 1.442695
      %v2049 = vpow.pop %v2048
      %v2050 = vmul.f32 %v2037, 1.442695
      %v2051 = vpow.pop %v2050
      %v2052 = vmul.f32 %v2038, 1.442695
      %v2053 = vpow.pop %v2052
      %v2054 = vmul.f32 %v2039, 1.442695
      %v2055 = vpow.pop %v2054
      %v2056 = vmul.f32 %v2040, 1.442695
      %v2057 = vpow.pop %v2056
      %v2058 = vmul.f32 %v2041, 1.442695
      %v2059 = vpow.pop %v2058
      %v2060 = vmul.f32 %v2042, 1.442695
      %v2061 = vpow.pop %v2060
      %v2062 = vmul.f32 %v2043, 1.442695
      %v2063 = vpow.pop %v2062
      %v2064 = vmul.f32 %v2044, 1.442695
      %v2065 = vpow.pop %v2064
      %v2066 = vmul.f32 %v2045, 1.442695
      %v2067 = vpow.pop %v2066
      %v2068 = vmul.f32 %v2046, 1.442695
      %v2069 = vpow.pop %v2068
      %v2070 = vmul.f32 %v2047, 1.442695
      %v2071 = vpow.pop %v2070
      %v2072 = vsel %vm1999, %v2049, 0.0
      %2073 = vadd.xlane.f32.xlu0 %v2072
      %v2074 = vpop.xlane.xlu0 %2073
      %v2075 = vsel %vm1999, %v2051, 0.0
      %2076 = vadd.xlane.f32.xlu0 %v2075
      %v2077 = vpop.xlane.xlu0 %2076
      %v2078 = vsel %vm1999, %v2053, 0.0
      %2079 = vadd.xlane.f32.xlu0 %v2078
      %v2080 = vpop.xlane.xlu0 %2079
      %v2081 = vsel %vm1999, %v2055, 0.0
      %2082 = vadd.xlane.f32.xlu0 %v2081
      %v2083 = vpop.xlane.xlu0 %2082
      %v2084 = vsel %vm1999, %v2057, 0.0
      %2085 = vadd.xlane.f32.xlu0 %v2084
      %v2086 = vpop.xlane.xlu0 %2085
      %v2087 = vsel %vm1999, %v2059, 0.0
      %2088 = vadd.xlane.f32.xlu0 %v2087
      %v2089 = vpop.xlane.xlu0 %2088
      %v2090 = vsel %vm1999, %v2061, 0.0
      %2091 = vadd.xlane.f32.xlu0 %v2090
      %v2092 = vpop.xlane.xlu0 %2091
      %v2093 = vsel %vm1999, %v2063, 0.0
      %2094 = vadd.xlane.f32.xlu0 %v2093
      %v2095 = vpop.xlane.xlu0 %2094
      %v2096 = vsel %vm1999, %v2065, 0.0
      %2097 = vadd.xlane.f32.xlu0 %v2096
      %v2098 = vpop.xlane.xlu0 %2097
      %v2099 = vsel %vm1999, %v2067, 0.0
      %2100 = vadd.xlane.f32.xlu0 %v2099
      %v2101 = vpop.xlane.xlu0 %2100
      %v2102 = vsel %vm1999, %v2069, 0.0
      %2103 = vadd.xlane.f32.xlu0 %v2102
      %v2104 = vpop.xlane.xlu0 %2103
      %v2105 = vsel %vm1999, %v2071, 0.0
      %2106 = vadd.xlane.f32.xlu0 %v2105
      %v2107 = vpop.xlane.xlu0 %2106
      %v2108 = vrcp.pop %v2074
      %v2109 = vrcp.pop %v2077
      %v2110 = vrcp.pop %v2080
      %v2111 = vrcp.pop %v2083
      %v2112 = vrcp.pop %v2086
      %v2113 = vrcp.pop %v2089
      %v2114 = vrcp.pop %v2092
      %v2115 = vrcp.pop %v2095
      %v2116 = vrcp.pop %v2098
      %v2117 = vrcp.pop %v2101
      %v2118 = vrcp.pop %v2104
      %v2119 = vrcp.pop %v2107
      %v2120 = vmul.f32 %v2049, %v2108
      %v2121 = vmul.f32 %v2051, %v2109
      %v2122 = vmul.f32 %v2053, %v2110
      %v2123 = vmul.f32 %v2055, %v2111
      %v2124 = vmul.f32 %v2057, %v2112
      %v2125 = vmul.f32 %v2059, %v2113
      %v2126 = vmul.f32 %v2061, %v2114
      %v2127 = vmul.f32 %v2063, %v2115
      %v2128 = vmul.f32 %v2065, %v2116
      %v2129 = vmul.f32 %v2067, %v2117
      %v2130 = vmul.f32 %v2069, %v2118
      %v2131 = vmul.f32 %v2071, %v2119
      %v2132 = vpack.c.bf16 %v2121, %v2120
      %v2133 = vpack.c.bf16 %v2123, %v2122
      %v2134 = vpack.c.bf16 %v2125, %v2124
      %v2135 = vpack.c.bf16 %v2127, %v2126
      %v2136 = vpack.c.bf16 %v2129, %v2128
      %v2137 = vpack.c.bf16 %v2131, %v2130
      %v2139 = vsel %vm1999, %v2132, 0
      %v2142 = vsel %vm1999, %v2133, 0
      %v2145 = vsel %vm1999, %v2134, 0
      %2147 = vmatprep.subr.bf16.mxu0 0
      %2148 = vmatpush1.bf16.msra.mxu0 0
      %2149 = vmatprep.subr.bf16.mxu0 0
      %2150 = vmatpush1.bf16.msra.mxu0 0
      %2151 = vmatprep.subr.bf16.mxu0 0
      %2152 = vmatpush1.bf16.msra.mxu0 0
      %2153 = vmatprep.subr.bf16.mxu0 0
      %2154 = vmatpush1.bf16.msra.mxu0 0
      %2155 = vmatprep.subr.bf16.mxu0 0
      %2156 = vmatpush1.bf16.msra.mxu0 0
      %2157 = vmatprep.subr.bf16.mxu0 0
      %2158 = vmatpush1.bf16.msra.mxu0 %v1756
      %2159 = vmatprep.subr.bf16.mxu0 0
      %2160 = vmatpush1.bf16.msra.mxu0 %v1755
      %2161 = vmatprep.subr.bf16.mxu0 0
      %2162 = vmatpush1.bf16.msra.mxu0 %v1754
      %2163 = vmatprep.subr.bf16.mxu0 0
      %2164 = vmatpush2.bf16.msra.mxu0 0
      %2165 = vmatprep.subr.bf16.mxu0 0
      %2166 = vmatpush2.bf16.msra.mxu0 0
      %2167 = vmatprep.subr.bf16.mxu0 0
      %2168 = vmatpush2.bf16.msra.mxu0 0
      %2169 = vmatprep.subr.bf16.mxu0 0
      %2170 = vmatpush2.bf16.msra.mxu0 0
      %2171 = vmatprep.subr.bf16.mxu0 0
      %2172 = vmatpush2.bf16.msra.mxu0 0
      %2173 = vmatprep.subr.bf16.mxu0 0
      %2174 = vmatpush2.bf16.msra.mxu0 0
      %2175 = vmatprep.subr.bf16.mxu0 0
      %2176 = vmatpush2.bf16.msra.mxu0 0
      %2177 = vmatprep.subr.bf16.mxu0 0
      %2178 = vmatpush2.bf16.msra.mxu0 0
      %2179 = vmatprep.mubr.bf16.mxu0 0
      %2180 = vmatmul.mubr.bf16.gmra.mxu0 %v2139
      %v2181 = vpop.f32.mrf.mxu0
      %v2182 = vadd.f32 0.0, %v2181
      %v2183 = vpop.f32.mrf.mxu0
      %v2184 = vpop.f32.mrf.mxu0
      %v2185 = vadd.f32 0.0, %v2184
      %v2186 = vpop.f32.mrf.mxu0
      %2187 = vmatprep.mubr.bf16.mxu0 0
      %2188 = vmatmul.mubr.bf16.gmra.mxu0 %v2142
      %v2189 = vpop.f32.mrf.mxu0
      %v2190 = vadd.f32 0.0, %v2189
      %v2191 = vpop.f32.mrf.mxu0
      %v2192 = vpop.f32.mrf.mxu0
      %v2193 = vadd.f32 0.0, %v2192
      %v2194 = vpop.f32.mrf.mxu0
      %2195 = vmatprep.mubr.bf16.mxu0 0
      %2196 = vmatmul.mubr.bf16.gmra.mxu0 %v2145
      %v2197 = vpop.f32.mrf.mxu0
      %v2198 = vadd.f32 0.0, %v2197
      %v2199 = vpop.f32.mrf.mxu0
      %v2200 = vpop.f32.mrf.mxu0
      %v2201 = vadd.f32 0.0, %v2200
      %v2202 = vpop.f32.mrf.mxu0
      %2203 = vdwg.mxu0
      %v2205 = vsel %vm1999, %v2135, 0
      %v2208 = vsel %vm1999, %v2136, 0
      %v2211 = vsel %vm1999, %v2137, 0
      %2213 = vmatprep.subr.bf16.mxu0 0
      %2214 = vmatpush1.bf16.msra.mxu0 0
      %2215 = vmatprep.subr.bf16.mxu0 0
      %2216 = vmatpush1.bf16.msra.mxu0 0
      %2217 = vmatprep.subr.bf16.mxu0 0
      %2218 = vmatpush1.bf16.msra.mxu0 0
      %2219 = vmatprep.subr.bf16.mxu0 0
      %2220 = vmatpush1.bf16.msra.mxu0 0
      %2221 = vmatprep.subr.bf16.mxu0 0
      %2222 = vmatpush1.bf16.msra.mxu0 0
      %2223 = vmatprep.subr.bf16.mxu0 0
      %2224 = vmatpush1.bf16.msra.mxu0 %v1841
      %2225 = vmatprep.subr.bf16.mxu0 0
      %2226 = vmatpush1.bf16.msra.mxu0 %v1840
      %2227 = vmatprep.subr.bf16.mxu0 0
      %2228 = vmatpush1.bf16.msra.mxu0 %v1839
      %2229 = vmatprep.subr.bf16.mxu0 0
      %2230 = vmatpush2.bf16.msra.mxu0 0
      %2231 = vmatprep.subr.bf16.mxu0 0
      %2232 = vmatpush2.bf16.msra.mxu0 0
      %2233 = vmatprep.subr.bf16.mxu0 0
      %2234 = vmatpush2.bf16.msra.mxu0 0
      %2235 = vmatprep.subr.bf16.mxu0 0
      %2236 = vmatpush2.bf16.msra.mxu0 0
      %2237 = vmatprep.subr.bf16.mxu0 0
      %2238 = vmatpush2.bf16.msra.mxu0 0
      %2239 = vmatprep.subr.bf16.mxu0 0
      %2240 = vmatpush2.bf16.msra.mxu0 0
      %2241 = vmatprep.subr.bf16.mxu0 0
      %2242 = vmatpush2.bf16.msra.mxu0 0
      %2243 = vmatprep.subr.bf16.mxu0 0
      %2244 = vmatpush2.bf16.msra.mxu0 0
      %2245 = vmatprep.mubr.bf16.mxu0 0
      %2246 = vmatmul.mubr.bf16.gmra.mxu0 %v2205
      %v2247 = vpop.f32.mrf.mxu0
      %v2248 = vadd.f32 0.0, %v2247
      %v2249 = vpop.f32.mrf.mxu0
      %v2250 = vpop.f32.mrf.mxu0
      %v2251 = vadd.f32 0.0, %v2250
      %v2252 = vpop.f32.mrf.mxu0
      %2253 = vmatprep.mubr.bf16.mxu0 0
      %2254 = vmatmul.mubr.bf16.gmra.mxu0 %v2208
      %v2255 = vpop.f32.mrf.mxu0
      %v2256 = vadd.f32 0.0, %v2255
      %v2257 = vpop.f32.mrf.mxu0
      %v2258 = vpop.f32.mrf.mxu0
      %v2259 = vadd.f32 0.0, %v2258
      %v2260 = vpop.f32.mrf.mxu0
      %2261 = vmatprep.mubr.bf16.mxu0 0
      %2262 = vmatmul.mubr.bf16.gmra.mxu0 %v2211
      %v2263 = vpop.f32.mrf.mxu0
      %v2264 = vadd.f32 0.0, %v2263
      %v2265 = vpop.f32.mrf.mxu0
      %v2266 = vpop.f32.mrf.mxu0
      %v2267 = vadd.f32 0.0, %v2266
      %v2268 = vpop.f32.mrf.mxu0
      %2269 = vdwg.mxu0
      %v2270 = vld [vmem:[%s1022] sm:$0x1]
      %v2271 = vpack.c.bf16 %v2185, %v2182
      %v2272 = vpack.c.bf16 %v2193, %v2190
      %v2273 = vpack.c.bf16 %v2201, %v2198
      %v2274 = vld [vmem:[%s1019] sm:$0xf]
      %v2275 = vld [vmem:[%s1019 + $0x4] sm:$0xf]
      %v2278 = vunpack.c.l.b16 %v2274
      %v2279 = vunpack.c.l.b16 %v2275
      %v2280 = vpack.c.b16 %v2279, %v2278
      %v2283 = vsel %vm1848, %v2271, 0
      %v2286 = vsel %vm1848, %v2272, 0
      %v2289 = vsel %vm1848, %v2273, 0
      %2291 = vmatprep.subr.bf16.mxu0 0
      %2292 = vmatpush1.bf16.msra.mxu0 0
      %2293 = vmatprep.subr.bf16.mxu0 0
      %2294 = vmatpush1.bf16.msra.mxu0 0
      %2295 = vmatprep.subr.bf16.mxu0 0
      %2296 = vmatpush1.bf16.msra.mxu0 0
      %2297 = vmatprep.subr.bf16.mxu0 0
      %2298 = vmatpush1.bf16.msra.mxu0 0
      %2299 = vmatprep.subr.bf16.mxu0 0
      %2300 = vmatpush1.bf16.msra.mxu0 0
      %2301 = vmatprep.subr.bf16.mxu0 0
      %2302 = vmatpush1.bf16.msra.mxu0 0
      %2303 = vmatprep.subr.bf16.mxu0 0
      %2304 = vmatpush1.bf16.msra.mxu0 0
      %2305 = vmatprep.subr.bf16.mxu0 0
      %2306 = vmatpush1.bf16.msra.mxu0 %v2280
      %2307 = vmatprep.subr.bf16.mxu0 0
      %2308 = vmatpush2.bf16.msra.mxu0 0
      %2309 = vmatprep.subr.bf16.mxu0 0
      %2310 = vmatpush2.bf16.msra.mxu0 0
      %2311 = vmatprep.subr.bf16.mxu0 0
      %2312 = vmatpush2.bf16.msra.mxu0 0
      %2313 = vmatprep.subr.bf16.mxu0 0
      %2314 = vmatpush2.bf16.msra.mxu0 0
      %2315 = vmatprep.subr.bf16.mxu0 0
      %2316 = vmatpush2.bf16.msra.mxu0 0
      %2317 = vmatprep.subr.bf16.mxu0 0
      %2318 = vmatpush2.bf16.msra.mxu0 0
      %2319 = vmatprep.subr.bf16.mxu0 0
      %2320 = vmatpush2.bf16.msra.mxu0 0
      %2321 = vmatprep.subr.bf16.mxu0 0
      %2322 = vmatpush2.bf16.msra.mxu0 0
      %2323 = vmatprep.mubr.bf16.mxu0 0
      %2324 = vmatmul.mubr.bf16.gmra.mxu0 %v2283
      %v2325 = vpop.f32.mrf.mxu0
      %v2326 = vadd.f32 0.0, %v2325
      %v2327 = vpop.f32.mrf.mxu0
      %v2328 = vpop.f32.mrf.mxu0
      %v2329 = vadd.f32 0.0, %v2328
      %v2330 = vpop.f32.mrf.mxu0
      %2331 = vmatprep.mubr.bf16.mxu0 0
      %2332 = vmatmul.mubr.bf16.gmra.mxu0 %v2286
      %v2333 = vpop.f32.mrf.mxu0
      %v2334 = vadd.f32 0.0, %v2333
      %v2335 = vpop.f32.mrf.mxu0
      %v2336 = vpop.f32.mrf.mxu0
      %v2337 = vadd.f32 0.0, %v2336
      %v2338 = vpop.f32.mrf.mxu0
      %2339 = vmatprep.mubr.bf16.mxu0 0
      %2340 = vmatmul.mubr.bf16.gmra.mxu0 %v2289
      %v2341 = vpop.f32.mrf.mxu0
      %v2342 = vadd.f32 0.0, %v2341
      %v2343 = vpop.f32.mrf.mxu0
      %v2344 = vpop.f32.mrf.mxu0
      %v2345 = vadd.f32 0.0, %v2344
      %v2346 = vpop.f32.mrf.mxu0
      %2347 = vdwg.mxu0
      %v2349 = vlaneseq
      %v2350 = vshrl.u32 %v2349, 7
      %v2351 = vsub.s32 0, %v2350
      %v2352 = vrot.slane %v2270, %v2351
      %v2354 = vadd.f32 %v2352, %v2326
      %v2355 = vadd.f32 %v2352, %v2329
      %v2356 = vadd.f32 %v2352, %v2334
      %v2357 = vadd.f32 %v2352, %v2337
      %v2358 = vadd.f32 %v2352, %v2342
      %v2359 = vadd.f32 %v2352, %v2345
      %v2360 = vpack.c.bf16 %v2251, %v2248
      %v2361 = vpack.c.bf16 %v2259, %v2256
      %v2362 = vpack.c.bf16 %v2267, %v2264
      %s2363 = scalar_lea.vmem %s1019, 8
      %v2364 = vld [vmem:[%s2363] sm:$0xf]
      %v2365 = vld [vmem:[%s2363 + $0x4] sm:$0xf]
      %v2368 = vunpack.c.l.b16 %v2364
      %v2369 = vunpack.c.l.b16 %v2365
      %v2370 = vpack.c.b16 %v2369, %v2368
      %v2373 = vsel %vm1848, %v2360, 0
      %v2376 = vsel %vm1848, %v2361, 0
      %v2379 = vsel %vm1848, %v2362, 0
      %2381 = vmatprep.subr.bf16.mxu0 0
      %2382 = vmatpush1.bf16.msra.mxu0 0
      %2383 = vmatprep.subr.bf16.mxu0 0
      %2384 = vmatpush1.bf16.msra.mxu0 0
      %2385 = vmatprep.subr.bf16.mxu0 0
      %2386 = vmatpush1.bf16.msra.mxu0 0
      %2387 = vmatprep.subr.bf16.mxu0 0
      %2388 = vmatpush1.bf16.msra.mxu0 0
      %2389 = vmatprep.subr.bf16.mxu0 0
      %2390 = vmatpush1.bf16.msra.mxu0 0
      %2391 = vmatprep.subr.bf16.mxu0 0
      %2392 = vmatpush1.bf16.msra.mxu0 0
      %2393 = vmatprep.subr.bf16.mxu0 0
      %2394 = vmatpush1.bf16.msra.mxu0 0
      %2395 = vmatprep.subr.bf16.mxu0 0
      %2396 = vmatpush1.bf16.msra.mxu0 %v2370
      %2397 = vmatprep.subr.bf16.mxu0 0
      %2398 = vmatpush2.bf16.msra.mxu0 0
      %2399 = vmatprep.subr.bf16.mxu0 0
      %2400 = vmatpush2.bf16.msra.mxu0 0
      %2401 = vmatprep.subr.bf16.mxu0 0
      %2402 = vmatpush2.bf16.msra.mxu0 0
      %2403 = vmatprep.subr.bf16.mxu0 0
      %2404 = vmatpush2.bf16.msra.mxu0 0
      %2405 = vmatprep.subr.bf16.mxu0 0
      %2406 = vmatpush2.bf16.msra.mxu0 0
      %2407 = vmatprep.subr.bf16.mxu0 0
      %2408 = vmatpush2.bf16.msra.mxu0 0
      %2409 = vmatprep.subr.bf16.mxu0 0
      %2410 = vmatpush2.bf16.msra.mxu0 0
      %2411 = vmatprep.subr.bf16.mxu0 0
      %2412 = vmatpush2.bf16.msra.mxu0 0
      %2413 = vmatprep.mubr.bf16.mxu0 0
      %2414 = vmatmul.mubr.bf16.gmra.mxu0 %v2373
      %v2415 = vpop.f32.mrf.mxu0
      %v2416 = vadd.f32 0.0, %v2415
      %v2417 = vpop.f32.mrf.mxu0
      %v2418 = vpop.f32.mrf.mxu0
      %v2419 = vadd.f32 0.0, %v2418
      %v2420 = vpop.f32.mrf.mxu0
      %2421 = vmatprep.mubr.bf16.mxu0 0
      %2422 = vmatmul.mubr.bf16.gmra.mxu0 %v2376
      %v2423 = vpop.f32.mrf.mxu0
      %v2424 = vadd.f32 0.0, %v2423
      %v2425 = vpop.f32.mrf.mxu0
      %v2426 = vpop.f32.mrf.mxu0
      %v2427 = vadd.f32 0.0, %v2426
      %v2428 = vpop.f32.mrf.mxu0
      %2429 = vmatprep.mubr.bf16.mxu0 0
      %2430 = vmatmul.mubr.bf16.gmra.mxu0 %v2379
      %v2431 = vpop.f32.mrf.mxu0
      %v2432 = vadd.f32 0.0, %v2431
      %v2433 = vpop.f32.mrf.mxu0
      %v2434 = vpop.f32.mrf.mxu0
      %v2435 = vadd.f32 0.0, %v2434
      %v2436 = vpop.f32.mrf.mxu0
      %2437 = vdwg.mxu0
      %v2438 = vadd.f32 %v2354, %v2416
      %v2439 = vadd.f32 %v2355, %v2419
      %v2440 = vadd.f32 %v2356, %v2424
      %v2441 = vadd.f32 %v2357, %v2427
      %v2442 = vadd.f32 %v2358, %v2432
      %v2443 = vadd.f32 %v2359, %v2435
      %v2444 = vadd.f32 %v1214, %v2438
      %v2445 = vadd.f32 %v1215, %v2439
      %v2446 = vadd.f32 %v1216, %v2440
      %v2447 = vadd.f32 %v1217, %v2441
      %v2448 = vadd.f32 %v1218, %v2442
      %v2449 = vadd.f32 %v1219, %v2443
      %v2450 = vld [vmem:[%s1025] sm:$0x1]
      %v2451 = vld [vmem:[%s1028] sm:$0x1]
      %v2452 = vsel %vm1222, %v2444, 0.0
      %2453 = vadd.xlane.f32.xlu0 %v2452
      %v2454 = vpop.xlane.xlu0 %2453
      %v2455 = vsel %vm1222, %v2445, 0.0
      %2456 = vadd.xlane.f32.xlu0 %v2455
      %v2457 = vpop.xlane.xlu0 %2456
      %v2458 = vsel %vm1222, %v2446, 0.0
      %2459 = vadd.xlane.f32.xlu0 %v2458
      %v2460 = vpop.xlane.xlu0 %2459
      %v2461 = vsel %vm1222, %v2447, 0.0
      %2462 = vadd.xlane.f32.xlu0 %v2461
      %v2463 = vpop.xlane.xlu0 %2462
      %v2464 = vsel %vm1222, %v2448, 0.0
      %2465 = vadd.xlane.f32.xlu0 %v2464
      %v2466 = vpop.xlane.xlu0 %2465
      %v2467 = vsel %vm1222, %v2449, 0.0
      %2468 = vadd.xlane.f32.xlu0 %v2467
      %v2469 = vpop.xlane.xlu0 %2468
      %v2470 = vmul.f32 %v2454, %v1241
      %v2471 = vmul.f32 %v2457, %v1241
      %v2472 = vmul.f32 %v2460, %v1241
      %v2473 = vmul.f32 %v2463, %v1241
      %v2474 = vmul.f32 %v2466, %v1241
      %v2475 = vmul.f32 %v2469, %v1241
      %v2476 = vsub.f32 %v2444, %v2470
      %v2477 = vsub.f32 %v2445, %v2471
      %v2478 = vsub.f32 %v2446, %v2472
      %v2479 = vsub.f32 %v2447, %v2473
      %v2480 = vsub.f32 %v2448, %v2474
      %v2481 = vsub.f32 %v2449, %v2475
      %v2482 = vmul.f32 %v2476, %v2476
      %v2483 = vmul.f32 %v2477, %v2477
      %v2484 = vmul.f32 %v2478, %v2478
      %v2485 = vmul.f32 %v2479, %v2479
      %v2486 = vmul.f32 %v2480, %v2480
      %v2487 = vmul.f32 %v2481, %v2481
      %v2488 = vsel %vm1222, %v2482, 0.0
      %2489 = vadd.xlane.f32.xlu0 %v2488
      %v2490 = vpop.xlane.xlu0 %2489
      %v2491 = vsel %vm1222, %v2483, 0.0
      %2492 = vadd.xlane.f32.xlu0 %v2491
      %v2493 = vpop.xlane.xlu0 %2492
      %v2494 = vsel %vm1222, %v2484, 0.0
      %2495 = vadd.xlane.f32.xlu0 %v2494
      %v2496 = vpop.xlane.xlu0 %2495
      %v2497 = vsel %vm1222, %v2485, 0.0
      %2498 = vadd.xlane.f32.xlu0 %v2497
      %v2499 = vpop.xlane.xlu0 %2498
      %v2500 = vsel %vm1222, %v2486, 0.0
      %2501 = vadd.xlane.f32.xlu0 %v2500
      %v2502 = vpop.xlane.xlu0 %2501
      %v2503 = vsel %vm1222, %v2487, 0.0
      %2504 = vadd.xlane.f32.xlu0 %v2503
      %v2505 = vpop.xlane.xlu0 %2504
      %v2506 = vmul.f32 %v2490, %v1241
      %v2507 = vmul.f32 %v2493, %v1241
      %v2508 = vmul.f32 %v2496, %v1241
      %v2509 = vmul.f32 %v2499, %v1241
      %v2510 = vmul.f32 %v2502, %v1241
      %v2511 = vmul.f32 %v2505, %v1241
      %v2512 = vadd.f32 %v2506, 1e-05
      %v2513 = vadd.f32 %v2507, 1e-05
      %v2514 = vadd.f32 %v2508, 1e-05
      %v2515 = vadd.f32 %v2509, 1e-05
      %v2516 = vadd.f32 %v2510, 1e-05
      %v2517 = vadd.f32 %v2511, 1e-05
      %v2518 = vrsqrt.pop %v2512
      %v2519 = vrsqrt.pop %v2513
      %v2520 = vrsqrt.pop %v2514
      %v2521 = vrsqrt.pop %v2515
      %v2522 = vrsqrt.pop %v2516
      %v2523 = vrsqrt.pop %v2517
      %v2524 = vmul.f32 %v2476, %v2518
      %v2525 = vmul.f32 %v2477, %v2519
      %v2526 = vmul.f32 %v2478, %v2520
      %v2527 = vmul.f32 %v2479, %v2521
      %v2528 = vmul.f32 %v2480, %v2522
      %v2529 = vmul.f32 %v2481, %v2523
      %v2531 = vlaneseq
      %v2532 = vshrl.u32 %v2531, 7
      %v2533 = vsub.s32 0, %v2532
      %v2534 = vrot.slane %v2450, %v2533
      %v2536 = vmul.f32 %v2524, %v2534
      %v2537 = vmul.f32 %v2525, %v2534
      %v2538 = vmul.f32 %v2526, %v2534
      %v2539 = vmul.f32 %v2527, %v2534
      %v2540 = vmul.f32 %v2528, %v2534
      %v2541 = vmul.f32 %v2529, %v2534
      %v2543 = vlaneseq
      %v2544 = vshrl.u32 %v2543, 7
      %v2545 = vsub.s32 0, %v2544
      %v2546 = vrot.slane %v2451, %v2545
      %v2548 = vadd.f32 %v2536, %v2546
      %v2549 = vadd.f32 %v2537, %v2546
      %v2550 = vadd.f32 %v2538, %v2546
      %v2551 = vadd.f32 %v2539, %v2546
      %v2552 = vadd.f32 %v2540, %v2546
      %v2553 = vadd.f32 %v2541, %v2546
      %v2554 = vpack.c.bf16 %v2549, %v2548
      %v2555 = vpack.c.bf16 %v2551, %v2550
      %v2556 = vpack.c.bf16 %v2553, %v2552
      %v2557 = vld [vmem:[%s1033] sm:$0xf]
      %v2558 = vld [vmem:[%s1033 + $0x4] sm:$0xf]
      %v2559 = vld [vmem:[%s1033 + $0x8] sm:$0xf]
      %v2560 = vld [vmem:[%s1033 + $0xc] sm:$0xf]
      %v2561 = vld [vmem:[%s1036] sm:$0x1]
      %v2563 = vlaneseq
      %v2564 = vshrl.u32 %v2563, 7
      %v2565 = vsub.s32 0, %v2564
      %v2566 = vrot.slane %v2561, %v2565
      %v2572 = vunpack.c.l.b16 %v2557
      %v2573 = vunpack.c.l.b16 %v2558
      %v2574 = vunpack.c.l.b16 %v2559
      %v2575 = vunpack.c.l.b16 %v2560
      %v2576 = vpack.c.b16 %v2573, %v2572
      %v2577 = vpack.c.b16 %v2575, %v2574
      %v2581 = vsel %vm1222, %v2554, 0
      %v2584 = vsel %vm1222, %v2555, 0
      %v2587 = vsel %vm1222, %v2556, 0
      %2589 = vmatprep.subr.bf16.mxu0 0
      %2590 = vmatpush1.bf16.msra.mxu0 0
      %2591 = vmatprep.subr.bf16.mxu0 0
      %2592 = vmatpush1.bf16.msra.mxu0 0
      %2593 = vmatprep.subr.bf16.mxu0 0
      %2594 = vmatpush1.bf16.msra.mxu0 0
      %2595 = vmatprep.subr.bf16.mxu0 0
      %2596 = vmatpush1.bf16.msra.mxu0 0
      %2597 = vmatprep.subr.bf16.mxu0 0
      %2598 = vmatpush1.bf16.msra.mxu0 0
      %2599 = vmatprep.subr.bf16.mxu0 0
      %2600 = vmatpush1.bf16.msra.mxu0 0
      %2601 = vmatprep.subr.bf16.mxu0 0
      %2602 = vmatpush1.bf16.msra.mxu0 %v2577
      %2603 = vmatprep.subr.bf16.mxu0 0
      %2604 = vmatpush1.bf16.msra.mxu0 %v2576
      %2605 = vmatprep.subr.bf16.mxu0 0
      %2606 = vmatpush2.bf16.msra.mxu0 0
      %2607 = vmatprep.subr.bf16.mxu0 0
      %2608 = vmatpush2.bf16.msra.mxu0 0
      %2609 = vmatprep.subr.bf16.mxu0 0
      %2610 = vmatpush2.bf16.msra.mxu0 0
      %2611 = vmatprep.subr.bf16.mxu0 0
      %2612 = vmatpush2.bf16.msra.mxu0 0
      %2613 = vmatprep.subr.bf16.mxu0 0
      %2614 = vmatpush2.bf16.msra.mxu0 0
      %2615 = vmatprep.subr.bf16.mxu0 0
      %2616 = vmatpush2.bf16.msra.mxu0 0
      %2617 = vmatprep.subr.bf16.mxu0 0
      %2618 = vmatpush2.bf16.msra.mxu0 0
      %2619 = vmatprep.subr.bf16.mxu0 0
      %2620 = vmatpush2.bf16.msra.mxu0 0
      %2621 = vmatprep.mubr.bf16.mxu0 0
      %2622 = vmatmul.mubr.bf16.gmra.mxu0 %v2581
      %v2623 = vpop.f32.mrf.mxu0
      %v2624 = vadd.f32 %v2566, %v2623
      %v2625 = vpop.f32.mrf.mxu0
      %v2626 = vpop.f32.mrf.mxu0
      %v2627 = vadd.f32 %v2566, %v2626
      %v2628 = vpop.f32.mrf.mxu0
      %2629 = vmatprep.mubr.bf16.mxu0 0
      %2630 = vmatmul.mubr.bf16.gmra.mxu0 %v2584
      %v2631 = vpop.f32.mrf.mxu0
      %v2632 = vadd.f32 %v2566, %v2631
      %v2633 = vpop.f32.mrf.mxu0
      %v2634 = vpop.f32.mrf.mxu0
      %v2635 = vadd.f32 %v2566, %v2634
      %v2636 = vpop.f32.mrf.mxu0
      %2637 = vmatprep.mubr.bf16.mxu0 0
      %2638 = vmatmul.mubr.bf16.gmra.mxu0 %v2587
      %v2639 = vpop.f32.mrf.mxu0
      %v2640 = vadd.f32 %v2566, %v2639
      %v2641 = vpop.f32.mrf.mxu0
      %v2642 = vpop.f32.mrf.mxu0
      %v2643 = vadd.f32 %v2566, %v2642
      %v2644 = vpop.f32.mrf.mxu0
      %2645 = vdwg.mxu0
      %v2646 = vmul.f32 %v2624, %v2624
      %v2647 = vmul.f32 %v2627, %v2627
      %v2648 = vmul.f32 %v2632, %v2632
      %v2649 = vmul.f32 %v2635, %v2635
      %v2650 = vmul.f32 %v2640, %v2640
      %v2651 = vmul.f32 %v2643, %v2643
      %v2652 = vmul.f32 %v2624, %v2646
      %v2653 = vmul.f32 %v2627, %v2647
      %v2654 = vmul.f32 %v2632, %v2648
      %v2655 = vmul.f32 %v2635, %v2649
      %v2656 = vmul.f32 %v2640, %v2650
      %v2657 = vmul.f32 %v2643, %v2651
      %v2658 = vmul.f32 %v2652, 0.044715
      %v2659 = vmul.f32 %v2653, 0.044715
      %v2660 = vmul.f32 %v2654, 0.044715
      %v2661 = vmul.f32 %v2655, 0.044715
      %v2662 = vmul.f32 %v2656, 0.044715
      %v2663 = vmul.f32 %v2657, 0.044715
      %v2664 = vadd.f32 %v2624, %v2658
      %v2665 = vadd.f32 %v2627, %v2659
      %v2666 = vadd.f32 %v2632, %v2660
      %v2667 = vadd.f32 %v2635, %v2661
      %v2668 = vadd.f32 %v2640, %v2662
      %v2669 = vadd.f32 %v2643, %v2663
      %v2670 = vmul.f32 %v2664, 0.7978846
      %v2671 = vmul.f32 %v2665, 0.7978846
      %v2672 = vmul.f32 %v2666, 0.7978846
      %v2673 = vmul.f32 %v2667, 0.7978846
      %v2674 = vmul.f32 %v2668, 0.7978846
      %v2675 = vmul.f32 %v2669, 0.7978846
      %v2676 = vtanh.pop %v2670
      %v2677 = vtanh.pop %v2671
      %v2678 = vtanh.pop %v2672
      %v2679 = vtanh.pop %v2673
      %v2680 = vtanh.pop %v2674
      %v2681 = vtanh.pop %v2675
      %v2682 = vadd.f32 %v2676, 1.0
      %v2683 = vadd.f32 %v2677, 1.0
      %v2684 = vadd.f32 %v2678, 1.0
      %v2685 = vadd.f32 %v2679, 1.0
      %v2686 = vadd.f32 %v2680, 1.0
      %v2687 = vadd.f32 %v2681, 1.0
      %v2688 = vmul.f32 %v2682, 0.5
      %v2689 = vmul.f32 %v2683, 0.5
      %v2690 = vmul.f32 %v2684, 0.5
      %v2691 = vmul.f32 %v2685, 0.5
      %v2692 = vmul.f32 %v2686, 0.5
      %v2693 = vmul.f32 %v2687, 0.5
      %v2694 = vmul.f32 %v2624, %v2688
      %v2695 = vmul.f32 %v2627, %v2689
      %v2696 = vmul.f32 %v2632, %v2690
      %v2697 = vmul.f32 %v2635, %v2691
      %v2698 = vmul.f32 %v2640, %v2692
      %v2699 = vmul.f32 %v2643, %v2693
      %v2700 = vpack.c.bf16 %v2695, %v2694
      %v2701 = vpack.c.bf16 %v2697, %v2696
      %v2702 = vpack.c.bf16 %v2699, %v2698
      %v2703 = vld [vmem:[%s1041] sm:$0xf]
      %v2704 = vld [vmem:[%s1041 + $0x4] sm:$0xf]
      %v2705 = vld [vmem:[%s1041 + $0x8] sm:$0xf]
      %v2706 = vld [vmem:[%s1041 + $0xc] sm:$0xf]
      %v2707 = vld [vmem:[%s1041 + $0x10] sm:$0xf]
      %v2708 = vld [vmem:[%s1041 + $0x14] sm:$0xf]
      %v2709 = vld [vmem:[%s1041 + $0x18] sm:$0xf]
      %v2710 = vld [vmem:[%s1041 + $0x1c] sm:$0xf]
      %v2711 = vld [vmem:[%s1041 + $0x20] sm:$0xf]
      %v2712 = vld [vmem:[%s1041 + $0x24] sm:$0xf]
      %v2713 = vld [vmem:[%s1041 + $0x28] sm:$0xf]
      %v2714 = vld [vmem:[%s1041 + $0x2c] sm:$0xf]
      %v2715 = vld [vmem:[%s1041 + $0x30] sm:$0xf]
      %v2716 = vld [vmem:[%s1041 + $0x34] sm:$0xf]
      %v2717 = vld [vmem:[%s1041 + $0x38] sm:$0xf]
      %v2718 = vld [vmem:[%s1041 + $0x3c] sm:$0xf]
      %v2719 = vld [vmem:[%s1044] sm:$0x1]
      %v2721 = vlaneseq
      %v2722 = vshrl.u32 %v2721, 7
      %v2723 = vsub.s32 0, %v2722
      %v2724 = vrot.slane %v2719, %v2723
      %v2742 = vunpack.c.l.b16 %v2703
      %v2743 = vunpack.c.l.b16 %v2704
      %v2744 = vunpack.c.l.b16 %v2705
      %v2745 = vunpack.c.l.b16 %v2706
      %v2746 = vunpack.c.l.b16 %v2707
      %v2747 = vunpack.c.l.b16 %v2708
      %v2748 = vunpack.c.l.b16 %v2709
      %v2749 = vunpack.c.l.b16 %v2710
      %v2750 = vunpack.c.l.b16 %v2711
      %v2751 = vunpack.c.l.b16 %v2712
      %v2752 = vunpack.c.l.b16 %v2713
      %v2753 = vunpack.c.l.b16 %v2714
      %v2754 = vunpack.c.l.b16 %v2715
      %v2755 = vunpack.c.l.b16 %v2716
      %v2756 = vunpack.c.l.b16 %v2717
      %v2757 = vunpack.c.l.b16 %v2718
      %v2758 = vpack.c.b16 %v2743, %v2742
      %v2759 = vpack.c.b16 %v2745, %v2744
      %v2760 = vpack.c.b16 %v2747, %v2746
      %v2761 = vpack.c.b16 %v2749, %v2748
      %v2762 = vpack.c.b16 %v2751, %v2750
      %v2763 = vpack.c.b16 %v2753, %v2752
      %v2764 = vpack.c.b16 %v2755, %v2754
      %v2765 = vpack.c.b16 %v2757, %v2756
      %2774 = vmatprep.subr.bf16.mxu0 0
      %2775 = vmatpush1.bf16.msra.mxu0 %v2765
      %2776 = vmatprep.subr.bf16.mxu0 0
      %2777 = vmatpush1.bf16.msra.mxu0 %v2764
      %2778 = vmatprep.subr.bf16.mxu0 0
      %2779 = vmatpush1.bf16.msra.mxu0 %v2763
      %2780 = vmatprep.subr.bf16.mxu0 0
      %2781 = vmatpush1.bf16.msra.mxu0 %v2762
      %2782 = vmatprep.subr.bf16.mxu0 0
      %2783 = vmatpush1.bf16.msra.mxu0 %v2761
      %2784 = vmatprep.subr.bf16.mxu0 0
      %2785 = vmatpush1.bf16.msra.mxu0 %v2760
      %2786 = vmatprep.subr.bf16.mxu0 0
      %2787 = vmatpush1.bf16.msra.mxu0 %v2759
      %2788 = vmatprep.subr.bf16.mxu0 0
      %2789 = vmatpush1.bf16.msra.mxu0 %v2758
      %2790 = vmatprep.subr.bf16.mxu0 0
      %2791 = vmatpush2.bf16.msra.mxu0 0
      %2792 = vmatprep.subr.bf16.mxu0 0
      %2793 = vmatpush2.bf16.msra.mxu0 0
      %2794 = vmatprep.subr.bf16.mxu0 0
      %2795 = vmatpush2.bf16.msra.mxu0 0
      %2796 = vmatprep.subr.bf16.mxu0 0
      %2797 = vmatpush2.bf16.msra.mxu0 0
      %2798 = vmatprep.subr.bf16.mxu0 0
      %2799 = vmatpush2.bf16.msra.mxu0 0
      %2800 = vmatprep.subr.bf16.mxu0 0
      %2801 = vmatpush2.bf16.msra.mxu0 0
      %2802 = vmatprep.subr.bf16.mxu0 0
      %2803 = vmatpush2.bf16.msra.mxu0 0
      %2804 = vmatprep.subr.bf16.mxu0 0
      %2805 = vmatpush2.bf16.msra.mxu0 0
      %2806 = vmatprep.mubr.bf16.mxu0 0
      %2807 = vmatmul.mubr.bf16.gmra.mxu0 %v2700
      %v2808 = vpop.f32.mrf.mxu0
      %v2809 = vadd.f32 %v2724, %v2808
      %v2810 = vpop.f32.mrf.mxu0
      %v2811 = vpop.f32.mrf.mxu0
      %v2812 = vadd.f32 %v2724, %v2811
      %v2813 = vpop.f32.mrf.mxu0
      %2814 = vmatprep.mubr.bf16.mxu0 0
      %2815 = vmatmul.mubr.bf16.gmra.mxu0 %v2701
      %v2816 = vpop.f32.mrf.mxu0
      %v2817 = vadd.f32 %v2724, %v2816
      %v2818 = vpop.f32.mrf.mxu0
      %v2819 = vpop.f32.mrf.mxu0
      %v2820 = vadd.f32 %v2724, %v2819
      %v2821 = vpop.f32.mrf.mxu0
      %2822 = vmatprep.mubr.bf16.mxu0 0
      %2823 = vmatmul.mubr.bf16.gmra.mxu0 %v2702
      %v2824 = vpop.f32.mrf.mxu0
      %v2825 = vadd.f32 %v2724, %v2824
      %v2826 = vpop.f32.mrf.mxu0
      %v2827 = vpop.f32.mrf.mxu0
      %v2828 = vadd.f32 %v2724, %v2827
      %v2829 = vpop.f32.mrf.mxu0
      %2830 = vdwg.mxu0
      %v2831 = vadd.f32 %v2444, %v2809
      %v2832 = vadd.f32 %v2445, %v2812
      %v2833 = vadd.f32 %v2446, %v2817
      %v2834 = vadd.f32 %v2447, %v2820
      %v2835 = vadd.f32 %v2448, %v2825
      %v2836 = vadd.f32 %v2449, %v2828
      %2837 = vst.msk [vmem:[#allocation2] sm:$0xff] %vm1222, %v2831
      %2838 = vst.msk [vmem:[#allocation2 + $0x8] sm:$0xff] %vm1222, %v2832
      %2839 = vst.msk [vmem:[#allocation2 + $0x10] sm:$0xff] %vm1222, %v2833
      %2840 = vst.msk [vmem:[#allocation2 + $0x18] sm:$0xff] %vm1222, %v2834
      %2841 = vst.msk [vmem:[#allocation2 + $0x20] sm:$0xff] %vm1222, %v2835
      %2842 = vst.msk [vmem:[#allocation2 + $0x28] sm:$0xff] %vm1222, %v2836
      %p2843 = scmp.eq.s32.totalorder %s40, 1
      // Predicated region
      $region121: #{_forward_impl.1} parent=115 // pred_check
        %p2844 = pneg %p2843
      $region122: #{_forward_impl.1} parent=115 // pred_check_branch
        %2846 = sbr.rel (%p2844) target = $region124
      $region123: #{_forward_impl.1} parent=115 // pred_region
        %v2847 = vld [vmem:[%s22] sm:$0x1]
        %v2848 = vld [vmem:[%s23] sm:$0x1]
        %v2849 = vsel %vm1222, %v2831, 0.0
        %2850 = vadd.xlane.f32.xlu0 %v2849
        %v2851 = vpop.xlane.xlu0 %2850
        %v2852 = vsel %vm1222, %v2832, 0.0
        %2853 = vadd.xlane.f32.xlu0 %v2852
        %v2854 = vpop.xlane.xlu0 %2853
        %v2855 = vsel %vm1222, %v2833, 0.0
        %2856 = vadd.xlane.f32.xlu0 %v2855
        %v2857 = vpop.xlane.xlu0 %2856
        %v2858 = vsel %vm1222, %v2834, 0.0
        %2859 = vadd.xlane.f32.xlu0 %v2858
        %v2860 = vpop.xlane.xlu0 %2859
        %v2861 = vsel %vm1222, %v2835, 0.0
        %2862 = vadd.xlane.f32.xlu0 %v2861
        %v2863 = vpop.xlane.xlu0 %2862
        %v2864 = vsel %vm1222, %v2836, 0.0
        %2865 = vadd.xlane.f32.xlu0 %v2864
        %v2866 = vpop.xlane.xlu0 %2865
        %v2867 = vmul.f32 %v2851, %v1241
        %v2868 = vmul.f32 %v2854, %v1241
        %v2869 = vmul.f32 %v2857, %v1241
        %v2870 = vmul.f32 %v2860, %v1241
        %v2871 = vmul.f32 %v2863, %v1241
        %v2872 = vmul.f32 %v2866, %v1241
        %v2873 = vsub.f32 %v2831, %v2867
        %v2874 = vsub.f32 %v2832, %v2868
        %v2875 = vsub.f32 %v2833, %v2869
        %v2876 = vsub.f32 %v2834, %v2870
        %v2877 = vsub.f32 %v2835, %v2871
        %v2878 = vsub.f32 %v2836, %v2872
        %v2879 = vmul.f32 %v2873, %v2873
        %v2880 = vmul.f32 %v2874, %v2874
        %v2881 = vmul.f32 %v2875, %v2875
        %v2882 = vmul.f32 %v2876, %v2876
        %v2883 = vmul.f32 %v2877, %v2877
        %v2884 = vmul.f32 %v2878, %v2878
        %v2885 = vsel %vm1222, %v2879, 0.0
        %2886 = vadd.xlane.f32.xlu0 %v2885
        %v2887 = vpop.xlane.xlu0 %2886
        %v2888 = vsel %vm1222, %v2880, 0.0
        %2889 = vadd.xlane.f32.xlu0 %v2888
        %v2890 = vpop.xlane.xlu0 %2889
        %v2891 = vsel %vm1222, %v2881, 0.0
        %2892 = vadd.xlane.f32.xlu0 %v2891
        %v2893 = vpop.xlane.xlu0 %2892
        %v2894 = vsel %vm1222, %v2882, 0.0
        %2895 = vadd.xlane.f32.xlu0 %v2894
        %v2896 = vpop.xlane.xlu0 %2895
        %v2897 = vsel %vm1222, %v2883, 0.0
        %2898 = vadd.xlane.f32.xlu0 %v2897
        %v2899 = vpop.xlane.xlu0 %2898
        %v2900 = vsel %vm1222, %v2884, 0.0
        %2901 = vadd.xlane.f32.xlu0 %v2900
        %v2902 = vpop.xlane.xlu0 %2901
        %v2903 = vmul.f32 %v2887, %v1241
        %v2904 = vmul.f32 %v2890, %v1241
        %v2905 = vmul.f32 %v2893, %v1241
        %v2906 = vmul.f32 %v2896, %v1241
        %v2907 = vmul.f32 %v2899, %v1241
        %v2908 = vmul.f32 %v2902, %v1241
        %v2909 = vadd.f32 %v2903, 1e-05
        %v2910 = vadd.f32 %v2904, 1e-05
        %v2911 = vadd.f32 %v2905, 1e-05
        %v2912 = vadd.f32 %v2906, 1e-05
        %v2913 = vadd.f32 %v2907, 1e-05
        %v2914 = vadd.f32 %v2908, 1e-05
        %v2915 = vrsqrt.pop %v2909
        %v2916 = vrsqrt.pop %v2910
        %v2917 = vrsqrt.pop %v2911
        %v2918 = vrsqrt.pop %v2912
        %v2919 = vrsqrt.pop %v2913
        %v2920 = vrsqrt.pop %v2914
        %v2921 = vmul.f32 %v2873, %v2915
        %v2922 = vmul.f32 %v2874, %v2916
        %v2923 = vmul.f32 %v2875, %v2917
        %v2924 = vmul.f32 %v2876, %v2918
        %v2925 = vmul.f32 %v2877, %v2919
        %v2926 = vmul.f32 %v2878, %v2920
        %v2928 = vlaneseq
        %v2929 = vshrl.u32 %v2928, 7
        %v2930 = vsub.s32 0, %v2929
        %v2931 = vrot.slane %v2847, %v2930
        %v2933 = vmul.f32 %v2921, %v2931
        %v2934 = vmul.f32 %v2922, %v2931
        %v2935 = vmul.f32 %v2923, %v2931
        %v2936 = vmul.f32 %v2924, %v2931
        %v2937 = vmul.f32 %v2925, %v2931
        %v2938 = vmul.f32 %v2926, %v2931
        %v2940 = vlaneseq
        %v2941 = vshrl.u32 %v2940, 7
        %v2942 = vsub.s32 0, %v2941
        %v2943 = vrot.slane %v2848, %v2942
        %v2945 = vadd.f32 %v2933, %v2943
        %v2946 = vadd.f32 %v2934, %v2943
        %v2947 = vadd.f32 %v2935, %v2943
        %v2948 = vadd.f32 %v2936, %v2943
        %v2949 = vadd.f32 %v2937, %v2943
        %v2950 = vadd.f32 %v2938, %v2943
        %2951 = vst.msk [vmem:[%s1050] sm:$0xff] %vm1222, %v2945
        %2952 = vst.msk [vmem:[%s1050 + $0x8] sm:$0xff] %vm1222, %v2946
        %2953 = vst.msk [vmem:[%s1050 + $0x10] sm:$0xff] %vm1222, %v2947
        %2954 = vst.msk [vmem:[%s1050 + $0x18] sm:$0xff] %vm1222, %v2948
        %2955 = vst.msk [vmem:[%s1050 + $0x20] sm:$0xff] %vm1222, %v2949
        %2956 = vst.msk [vmem:[%s1050 + $0x28] sm:$0xff] %vm1222, %v2950
      $region124: #{_forward_impl.1} parent=115 // pred_fallthru
        _
      %s2957 = smul.u32 2, %s39
      %p2958 = scmp.lt.s32.totalorder %s2957, 1
      %s2959 = scalar_select %p2958, %s2957, 1
      %s2960 = smul.addr %s2959, 3
      %s2961 = smul.addr %s2960, 8
      %s2962 = scalar_lea.vmem %s24, %s2961
      // Predicated region
      $region125: #{_forward_impl.1} parent=115 // pred_check
        %p2963 = pneg %p659
      $region126: #{_forward_impl.1} parent=115 // pred_check_branch
        %2965 = sbr.rel (%p2963) target = $region128
      $region127: #{_forward_impl.1} parent=115 // pred_region
        %s2966 = smul.u32 2, %s39
      $region128: #{_forward_impl.1} parent=115 // pred_fallthru
        _
      // Predicated region
      $region129: #{_forward_impl.1} parent=115 // pred_check
        %p2967 = pneg %p659
      $region130: #{_forward_impl.1} parent=115 // pred_check_branch
        %2969 = sbr.rel (%p2967) target = $region132
      $region131: #{_forward_impl.1} parent=115 // pred_region
        %s2970 = smul.u32 2, %s39
        %p2971 = scmp.lt.s32.totalorder %s2970, 1
        %s2972 = scalar_select %p2971, %s2970, 1
        %s2973 = smul.addr %s2972, 3
        %s2974 = smul.addr %s2973, 8
        %s2975 = scalar_lea.vmem %s24, %s2974
      $region132: #{_forward_impl.1} parent=115 // pred_fallthru
        _
    $region116: #{_forward_impl.1} parent=5 // pred_fallthru
      _
    %p2976 = scmp.le.s32.totalorder 2, %s30
    // Predicated region
    $region133: #{_forward_impl.1} parent=5 // pred_check
      %p2977 = pneg %p2976
    $region134: #{_forward_impl.1} parent=5 // pred_check_branch
      %2979 = sbr.rel (%p2977) target = $region136
    $region135: #{_forward_impl.1} parent=5 // pred_region
      %s2980 = ssub.s32 %s30, 2
    $region136: #{_forward_impl.1} parent=5 // pred_fallthru
      _
  $region6: #{_forward_impl.1} parent=0 // loop_footer
    %s34 = sadd.s32 1, %s30
  $region7: #{_forward_impl.1} parent=0 // loop_footer_branch
    %29 = sbr.rel target = $region3
  $region8: #{_forward_impl.1} parent=0 // loop_exit
    _

</llo_original>
